<compile_context>
chip_gen: v7x
topology: tpu7x:2x2x1
jax: 0.10.0
libtpu: 0.0.40
codegen_flags: <defaults>
</compile_context>

<pallas_src>
import functools

import jax
import jax.numpy as jnp
from jax.experimental import pallas as pl
from jax.experimental.pallas import tpu as pltpu

# ---- model hyperparameters (placeholders in the template filled in) --------
NUM_FEATURE = 37           # input feature size
HIDDEN_SIZE = 32           # HIDDEN_SIZE_2_HERE
HIDDEN_SIZE2 = 16          # HIDDEN_SIZE_3_HERE
NUM_CLASSES = 2
NUM_LAYERS = 3             # NUM_OF_LAYER_HERE (lstm_3layer)

SUBLANE = 8                # pad batch to a multiple of this for aligned vregs


# ---------------------------------------------------------------------------
# Fused Pallas kernel: 3 stacked LSTM layers + relu(fc3) + fc4
# ---------------------------------------------------------------------------
def _fused_rnn_kernel(x_ref,
                      wih0_ref, whh0_ref, b0_ref,
                      wih1_ref, whh1_ref, b1_ref,
                      wih2_ref, whh2_ref, b2_ref,
                      w3_ref, b3_ref, w4_ref, b4_ref,
                      out_ref,
                      *, seq_len, batch):
    T, B = seq_len, batch                 # B is already sublane-padded (8)
    H = whh0_ref.shape[0]

    def run_layer(x_flat, wih_ref, whh_ref, b_ref):
        # Hoisted input projection: one (T*B, D) @ (D, 4H) matmul + bias per
        # layer, kept as a traced (register-resident) value — only a few
        # vregs at this size, so no VMEM staging and no per-step reloads.
        gx = jnp.dot(x_flat, wih_ref[...],
                     preferred_element_type=jnp.float32) + b_ref[...]
        whh = whh_ref[...]                # (H, 4H), loaded once per layer

        h = jnp.zeros((B, H), jnp.float32)
        c = jnp.zeros((B, H), jnp.float32)
        hs = []
        # T is small and static -> fully unrolled recurrence; one small MXU
        # matmul + 3 EUP pushes + gate VPU math per step on the serial path.
        for t in range(T):
            # B == 8 -> this static slice is exactly one (8,128) vreg view.
            gates = gx[t * B:(t + 1) * B, :] + jnp.dot(
                h, whh, preferred_element_type=jnp.float32)       # (B, 4H)
            # One sigmoid and one tanh over the full vreg; slice afterwards.
            sig_g = jax.nn.sigmoid(gates)
            tanh_g = jnp.tanh(gates)
            # PyTorch gate ordering: i, f, g, o
            i_g = sig_g[:, 0 * H:1 * H]
            f_g = sig_g[:, 1 * H:2 * H]
            g_g = tanh_g[:, 2 * H:3 * H]
            o_g = sig_g[:, 3 * H:4 * H]
            c = f_g * c + i_g * g_g
            h = o_g * jnp.tanh(c)
            hs.append(h)                   # stays in registers
        return jnp.concatenate(hs, axis=0)  # (T*B, H), register-resident

    # Layer 0 reads x; layer outputs feed the next layer's hoisted projection.
    h_flat = run_layer(x_ref[...], wih0_ref, whh0_ref, b0_ref)
    # TODO(synk): inter-layer LSTM dropout(0.4) is identity in eval mode.
    h_flat = run_layer(h_flat, wih1_ref, whh1_ref, b1_ref)
    h_flat = run_layer(h_flat, wih2_ref, whh2_ref, b2_ref)

    # FC head: relu(fc3(x)) -> dropout (identity at eval) -> fc4(x)
    z = jnp.dot(h_flat, w3_ref[...],
                preferred_element_type=jnp.float32) + b3_ref[...]
    z = jnp.maximum(z, 0.0)
    # TODO(synk): nn.Dropout(p=0.5) is identity in eval mode; no RNG applied.
    out_ref[...] = jnp.dot(z, w4_ref[...],
                           preferred_element_type=jnp.float32) + b4_ref[...]


# ---------------------------------------------------------------------------
# Wrapper: single pallas_call for the whole forward pass
# ---------------------------------------------------------------------------
@jax.jit
def rnn_forward(x, params):
    """x: (T, B, NUM_FEATURE) -> (T, B, NUM_CLASSES)."""
    T, B, F = x.shape
    H, H2, C = HIDDEN_SIZE, HIDDEN_SIZE2, NUM_CLASSES
    l0, l1, l2 = params["lstm"]

    # Pad batch to a full sublane group so every in-kernel slice/vreg is
    # (8,128)-aligned. Padded rows compute garbage that is never read.
    B_pad = max(SUBLANE, ((B + SUBLANE - 1) // SUBLANE) * SUBLANE)
    if B_pad != B:
        x = jnp.pad(x, ((0, 0), (0, B_pad - B), (0, 0)))
    x_flat = x.reshape(T * B_pad, F)

    kernel = functools.partial(_fused_rnn_kernel, seq_len=T, batch=B_pad)

    vmem = pl.BlockSpec(memory_space=pltpu.MemorySpace.VMEM)

    out2d = pl.pallas_call(
        kernel,
        out_shape=jax.ShapeDtypeStruct((T * B_pad, C), jnp.float32),
        in_specs=[vmem] * 14,
        out_specs=vmem,
    )(x_flat,
      l0["w_ih_t"], l0["w_hh_t"], l0["bias"],
      l1["w_ih_t"], l1["w_hh_t"], l1["bias"],
      l2["w_ih_t"], l2["w_hh_t"], l2["bias"],
      params["fc3_w_t"], params["fc3_b"],
      params["fc4_w_t"], params["fc4_b"])

    return out2d.reshape(T, B_pad, C)[:, :B, :]


# ---------------------------------------------------------------------------
# Parameter init (deterministic, PyTorch-style uniform(-1/sqrt(H), 1/sqrt(H)))
# ---------------------------------------------------------------------------
def init_params(key):
    params = {"lstm": []}
    k = 1.0 / jnp.sqrt(jnp.float32(HIDDEN_SIZE))
    for layer in range(NUM_LAYERS):
        in_dim = NUM_FEATURE if layer == 0 else HIDDEN_SIZE
        key, k1, k2, k3, k4 = jax.random.split(key, 5)
        w_ih = jax.random.uniform(k1, (4 * HIDDEN_SIZE, in_dim),
                                  jnp.float32, -k, k)
        w_hh = jax.random.uniform(k2, (4 * HIDDEN_SIZE, HIDDEN_SIZE),
                                  jnp.float32, -k, k)
        b_ih = jax.random.uniform(k3, (4 * HIDDEN_SIZE,), jnp.float32, -k, k)
        b_hh = jax.random.uniform(k4, (4 * HIDDEN_SIZE,), jnp.float32, -k, k)
        params["lstm"].append({
            "w_ih_t": w_ih.T,                              # (D, 4H)
            "w_hh_t": w_hh.T,                              # (H, 4H)
            "bias": (b_ih + b_hh).reshape(1, 4 * HIDDEN_SIZE),
        })
    k3f = 1.0 / jnp.sqrt(jnp.float32(HIDDEN_SIZE))
    k4f = 1.0 / jnp.sqrt(jnp.float32(HIDDEN_SIZE2))
    key, a, b, c, d = jax.random.split(key, 5)
    params["fc3_w_t"] = jax.random.uniform(
        a, (HIDDEN_SIZE2, HIDDEN_SIZE), jnp.float32, -k3f, k3f).T   # (H, H2)
    params["fc3_b"] = jax.random.uniform(
        b, (HIDDEN_SIZE2,), jnp.float32, -k3f, k3f).reshape(1, HIDDEN_SIZE2)
    params["fc4_w_t"] = jax.random.uniform(
        c, (NUM_CLASSES, HIDDEN_SIZE2), jnp.float32, -k4f, k4f).T   # (H2, C)
    params["fc4_b"] = jax.random.uniform(
        d, (NUM_CLASSES,), jnp.float32, -k4f, k4f).reshape(1, NUM_CLASSES)
    return params


if __name__ == "__main__":
    key = jax.random.PRNGKey(0)
    key_x, key_p = jax.random.split(key)

    T, B = 8, 2
    x = jax.random.normal(key_x, (T, B, NUM_FEATURE), dtype=jnp.float32)
    params = init_params(key_p)

    out = rnn_forward(x, params)
    out = jax.block_until_ready(out)
    assert out.shape == (T, B, NUM_CLASSES), out.shape
    assert jnp.all(jnp.isfinite(out))
    print("KERNEL_OK")
</pallas_src>

<mosaic_0001>
module attributes {stable_mosaic.version = 11 : i64} {
  func.func @_fused_rnn_kernel(%arg0: memref<64x37xf32, #tpu.memory_space<vmem>>, %arg1: memref<37x128xf32, #tpu.memory_space<vmem>>, %arg2: memref<32x128xf32, #tpu.memory_space<vmem>>, %arg3: memref<1x128xf32, #tpu.memory_space<vmem>>, %arg4: memref<32x128xf32, #tpu.memory_space<vmem>>, %arg5: memref<32x128xf32, #tpu.memory_space<vmem>>, %arg6: memref<1x128xf32, #tpu.memory_space<vmem>>, %arg7: memref<32x128xf32, #tpu.memory_space<vmem>>, %arg8: memref<32x128xf32, #tpu.memory_space<vmem>>, %arg9: memref<1x128xf32, #tpu.memory_space<vmem>>, %arg10: memref<32x16xf32, #tpu.memory_space<vmem>>, %arg11: memref<1x16xf32, #tpu.memory_space<vmem>>, %arg12: memref<16x2xf32, #tpu.memory_space<vmem>>, %arg13: memref<1x2xf32, #tpu.memory_space<vmem>>, %arg14: memref<64x2xf32, #tpu.memory_space<vmem>>) attributes {dimension_semantics = [], scalar_prefetch = 0 : i64, scratch_operands = 0 : i64, tpu.core_type = #tpu.core_type<tc>} {
    %c0 = arith.constant 0 : index
    %c0_0 = arith.constant 0 : index
    %0 = vector.load %arg0[%c0, %c0_0] : memref<64x37xf32, #tpu.memory_space<vmem>>, vector<64x37xf32>
    %c0_1 = arith.constant 0 : index
    %c0_2 = arith.constant 0 : index
    %1 = vector.load %arg1[%c0_1, %c0_2] : memref<37x128xf32, #tpu.memory_space<vmem>>, vector<37x128xf32>
    %cst = arith.constant dense<0.000000e+00> : vector<64x128xf32>
    %2 = tpu.matmul %0, %1, %cst {dimension_numbers = #tpu.dot_dimension_numbers<[1], [0], [0], [1], [0, 0, 1, 1], [], []>} : vector<64x37xf32>, vector<37x128xf32>, vector<64x128xf32> -> vector<64x128xf32>
    %c0_3 = arith.constant 0 : index
    %c0_4 = arith.constant 0 : index
    %3 = vector.load %arg3[%c0_3, %c0_4] : memref<1x128xf32, #tpu.memory_space<vmem>>, vector<1x128xf32>
    %4 = vector.broadcast %3 : vector<1x128xf32> to vector<64x128xf32>
    %5 = arith.addf %2, %4 : vector<64x128xf32>
    %c0_5 = arith.constant 0 : index
    %c0_6 = arith.constant 0 : index
    %6 = vector.load %arg2[%c0_5, %c0_6] : memref<32x128xf32, #tpu.memory_space<vmem>>, vector<32x128xf32>
    %cst_7 = arith.constant 0.000000e+00 : f32
    %7 = vector.broadcast %cst_7 : f32 to vector<8x32xf32>
    %cst_8 = arith.constant 0.000000e+00 : f32
    %8 = vector.broadcast %cst_8 : f32 to vector<8x32xf32>
    %9 = vector.extract_strided_slice %5 {offsets = [0, 0], sizes = [8, 128], strides = [1, 1]} : vector<64x128xf32> to vector<8x128xf32>
    %cst_9 = arith.constant dense<0.000000e+00> : vector<8x128xf32>
    %10 = tpu.matmul %7, %6, %cst_9 {dimension_numbers = #tpu.dot_dimension_numbers<[1], [0], [0], [1], [0, 0, 1, 1], [], []>} : vector<8x32xf32>, vector<32x128xf32>, vector<8x128xf32> -> vector<8x128xf32>
    %11 = arith.addf %9, %10 : vector<8x128xf32>
    %12 = arith.negf %11 : vector<8x128xf32>
    %13 = math.exp %12 : vector<8x128xf32>
    %cst_10 = arith.constant 1.000000e+00 : f32
    %14 = vector.broadcast %cst_10 : f32 to vector<8x128xf32>
    %15 = arith.addf %14, %13 : vector<8x128xf32>
    %16 = arith.divf %14, %15 : vector<8x128xf32>
    %17 = math.tanh %11 : vector<8x128xf32>
    %18 = vector.extract_strided_slice %16 {offsets = [0, 0], sizes = [8, 32], strides = [1, 1]} : vector<8x128xf32> to vector<8x32xf32>
    %19 = vector.extract_strided_slice %16 {offsets = [0, 32], sizes = [8, 32], strides = [1, 1]} : vector<8x128xf32> to vector<8x32xf32>
    %20 = vector.extract_strided_slice %17 {offsets = [0, 64], sizes = [8, 32], strides = [1, 1]} : vector<8x128xf32> to vector<8x32xf32>
    %21 = vector.extract_strided_slice %16 {offsets = [0, 96], sizes = [8, 32], strides = [1, 1]} : vector<8x128xf32> to vector<8x32xf32>
    %22 = arith.mulf %19, %8 : vector<8x32xf32>
    %23 = arith.mulf %18, %20 : vector<8x32xf32>
    %24 = arith.addf %22, %23 : vector<8x32xf32>
    %25 = math.tanh %24 : vector<8x32xf32>
    %26 = arith.mulf %21, %25 : vector<8x32xf32>
    %27 = vector.extract_strided_slice %5 {offsets = [8, 0], sizes = [8, 128], strides = [1, 1]} : vector<64x128xf32> to vector<8x128xf32>
    %cst_11 = arith.constant dense<0.000000e+00> : vector<8x128xf32>
    %28 = tpu.matmul %26, %6, %cst_11 {dimension_numbers = #tpu.dot_dimension_numbers<[1], [0], [0], [1], [0, 0, 1, 1], [], []>} : vector<8x32xf32>, vector<32x128xf32>, vector<8x128xf32> -> vector<8x128xf32>
    %29 = arith.addf %27, %28 : vector<8x128xf32>
    %30 = arith.negf %29 : vector<8x128xf32>
    %31 = math.exp %30 : vector<8x128xf32>
    %cst_12 = arith.constant 1.000000e+00 : f32
    %32 = vector.broadcast %cst_12 : f32 to vector<8x128xf32>
    %33 = arith.addf %32, %31 : vector<8x128xf32>
    %34 = arith.divf %32, %33 : vector<8x128xf32>
    %35 = math.tanh %29 : vector<8x128xf32>
    %36 = vector.extract_strided_slice %34 {offsets = [0, 0], sizes = [8, 32], strides = [1, 1]} : vector<8x128xf32> to vector<8x32xf32>
    %37 = vector.extract_strided_slice %34 {offsets = [0, 32], sizes = [8, 32], strides = [1, 1]} : vector<8x128xf32> to vector<8x32xf32>
    %38 = vector.extract_strided_slice %35 {offsets = [0, 64], sizes = [8, 32], strides = [1, 1]} : vector<8x128xf32> to vector<8x32xf32>
    %39 = vector.extract_strided_slice %34 {offsets = [0, 96], sizes = [8, 32], strides = [1, 1]} : vector<8x128xf32> to vector<8x32xf32>
    %40 = arith.mulf %37, %24 : vector<8x32xf32>
    %41 = arith.mulf %36, %38 : vector<8x32xf32>
    %42 = arith.addf %40, %41 : vector<8x32xf32>
    %43 = math.tanh %42 : vector<8x32xf32>
    %44 = arith.mulf %39, %43 : vector<8x32xf32>
    %45 = vector.extract_strided_slice %5 {offsets = [16, 0], sizes = [8, 128], strides = [1, 1]} : vector<64x128xf32> to vector<8x128xf32>
    %cst_13 = arith.constant dense<0.000000e+00> : vector<8x128xf32>
    %46 = tpu.matmul %44, %6, %cst_13 {dimension_numbers = #tpu.dot_dimension_numbers<[1], [0], [0], [1], [0, 0, 1, 1], [], []>} : vector<8x32xf32>, vector<32x128xf32>, vector<8x128xf32> -> vector<8x128xf32>
    %47 = arith.addf %45, %46 : vector<8x128xf32>
    %48 = arith.negf %47 : vector<8x128xf32>
    %49 = math.exp %48 : vector<8x128xf32>
    %cst_14 = arith.constant 1.000000e+00 : f32
    %50 = vector.broadcast %cst_14 : f32 to vector<8x128xf32>
    %51 = arith.addf %50, %49 : vector<8x128xf32>
    %52 = arith.divf %50, %51 : vector<8x128xf32>
    %53 = math.tanh %47 : vector<8x128xf32>
    %54 = vector.extract_strided_slice %52 {offsets = [0, 0], sizes = [8, 32], strides = [1, 1]} : vector<8x128xf32> to vector<8x32xf32>
    %55 = vector.extract_strided_slice %52 {offsets = [0, 32], sizes = [8, 32], strides = [1, 1]} : vector<8x128xf32> to vector<8x32xf32>
    %56 = vector.extract_strided_slice %53 {offsets = [0, 64], sizes = [8, 32], strides = [1, 1]} : vector<8x128xf32> to vector<8x32xf32>
    %57 = vector.extract_strided_slice %52 {offsets = [0, 96], sizes = [8, 32], strides = [1, 1]} : vector<8x128xf32> to vector<8x32xf32>
    %58 = arith.mulf %55, %42 : vector<8x32xf32>
    %59 = arith.mulf %54, %56 : vector<8x32xf32>
    %60 = arith.addf %58, %59 : vector<8x32xf32>
    %61 = math.tanh %60 : vector<8x32xf32>
    %62 = arith.mulf %57, %61 : vector<8x32xf32>
    %63 = vector.extract_strided_slice %5 {offsets = [24, 0], sizes = [8, 128], strides = [1, 1]} : vector<64x128xf32> to vector<8x128xf32>
    %cst_15 = arith.constant dense<0.000000e+00> : vector<8x128xf32>
    %64 = tpu.matmul %62, %6, %cst_15 {dimension_numbers = #tpu.dot_dimension_numbers<[1], [0], [0], [1], [0, 0, 1, 1], [], []>} : vector<8x32xf32>, vector<32x128xf32>, vector<8x128xf32> -> vector<8x128xf32>
    %65 = arith.addf %63, %64 : vector<8x128xf32>
    %66 = arith.negf %65 : vector<8x128xf32>
    %67 = math.exp %66 : vector<8x128xf32>
    %cst_16 = arith.constant 1.000000e+00 : f32
    %68 = vector.broadcast %cst_16 : f32 to vector<8x128xf32>
    %69 = arith.addf %68, %67 : vector<8x128xf32>
    %70 = arith.divf %68, %69 : vector<8x128xf32>
    %71 = math.tanh %65 : vector<8x128xf32>
    %72 = vector.extract_strided_slice %70 {offsets = [0, 0], sizes = [8, 32], strides = [1, 1]} : vector<8x128xf32> to vector<8x32xf32>
    %73 = vector.extract_strided_slice %70 {offsets = [0, 32], sizes = [8, 32], strides = [1, 1]} : vector<8x128xf32> to vector<8x32xf32>
    %74 = vector.extract_strided_slice %71 {offsets = [0, 64], sizes = [8, 32], strides = [1, 1]} : vector<8x128xf32> to vector<8x32xf32>
    %75 = vector.extract_strided_slice %70 {offsets = [0, 96], sizes = [8, 32], strides = [1, 1]} : vector<8x128xf32> to vector<8x32xf32>
    %76 = arith.mulf %73, %60 : vector<8x32xf32>
    %77 = arith.mulf %72, %74 : vector<8x32xf32>
    %78 = arith.addf %76, %77 : vector<8x32xf32>
    %79 = math.tanh %78 : vector<8x32xf32>
    %80 = arith.mulf %75, %79 : vector<8x32xf32>
    %81 = vector.extract_strided_slice %5 {offsets = [32, 0], sizes = [8, 128], strides = [1, 1]} : vector<64x128xf32> to vector<8x128xf32>
    %cst_17 = arith.constant dense<0.000000e+00> : vector<8x128xf32>
    %82 = tpu.matmul %80, %6, %cst_17 {dimension_numbers = #tpu.dot_dimension_numbers<[1], [0], [0], [1], [0, 0, 1, 1], [], []>} : vector<8x32xf32>, vector<32x128xf32>, vector<8x128xf32> -> vector<8x128xf32>
    %83 = arith.addf %81, %82 : vector<8x128xf32>
    %84 = arith.negf %83 : vector<8x128xf32>
    %85 = math.exp %84 : vector<8x128xf32>
    %cst_18 = arith.constant 1.000000e+00 : f32
    %86 = vector.broadcast %cst_18 : f32 to vector<8x128xf32>
    %87 = arith.addf %86, %85 : vector<8x128xf32>
    %88 = arith.divf %86, %87 : vector<8x128xf32>
    %89 = math.tanh %83 : vector<8x128xf32>
    %90 = vector.extract_strided_slice %88 {offsets = [0, 0], sizes = [8, 32], strides = [1, 1]} : vector<8x128xf32> to vector<8x32xf32>
    %91 = vector.extract_strided_slice %88 {offsets = [0, 32], sizes = [8, 32], strides = [1, 1]} : vector<8x128xf32> to vector<8x32xf32>
    %92 = vector.extract_strided_slice %89 {offsets = [0, 64], sizes = [8, 32], strides = [1, 1]} : vector<8x128xf32> to vector<8x32xf32>
    %93 = vector.extract_strided_slice %88 {offsets = [0, 96], sizes = [8, 32], strides = [1, 1]} : vector<8x128xf32> to vector<8x32xf32>
    %94 = arith.mulf %91, %78 : vector<8x32xf32>
    %95 = arith.mulf %90, %92 : vector<8x32xf32>
    %96 = arith.addf %94, %95 : vector<8x32xf32>
    %97 = math.tanh %96 : vector<8x32xf32>
    %98 = arith.mulf %93, %97 : vector<8x32xf32>
    %99 = vector.extract_strided_slice %5 {offsets = [40, 0], sizes = [8, 128], strides = [1, 1]} : vector<64x128xf32> to vector<8x128xf32>
    %cst_19 = arith.constant dense<0.000000e+00> : vector<8x128xf32>
    %100 = tpu.matmul %98, %6, %cst_19 {dimension_numbers = #tpu.dot_dimension_numbers<[1], [0], [0], [1], [0, 0, 1, 1], [], []>} : vector<8x32xf32>, vector<32x128xf32>, vector<8x128xf32> -> vector<8x128xf32>
    %101 = arith.addf %99, %100 : vector<8x128xf32>
    %102 = arith.negf %101 : vector<8x128xf32>
    %103 = math.exp %102 : vector<8x128xf32>
    %cst_20 = arith.constant 1.000000e+00 : f32
    %104 = vector.broadcast %cst_20 : f32 to vector<8x128xf32>
    %105 = arith.addf %104, %103 : vector<8x128xf32>
    %106 = arith.divf %104, %105 : vector<8x128xf32>
    %107 = math.tanh %101 : vector<8x128xf32>
    %108 = vector.extract_strided_slice %106 {offsets = [0, 0], sizes = [8, 32], strides = [1, 1]} : vector<8x128xf32> to vector<8x32xf32>
    %109 = vector.extract_strided_slice %106 {offsets = [0, 32], sizes = [8, 32], strides = [1, 1]} : vector<8x128xf32> to vector<8x32xf32>
    %110 = vector.extract_strided_slice %107 {offsets = [0, 64], sizes = [8, 32], strides = [1, 1]} : vector<8x128xf32> to vector<8x32xf32>
    %111 = vector.extract_strided_slice %106 {offsets = [0, 96], sizes = [8, 32], strides = [1, 1]} : vector<8x128xf32> to vector<8x32xf32>
    %112 = arith.mulf %109, %96 : vector<8x32xf32>
    %113 = arith.mulf %108, %110 : vector<8x32xf32>
    %114 = arith.addf %112, %113 : vector<8x32xf32>
    %115 = math.tanh %114 : vector<8x32xf32>
    %116 = arith.mulf %111, %115 : vector<8x32xf32>
    %117 = vector.extract_strided_slice %5 {offsets = [48, 0], sizes = [8, 128], strides = [1, 1]} : vector<64x128xf32> to vector<8x128xf32>
    %cst_21 = arith.constant dense<0.000000e+00> : vector<8x128xf32>
    %118 = tpu.matmul %116, %6, %cst_21 {dimension_numbers = #tpu.dot_dimension_numbers<[1], [0], [0], [1], [0, 0, 1, 1], [], []>} : vector<8x32xf32>, vector<32x128xf32>, vector<8x128xf32> -> vector<8x128xf32>
    %119 = arith.addf %117, %118 : vector<8x128xf32>
    %120 = arith.negf %119 : vector<8x128xf32>
    %121 = math.exp %120 : vector<8x128xf32>
    %cst_22 = arith.constant 1.000000e+00 : f32
    %122 = vector.broadcast %cst_22 : f32 to vector<8x128xf32>
    %123 = arith.addf %122, %121 : vector<8x128xf32>
    %124 = arith.divf %122, %123 : vector<8x128xf32>
    %125 = math.tanh %119 : vector<8x128xf32>
    %126 = vector.extract_strided_slice %124 {offsets = [0, 0], sizes = [8, 32], strides = [1, 1]} : vector<8x128xf32> to vector<8x32xf32>
    %127 = vector.extract_strided_slice %124 {offsets = [0, 32], sizes = [8, 32], strides = [1, 1]} : vector<8x128xf32> to vector<8x32xf32>
    %128 = vector.extract_strided_slice %125 {offsets = [0, 64], sizes = [8, 32], strides = [1, 1]} : vector<8x128xf32> to vector<8x32xf32>
    %129 = vector.extract_strided_slice %124 {offsets = [0, 96], sizes = [8, 32], strides = [1, 1]} : vector<8x128xf32> to vector<8x32xf32>
    %130 = arith.mulf %127, %114 : vector<8x32xf32>
    %131 = arith.mulf %126, %128 : vector<8x32xf32>
    %132 = arith.addf %130, %131 : vector<8x32xf32>
    %133 = math.tanh %132 : vector<8x32xf32>
    %134 = arith.mulf %129, %133 : vector<8x32xf32>
    %135 = vector.extract_strided_slice %5 {offsets = [56, 0], sizes = [8, 128], strides = [1, 1]} : vector<64x128xf32> to vector<8x128xf32>
    %cst_23 = arith.constant dense<0.000000e+00> : vector<8x128xf32>
    %136 = tpu.matmul %134, %6, %cst_23 {dimension_numbers = #tpu.dot_dimension_numbers<[1], [0], [0], [1], [0, 0, 1, 1], [], []>} : vector<8x32xf32>, vector<32x128xf32>, vector<8x128xf32> -> vector<8x128xf32>
    %137 = arith.addf %135, %136 : vector<8x128xf32>
    %138 = arith.negf %137 : vector<8x128xf32>
    %139 = math.exp %138 : vector<8x128xf32>
    %cst_24 = arith.constant 1.000000e+00 : f32
    %140 = vector.broadcast %cst_24 : f32 to vector<8x128xf32>
    %141 = arith.addf %140, %139 : vector<8x128xf32>
    %142 = arith.divf %140, %141 : vector<8x128xf32>
    %143 = math.tanh %137 : vector<8x128xf32>
    %144 = vector.extract_strided_slice %142 {offsets = [0, 0], sizes = [8, 32], strides = [1, 1]} : vector<8x128xf32> to vector<8x32xf32>
    %145 = vector.extract_strided_slice %142 {offsets = [0, 32], sizes = [8, 32], strides = [1, 1]} : vector<8x128xf32> to vector<8x32xf32>
    %146 = vector.extract_strided_slice %143 {offsets = [0, 64], sizes = [8, 32], strides = [1, 1]} : vector<8x128xf32> to vector<8x32xf32>
    %147 = vector.extract_strided_slice %142 {offsets = [0, 96], sizes = [8, 32], strides = [1, 1]} : vector<8x128xf32> to vector<8x32xf32>
    %148 = arith.mulf %145, %132 : vector<8x32xf32>
    %149 = arith.mulf %144, %146 : vector<8x32xf32>
    %150 = arith.addf %148, %149 : vector<8x32xf32>
    %151 = math.tanh %150 : vector<8x32xf32>
    %152 = arith.mulf %147, %151 : vector<8x32xf32>
    %153 = tpu.concatenate %26, %44, %62, %80, %98, %116, %134, %152 in 0 : vector<8x32xf32>, vector<8x32xf32>, vector<8x32xf32>, vector<8x32xf32>, vector<8x32xf32>, vector<8x32xf32>, vector<8x32xf32>, vector<8x32xf32> -> vector<64x32xf32>
    %c0_25 = arith.constant 0 : index
    %c0_26 = arith.constant 0 : index
    %154 = vector.load %arg4[%c0_25, %c0_26] : memref<32x128xf32, #tpu.memory_space<vmem>>, vector<32x128xf32>
    %cst_27 = arith.constant dense<0.000000e+00> : vector<64x128xf32>
    %155 = tpu.matmul %153, %154, %cst_27 {dimension_numbers = #tpu.dot_dimension_numbers<[1], [0], [0], [1], [0, 0, 1, 1], [], []>} : vector<64x32xf32>, vector<32x128xf32>, vector<64x128xf32> -> vector<64x128xf32>
    %c0_28 = arith.constant 0 : index
    %c0_29 = arith.constant 0 : index
    %156 = vector.load %arg6[%c0_28, %c0_29] : memref<1x128xf32, #tpu.memory_space<vmem>>, vector<1x128xf32>
    %157 = vector.broadcast %156 : vector<1x128xf32> to vector<64x128xf32>
    %158 = arith.addf %155, %157 : vector<64x128xf32>
    %c0_30 = arith.constant 0 : index
    %c0_31 = arith.constant 0 : index
    %159 = vector.load %arg5[%c0_30, %c0_31] : memref<32x128xf32, #tpu.memory_space<vmem>>, vector<32x128xf32>
    %cst_32 = arith.constant 0.000000e+00 : f32
    %160 = vector.broadcast %cst_32 : f32 to vector<8x32xf32>
    %cst_33 = arith.constant 0.000000e+00 : f32
    %161 = vector.broadcast %cst_33 : f32 to vector<8x32xf32>
    %162 = vector.extract_strided_slice %158 {offsets = [0, 0], sizes = [8, 128], strides = [1, 1]} : vector<64x128xf32> to vector<8x128xf32>
    %cst_34 = arith.constant dense<0.000000e+00> : vector<8x128xf32>
    %163 = tpu.matmul %160, %159, %cst_34 {dimension_numbers = #tpu.dot_dimension_numbers<[1], [0], [0], [1], [0, 0, 1, 1], [], []>} : vector<8x32xf32>, vector<32x128xf32>, vector<8x128xf32> -> vector<8x128xf32>
    %164 = arith.addf %162, %163 : vector<8x128xf32>
    %165 = arith.negf %164 : vector<8x128xf32>
    %166 = math.exp %165 : vector<8x128xf32>
    %cst_35 = arith.constant 1.000000e+00 : f32
    %167 = vector.broadcast %cst_35 : f32 to vector<8x128xf32>
    %168 = arith.addf %167, %166 : vector<8x128xf32>
    %169 = arith.divf %167, %168 : vector<8x128xf32>
    %170 = math.tanh %164 : vector<8x128xf32>
    %171 = vector.extract_strided_slice %169 {offsets = [0, 0], sizes = [8, 32], strides = [1, 1]} : vector<8x128xf32> to vector<8x32xf32>
    %172 = vector.extract_strided_slice %169 {offsets = [0, 32], sizes = [8, 32], strides = [1, 1]} : vector<8x128xf32> to vector<8x32xf32>
    %173 = vector.extract_strided_slice %170 {offsets = [0, 64], sizes = [8, 32], strides = [1, 1]} : vector<8x128xf32> to vector<8x32xf32>
    %174 = vector.extract_strided_slice %169 {offsets = [0, 96], sizes = [8, 32], strides = [1, 1]} : vector<8x128xf32> to vector<8x32xf32>
    %175 = arith.mulf %172, %161 : vector<8x32xf32>
    %176 = arith.mulf %171, %173 : vector<8x32xf32>
    %177 = arith.addf %175, %176 : vector<8x32xf32>
    %178 = math.tanh %177 : vector<8x32xf32>
    %179 = arith.mulf %174, %178 : vector<8x32xf32>
    %180 = vector.extract_strided_slice %158 {offsets = [8, 0], sizes = [8, 128], strides = [1, 1]} : vector<64x128xf32> to vector<8x128xf32>
    %cst_36 = arith.constant dense<0.000000e+00> : vector<8x128xf32>
    %181 = tpu.matmul %179, %159, %cst_36 {dimension_numbers = #tpu.dot_dimension_numbers<[1], [0], [0], [1], [0, 0, 1, 1], [], []>} : vector<8x32xf32>, vector<32x128xf32>, vector<8x128xf32> -> vector<8x128xf32>
    %182 = arith.addf %180, %181 : vector<8x128xf32>
    %183 = arith.negf %182 : vector<8x128xf32>
    %184 = math.exp %183 : vector<8x128xf32>
    %cst_37 = arith.constant 1.000000e+00 : f32
    %185 = vector.broadcast %cst_37 : f32 to vector<8x128xf32>
    %186 = arith.addf %185, %184 : vector<8x128xf32>
    %187 = arith.divf %185, %186 : vector<8x128xf32>
    %188 = math.tanh %182 : vector<8x128xf32>
    %189 = vector.extract_strided_slice %187 {offsets = [0, 0], sizes = [8, 32], strides = [1, 1]} : vector<8x128xf32> to vector<8x32xf32>
    %190 = vector.extract_strided_slice %187 {offsets = [0, 32], sizes = [8, 32], strides = [1, 1]} : vector<8x128xf32> to vector<8x32xf32>
    %191 = vector.extract_strided_slice %188 {offsets = [0, 64], sizes = [8, 32], strides = [1, 1]} : vector<8x128xf32> to vector<8x32xf32>
    %192 = vector.extract_strided_slice %187 {offsets = [0, 96], sizes = [8, 32], strides = [1, 1]} : vector<8x128xf32> to vector<8x32xf32>
    %193 = arith.mulf %190, %177 : vector<8x32xf32>
    %194 = arith.mulf %189, %191 : vector<8x32xf32>
    %195 = arith.addf %193, %194 : vector<8x32xf32>
    %196 = math.tanh %195 : vector<8x32xf32>
    %197 = arith.mulf %192, %196 : vector<8x32xf32>
    %198 = vector.extract_strided_slice %158 {offsets = [16, 0], sizes = [8, 128], strides = [1, 1]} : vector<64x128xf32> to vector<8x128xf32>
    %cst_38 = arith.constant dense<0.000000e+00> : vector<8x128xf32>
    %199 = tpu.matmul %197, %159, %cst_38 {dimension_numbers = #tpu.dot_dimension_numbers<[1], [0], [0], [1], [0, 0, 1, 1], [], []>} : vector<8x32xf32>, vector<32x128xf32>, vector<8x128xf32> -> vector<8x128xf32>
    %200 = arith.addf %198, %199 : vector<8x128xf32>
    %201 = arith.negf %200 : vector<8x128xf32>
    %202 = math.exp %201 : vector<8x128xf32>
    %cst_39 = arith.constant 1.000000e+00 : f32
    %203 = vector.broadcast %cst_39 : f32 to vector<8x128xf32>
    %204 = arith.addf %203, %202 : vector<8x128xf32>
    %205 = arith.divf %203, %204 : vector<8x128xf32>
    %206 = math.tanh %200 : vector<8x128xf32>
    %207 = vector.extract_strided_slice %205 {offsets = [0, 0], sizes = [8, 32], strides = [1, 1]} : vector<8x128xf32> to vector<8x32xf32>
    %208 = vector.extract_strided_slice %205 {offsets = [0, 32], sizes = [8, 32], strides = [1, 1]} : vector<8x128xf32> to vector<8x32xf32>
    %209 = vector.extract_strided_slice %206 {offsets = [0, 64], sizes = [8, 32], strides = [1, 1]} : vector<8x128xf32> to vector<8x32xf32>
    %210 = vector.extract_strided_slice %205 {offsets = [0, 96], sizes = [8, 32], strides = [1, 1]} : vector<8x128xf32> to vector<8x32xf32>
    %211 = arith.mulf %208, %195 : vector<8x32xf32>
    %212 = arith.mulf %207, %209 : vector<8x32xf32>
    %213 = arith.addf %211, %212 : vector<8x32xf32>
    %214 = math.tanh %213 : vector<8x32xf32>
    %215 = arith.mulf %210, %214 : vector<8x32xf32>
    %216 = vector.extract_strided_slice %158 {offsets = [24, 0], sizes = [8, 128], strides = [1, 1]} : vector<64x128xf32> to vector<8x128xf32>
    %cst_40 = arith.constant dense<0.000000e+00> : vector<8x128xf32>
    %217 = tpu.matmul %215, %159, %cst_40 {dimension_numbers = #tpu.dot_dimension_numbers<[1], [0], [0], [1], [0, 0, 1, 1], [], []>} : vector<8x32xf32>, vector<32x128xf32>, vector<8x128xf32> -> vector<8x128xf32>
    %218 = arith.addf %216, %217 : vector<8x128xf32>
    %219 = arith.negf %218 : vector<8x128xf32>
    %220 = math.exp %219 : vector<8x128xf32>
    %cst_41 = arith.constant 1.000000e+00 : f32
    %221 = vector.broadcast %cst_41 : f32 to vector<8x128xf32>
    %222 = arith.addf %221, %220 : vector<8x128xf32>
    %223 = arith.divf %221, %222 : vector<8x128xf32>
    %224 = math.tanh %218 : vector<8x128xf32>
    %225 = vector.extract_strided_slice %223 {offsets = [0, 0], sizes = [8, 32], strides = [1, 1]} : vector<8x128xf32> to vector<8x32xf32>
    %226 = vector.extract_strided_slice %223 {offsets = [0, 32], sizes = [8, 32], strides = [1, 1]} : vector<8x128xf32> to vector<8x32xf32>
    %227 = vector.extract_strided_slice %224 {offsets = [0, 64], sizes = [8, 32], strides = [1, 1]} : vector<8x128xf32> to vector<8x32xf32>
    %228 = vector.extract_strided_slice %223 {offsets = [0, 96], sizes = [8, 32], strides = [1, 1]} : vector<8x128xf32> to vector<8x32xf32>
    %229 = arith.mulf %226, %213 : vector<8x32xf32>
    %230 = arith.mulf %225, %227 : vector<8x32xf32>
    %231 = arith.addf %229, %230 : vector<8x32xf32>
    %232 = math.tanh %231 : vector<8x32xf32>
    %233 = arith.mulf %228, %232 : vector<8x32xf32>
    %234 = vector.extract_strided_slice %158 {offsets = [32, 0], sizes = [8, 128], strides = [1, 1]} : vector<64x128xf32> to vector<8x128xf32>
    %cst_42 = arith.constant dense<0.000000e+00> : vector<8x128xf32>
    %235 = tpu.matmul %233, %159, %cst_42 {dimension_numbers = #tpu.dot_dimension_numbers<[1], [0], [0], [1], [0, 0, 1, 1], [], []>} : vector<8x32xf32>, vector<32x128xf32>, vector<8x128xf32> -> vector<8x128xf32>
    %236 = arith.addf %234, %235 : vector<8x128xf32>
    %237 = arith.negf %236 : vector<8x128xf32>
    %238 = math.exp %237 : vector<8x128xf32>
    %cst_43 = arith.constant 1.000000e+00 : f32
    %239 = vector.broadcast %cst_43 : f32 to vector<8x128xf32>
    %240 = arith.addf %239, %238 : vector<8x128xf32>
    %241 = arith.divf %239, %240 : vector<8x128xf32>
    %242 = math.tanh %236 : vector<8x128xf32>
    %243 = vector.extract_strided_slice %241 {offsets = [0, 0], sizes = [8, 32], strides = [1, 1]} : vector<8x128xf32> to vector<8x32xf32>
    %244 = vector.extract_strided_slice %241 {offsets = [0, 32], sizes = [8, 32], strides = [1, 1]} : vector<8x128xf32> to vector<8x32xf32>
    %245 = vector.extract_strided_slice %242 {offsets = [0, 64], sizes = [8, 32], strides = [1, 1]} : vector<8x128xf32> to vector<8x32xf32>
    %246 = vector.extract_strided_slice %241 {offsets = [0, 96], sizes = [8, 32], strides = [1, 1]} : vector<8x128xf32> to vector<8x32xf32>
    %247 = arith.mulf %244, %231 : vector<8x32xf32>
    %248 = arith.mulf %243, %245 : vector<8x32xf32>
    %249 = arith.addf %247, %248 : vector<8x32xf32>
    %250 = math.tanh %249 : vector<8x32xf32>
    %251 = arith.mulf %246, %250 : vector<8x32xf32>
    %252 = vector.extract_strided_slice %158 {offsets = [40, 0], sizes = [8, 128], strides = [1, 1]} : vector<64x128xf32> to vector<8x128xf32>
    %cst_44 = arith.constant dense<0.000000e+00> : vector<8x128xf32>
    %253 = tpu.matmul %251, %159, %cst_44 {dimension_numbers = #tpu.dot_dimension_numbers<[1], [0], [0], [1], [0, 0, 1, 1], [], []>} : vector<8x32xf32>, vector<32x128xf32>, vector<8x128xf32> -> vector<8x128xf32>
    %254 = arith.addf %252, %253 : vector<8x128xf32>
    %255 = arith.negf %254 : vector<8x128xf32>
    %256 = math.exp %255 : vector<8x128xf32>
    %cst_45 = arith.constant 1.000000e+00 : f32
    %257 = vector.broadcast %cst_45 : f32 to vector<8x128xf32>
    %258 = arith.addf %257, %256 : vector<8x128xf32>
    %259 = arith.divf %257, %258 : vector<8x128xf32>
    %260 = math.tanh %254 : vector<8x128xf32>
    %261 = vector.extract_strided_slice %259 {offsets = [0, 0], sizes = [8, 32], strides = [1, 1]} : vector<8x128xf32> to vector<8x32xf32>
    %262 = vector.extract_strided_slice %259 {offsets = [0, 32], sizes = [8, 32], strides = [1, 1]} : vector<8x128xf32> to vector<8x32xf32>
    %263 = vector.extract_strided_slice %260 {offsets = [0, 64], sizes = [8, 32], strides = [1, 1]} : vector<8x128xf32> to vector<8x32xf32>
    %264 = vector.extract_strided_slice %259 {offsets = [0, 96], sizes = [8, 32], strides = [1, 1]} : vector<8x128xf32> to vector<8x32xf32>
    %265 = arith.mulf %262, %249 : vector<8x32xf32>
    %266 = arith.mulf %261, %263 : vector<8x32xf32>
    %267 = arith.addf %265, %266 : vector<8x32xf32>
    %268 = math.tanh %267 : vector<8x32xf32>
    %269 = arith.mulf %264, %268 : vector<8x32xf32>
    %270 = vector.extract_strided_slice %158 {offsets = [48, 0], sizes = [8, 128], strides = [1, 1]} : vector<64x128xf32> to vector<8x128xf32>
    %cst_46 = arith.constant dense<0.000000e+00> : vector<8x128xf32>
    %271 = tpu.matmul %269, %159, %cst_46 {dimension_numbers = #tpu.dot_dimension_numbers<[1], [0], [0], [1], [0, 0, 1, 1], [], []>} : vector<8x32xf32>, vector<32x128xf32>, vector<8x128xf32> -> vector<8x128xf32>
    %272 = arith.addf %270, %271 : vector<8x128xf32>
    %273 = arith.negf %272 : vector<8x128xf32>
    %274 = math.exp %273 : vector<8x128xf32>
    %cst_47 = arith.constant 1.000000e+00 : f32
    %275 = vector.broadcast %cst_47 : f32 to vector<8x128xf32>
    %276 = arith.addf %275, %274 : vector<8x128xf32>
    %277 = arith.divf %275, %276 : vector<8x128xf32>
    %278 = math.tanh %272 : vector<8x128xf32>
    %279 = vector.extract_strided_slice %277 {offsets = [0, 0], sizes = [8, 32], strides = [1, 1]} : vector<8x128xf32> to vector<8x32xf32>
    %280 = vector.extract_strided_slice %277 {offsets = [0, 32], sizes = [8, 32], strides = [1, 1]} : vector<8x128xf32> to vector<8x32xf32>
    %281 = vector.extract_strided_slice %278 {offsets = [0, 64], sizes = [8, 32], strides = [1, 1]} : vector<8x128xf32> to vector<8x32xf32>
    %282 = vector.extract_strided_slice %277 {offsets = [0, 96], sizes = [8, 32], strides = [1, 1]} : vector<8x128xf32> to vector<8x32xf32>
    %283 = arith.mulf %280, %267 : vector<8x32xf32>
    %284 = arith.mulf %279, %281 : vector<8x32xf32>
    %285 = arith.addf %283, %284 : vector<8x32xf32>
    %286 = math.tanh %285 : vector<8x32xf32>
    %287 = arith.mulf %282, %286 : vector<8x32xf32>
    %288 = vector.extract_strided_slice %158 {offsets = [56, 0], sizes = [8, 128], strides = [1, 1]} : vector<64x128xf32> to vector<8x128xf32>
    %cst_48 = arith.constant dense<0.000000e+00> : vector<8x128xf32>
    %289 = tpu.matmul %287, %159, %cst_48 {dimension_numbers = #tpu.dot_dimension_numbers<[1], [0], [0], [1], [0, 0, 1, 1], [], []>} : vector<8x32xf32>, vector<32x128xf32>, vector<8x128xf32> -> vector<8x128xf32>
    %290 = arith.addf %288, %289 : vector<8x128xf32>
    %291 = arith.negf %290 : vector<8x128xf32>
    %292 = math.exp %291 : vector<8x128xf32>
    %cst_49 = arith.constant 1.000000e+00 : f32
    %293 = vector.broadcast %cst_49 : f32 to vector<8x128xf32>
    %294 = arith.addf %293, %292 : vector<8x128xf32>
    %295 = arith.divf %293, %294 : vector<8x128xf32>
    %296 = math.tanh %290 : vector<8x128xf32>
    %297 = vector.extract_strided_slice %295 {offsets = [0, 0], sizes = [8, 32], strides = [1, 1]} : vector<8x128xf32> to vector<8x32xf32>
    %298 = vector.extract_strided_slice %295 {offsets = [0, 32], sizes = [8, 32], strides = [1, 1]} : vector<8x128xf32> to vector<8x32xf32>
    %299 = vector.extract_strided_slice %296 {offsets = [0, 64], sizes = [8, 32], strides = [1, 1]} : vector<8x128xf32> to vector<8x32xf32>
    %300 = vector.extract_strided_slice %295 {offsets = [0, 96], sizes = [8, 32], strides = [1, 1]} : vector<8x128xf32> to vector<8x32xf32>
    %301 = arith.mulf %298, %285 : vector<8x32xf32>
    %302 = arith.mulf %297, %299 : vector<8x32xf32>
    %303 = arith.addf %301, %302 : vector<8x32xf32>
    %304 = math.tanh %303 : vector<8x32xf32>
    %305 = arith.mulf %300, %304 : vector<8x32xf32>
    %306 = tpu.concatenate %179, %197, %215, %233, %251, %269, %287, %305 in 0 : vector<8x32xf32>, vector<8x32xf32>, vector<8x32xf32>, vector<8x32xf32>, vector<8x32xf32>, vector<8x32xf32>, vector<8x32xf32>, vector<8x32xf32> -> vector<64x32xf32>
    %c0_50 = arith.constant 0 : index
    %c0_51 = arith.constant 0 : index
    %307 = vector.load %arg7[%c0_50, %c0_51] : memref<32x128xf32, #tpu.memory_space<vmem>>, vector<32x128xf32>
    %cst_52 = arith.constant dense<0.000000e+00> : vector<64x128xf32>
    %308 = tpu.matmul %306, %307, %cst_52 {dimension_numbers = #tpu.dot_dimension_numbers<[1], [0], [0], [1], [0, 0, 1, 1], [], []>} : vector<64x32xf32>, vector<32x128xf32>, vector<64x128xf32> -> vector<64x128xf32>
    %c0_53 = arith.constant 0 : index
    %c0_54 = arith.constant 0 : index
    %309 = vector.load %arg9[%c0_53, %c0_54] : memref<1x128xf32, #tpu.memory_space<vmem>>, vector<1x128xf32>
    %310 = vector.broadcast %309 : vector<1x128xf32> to vector<64x128xf32>
    %311 = arith.addf %308, %310 : vector<64x128xf32>
    %c0_55 = arith.constant 0 : index
    %c0_56 = arith.constant 0 : index
    %312 = vector.load %arg8[%c0_55, %c0_56] : memref<32x128xf32, #tpu.memory_space<vmem>>, vector<32x128xf32>
    %cst_57 = arith.constant 0.000000e+00 : f32
    %313 = vector.broadcast %cst_57 : f32 to vector<8x32xf32>
    %cst_58 = arith.constant 0.000000e+00 : f32
    %314 = vector.broadcast %cst_58 : f32 to vector<8x32xf32>
    %315 = vector.extract_strided_slice %311 {offsets = [0, 0], sizes = [8, 128], strides = [1, 1]} : vector<64x128xf32> to vector<8x128xf32>
    %cst_59 = arith.constant dense<0.000000e+00> : vector<8x128xf32>
    %316 = tpu.matmul %313, %312, %cst_59 {dimension_numbers = #tpu.dot_dimension_numbers<[1], [0], [0], [1], [0, 0, 1, 1], [], []>} : vector<8x32xf32>, vector<32x128xf32>, vector<8x128xf32> -> vector<8x128xf32>
    %317 = arith.addf %315, %316 : vector<8x128xf32>
    %318 = arith.negf %317 : vector<8x128xf32>
    %319 = math.exp %318 : vector<8x128xf32>
    %cst_60 = arith.constant 1.000000e+00 : f32
    %320 = vector.broadcast %cst_60 : f32 to vector<8x128xf32>
    %321 = arith.addf %320, %319 : vector<8x128xf32>
    %322 = arith.divf %320, %321 : vector<8x128xf32>
    %323 = math.tanh %317 : vector<8x128xf32>
    %324 = vector.extract_strided_slice %322 {offsets = [0, 0], sizes = [8, 32], strides = [1, 1]} : vector<8x128xf32> to vector<8x32xf32>
    %325 = vector.extract_strided_slice %322 {offsets = [0, 32], sizes = [8, 32], strides = [1, 1]} : vector<8x128xf32> to vector<8x32xf32>
    %326 = vector.extract_strided_slice %323 {offsets = [0, 64], sizes = [8, 32], strides = [1, 1]} : vector<8x128xf32> to vector<8x32xf32>
    %327 = vector.extract_strided_slice %322 {offsets = [0, 96], sizes = [8, 32], strides = [1, 1]} : vector<8x128xf32> to vector<8x32xf32>
    %328 = arith.mulf %325, %314 : vector<8x32xf32>
    %329 = arith.mulf %324, %326 : vector<8x32xf32>
    %330 = arith.addf %328, %329 : vector<8x32xf32>
    %331 = math.tanh %330 : vector<8x32xf32>
    %332 = arith.mulf %327, %331 : vector<8x32xf32>
    %333 = vector.extract_strided_slice %311 {offsets = [8, 0], sizes = [8, 128], strides = [1, 1]} : vector<64x128xf32> to vector<8x128xf32>
    %cst_61 = arith.constant dense<0.000000e+00> : vector<8x128xf32>
    %334 = tpu.matmul %332, %312, %cst_61 {dimension_numbers = #tpu.dot_dimension_numbers<[1], [0], [0], [1], [0, 0, 1, 1], [], []>} : vector<8x32xf32>, vector<32x128xf32>, vector<8x128xf32> -> vector<8x128xf32>
    %335 = arith.addf %333, %334 : vector<8x128xf32>
    %336 = arith.negf %335 : vector<8x128xf32>
    %337 = math.exp %336 : vector<8x128xf32>
    %cst_62 = arith.constant 1.000000e+00 : f32
    %338 = vector.broadcast %cst_62 : f32 to vector<8x128xf32>
    %339 = arith.addf %338, %337 : vector<8x128xf32>
    %340 = arith.divf %338, %339 : vector<8x128xf32>
    %341 = math.tanh %335 : vector<8x128xf32>
    %342 = vector.extract_strided_slice %340 {offsets = [0, 0], sizes = [8, 32], strides = [1, 1]} : vector<8x128xf32> to vector<8x32xf32>
    %343 = vector.extract_strided_slice %340 {offsets = [0, 32], sizes = [8, 32], strides = [1, 1]} : vector<8x128xf32> to vector<8x32xf32>
    %344 = vector.extract_strided_slice %341 {offsets = [0, 64], sizes = [8, 32], strides = [1, 1]} : vector<8x128xf32> to vector<8x32xf32>
    %345 = vector.extract_strided_slice %340 {offsets = [0, 96], sizes = [8, 32], strides = [1, 1]} : vector<8x128xf32> to vector<8x32xf32>
    %346 = arith.mulf %343, %330 : vector<8x32xf32>
    %347 = arith.mulf %342, %344 : vector<8x32xf32>
    %348 = arith.addf %346, %347 : vector<8x32xf32>
    %349 = math.tanh %348 : vector<8x32xf32>
    %350 = arith.mulf %345, %349 : vector<8x32xf32>
    %351 = vector.extract_strided_slice %311 {offsets = [16, 0], sizes = [8, 128], strides = [1, 1]} : vector<64x128xf32> to vector<8x128xf32>
    %cst_63 = arith.constant dense<0.000000e+00> : vector<8x128xf32>
    %352 = tpu.matmul %350, %312, %cst_63 {dimension_numbers = #tpu.dot_dimension_numbers<[1], [0], [0], [1], [0, 0, 1, 1], [], []>} : vector<8x32xf32>, vector<32x128xf32>, vector<8x128xf32> -> vector<8x128xf32>
    %353 = arith.addf %351, %352 : vector<8x128xf32>
    %354 = arith.negf %353 : vector<8x128xf32>
    %355 = math.exp %354 : vector<8x128xf32>
    %cst_64 = arith.constant 1.000000e+00 : f32
    %356 = vector.broadcast %cst_64 : f32 to vector<8x128xf32>
    %357 = arith.addf %356, %355 : vector<8x128xf32>
    %358 = arith.divf %356, %357 : vector<8x128xf32>
    %359 = math.tanh %353 : vector<8x128xf32>
    %360 = vector.extract_strided_slice %358 {offsets = [0, 0], sizes = [8, 32], strides = [1, 1]} : vector<8x128xf32> to vector<8x32xf32>
    %361 = vector.extract_strided_slice %358 {offsets = [0, 32], sizes = [8, 32], strides = [1, 1]} : vector<8x128xf32> to vector<8x32xf32>
    %362 = vector.extract_strided_slice %359 {offsets = [0, 64], sizes = [8, 32], strides = [1, 1]} : vector<8x128xf32> to vector<8x32xf32>
    %363 = vector.extract_strided_slice %358 {offsets = [0, 96], sizes = [8, 32], strides = [1, 1]} : vector<8x128xf32> to vector<8x32xf32>
    %364 = arith.mulf %361, %348 : vector<8x32xf32>
    %365 = arith.mulf %360, %362 : vector<8x32xf32>
    %366 = arith.addf %364, %365 : vector<8x32xf32>
    %367 = math.tanh %366 : vector<8x32xf32>
    %368 = arith.mulf %363, %367 : vector<8x32xf32>
    %369 = vector.extract_strided_slice %311 {offsets = [24, 0], sizes = [8, 128], strides = [1, 1]} : vector<64x128xf32> to vector<8x128xf32>
    %cst_65 = arith.constant dense<0.000000e+00> : vector<8x128xf32>
    %370 = tpu.matmul %368, %312, %cst_65 {dimension_numbers = #tpu.dot_dimension_numbers<[1], [0], [0], [1], [0, 0, 1, 1], [], []>} : vector<8x32xf32>, vector<32x128xf32>, vector<8x128xf32> -> vector<8x128xf32>
    %371 = arith.addf %369, %370 : vector<8x128xf32>
    %372 = arith.negf %371 : vector<8x128xf32>
    %373 = math.exp %372 : vector<8x128xf32>
    %cst_66 = arith.constant 1.000000e+00 : f32
    %374 = vector.broadcast %cst_66 : f32 to vector<8x128xf32>
    %375 = arith.addf %374, %373 : vector<8x128xf32>
    %376 = arith.divf %374, %375 : vector<8x128xf32>
    %377 = math.tanh %371 : vector<8x128xf32>
    %378 = vector.extract_strided_slice %376 {offsets = [0, 0], sizes = [8, 32], strides = [1, 1]} : vector<8x128xf32> to vector<8x32xf32>
    %379 = vector.extract_strided_slice %376 {offsets = [0, 32], sizes = [8, 32], strides = [1, 1]} : vector<8x128xf32> to vector<8x32xf32>
    %380 = vector.extract_strided_slice %377 {offsets = [0, 64], sizes = [8, 32], strides = [1, 1]} : vector<8x128xf32> to vector<8x32xf32>
    %381 = vector.extract_strided_slice %376 {offsets = [0, 96], sizes = [8, 32], strides = [1, 1]} : vector<8x128xf32> to vector<8x32xf32>
    %382 = arith.mulf %379, %366 : vector<8x32xf32>
    %383 = arith.mulf %378, %380 : vector<8x32xf32>
    %384 = arith.addf %382, %383 : vector<8x32xf32>
    %385 = math.tanh %384 : vector<8x32xf32>
    %386 = arith.mulf %381, %385 : vector<8x32xf32>
    %387 = vector.extract_strided_slice %311 {offsets = [32, 0], sizes = [8, 128], strides = [1, 1]} : vector<64x128xf32> to vector<8x128xf32>
    %cst_67 = arith.constant dense<0.000000e+00> : vector<8x128xf32>
    %388 = tpu.matmul %386, %312, %cst_67 {dimension_numbers = #tpu.dot_dimension_numbers<[1], [0], [0], [1], [0, 0, 1, 1], [], []>} : vector<8x32xf32>, vector<32x128xf32>, vector<8x128xf32> -> vector<8x128xf32>
    %389 = arith.addf %387, %388 : vector<8x128xf32>
    %390 = arith.negf %389 : vector<8x128xf32>
    %391 = math.exp %390 : vector<8x128xf32>
    %cst_68 = arith.constant 1.000000e+00 : f32
    %392 = vector.broadcast %cst_68 : f32 to vector<8x128xf32>
    %393 = arith.addf %392, %391 : vector<8x128xf32>
    %394 = arith.divf %392, %393 : vector<8x128xf32>
    %395 = math.tanh %389 : vector<8x128xf32>
    %396 = vector.extract_strided_slice %394 {offsets = [0, 0], sizes = [8, 32], strides = [1, 1]} : vector<8x128xf32> to vector<8x32xf32>
    %397 = vector.extract_strided_slice %394 {offsets = [0, 32], sizes = [8, 32], strides = [1, 1]} : vector<8x128xf32> to vector<8x32xf32>
    %398 = vector.extract_strided_slice %395 {offsets = [0, 64], sizes = [8, 32], strides = [1, 1]} : vector<8x128xf32> to vector<8x32xf32>
    %399 = vector.extract_strided_slice %394 {offsets = [0, 96], sizes = [8, 32], strides = [1, 1]} : vector<8x128xf32> to vector<8x32xf32>
    %400 = arith.mulf %397, %384 : vector<8x32xf32>
    %401 = arith.mulf %396, %398 : vector<8x32xf32>
    %402 = arith.addf %400, %401 : vector<8x32xf32>
    %403 = math.tanh %402 : vector<8x32xf32>
    %404 = arith.mulf %399, %403 : vector<8x32xf32>
    %405 = vector.extract_strided_slice %311 {offsets = [40, 0], sizes = [8, 128], strides = [1, 1]} : vector<64x128xf32> to vector<8x128xf32>
    %cst_69 = arith.constant dense<0.000000e+00> : vector<8x128xf32>
    %406 = tpu.matmul %404, %312, %cst_69 {dimension_numbers = #tpu.dot_dimension_numbers<[1], [0], [0], [1], [0, 0, 1, 1], [], []>} : vector<8x32xf32>, vector<32x128xf32>, vector<8x128xf32> -> vector<8x128xf32>
    %407 = arith.addf %405, %406 : vector<8x128xf32>
    %408 = arith.negf %407 : vector<8x128xf32>
    %409 = math.exp %408 : vector<8x128xf32>
    %cst_70 = arith.constant 1.000000e+00 : f32
    %410 = vector.broadcast %cst_70 : f32 to vector<8x128xf32>
    %411 = arith.addf %410, %409 : vector<8x128xf32>
    %412 = arith.divf %410, %411 : vector<8x128xf32>
    %413 = math.tanh %407 : vector<8x128xf32>
    %414 = vector.extract_strided_slice %412 {offsets = [0, 0], sizes = [8, 32], strides = [1, 1]} : vector<8x128xf32> to vector<8x32xf32>
    %415 = vector.extract_strided_slice %412 {offsets = [0, 32], sizes = [8, 32], strides = [1, 1]} : vector<8x128xf32> to vector<8x32xf32>
    %416 = vector.extract_strided_slice %413 {offsets = [0, 64], sizes = [8, 32], strides = [1, 1]} : vector<8x128xf32> to vector<8x32xf32>
    %417 = vector.extract_strided_slice %412 {offsets = [0, 96], sizes = [8, 32], strides = [1, 1]} : vector<8x128xf32> to vector<8x32xf32>
    %418 = arith.mulf %415, %402 : vector<8x32xf32>
    %419 = arith.mulf %414, %416 : vector<8x32xf32>
    %420 = arith.addf %418, %419 : vector<8x32xf32>
    %421 = math.tanh %420 : vector<8x32xf32>
    %422 = arith.mulf %417, %421 : vector<8x32xf32>
    %423 = vector.extract_strided_slice %311 {offsets = [48, 0], sizes = [8, 128], strides = [1, 1]} : vector<64x128xf32> to vector<8x128xf32>
    %cst_71 = arith.constant dense<0.000000e+00> : vector<8x128xf32>
    %424 = tpu.matmul %422, %312, %cst_71 {dimension_numbers = #tpu.dot_dimension_numbers<[1], [0], [0], [1], [0, 0, 1, 1], [], []>} : vector<8x32xf32>, vector<32x128xf32>, vector<8x128xf32> -> vector<8x128xf32>
    %425 = arith.addf %423, %424 : vector<8x128xf32>
    %426 = arith.negf %425 : vector<8x128xf32>
    %427 = math.exp %426 : vector<8x128xf32>
    %cst_72 = arith.constant 1.000000e+00 : f32
    %428 = vector.broadcast %cst_72 : f32 to vector<8x128xf32>
    %429 = arith.addf %428, %427 : vector<8x128xf32>
    %430 = arith.divf %428, %429 : vector<8x128xf32>
    %431 = math.tanh %425 : vector<8x128xf32>
    %432 = vector.extract_strided_slice %430 {offsets = [0, 0], sizes = [8, 32], strides = [1, 1]} : vector<8x128xf32> to vector<8x32xf32>
    %433 = vector.extract_strided_slice %430 {offsets = [0, 32], sizes = [8, 32], strides = [1, 1]} : vector<8x128xf32> to vector<8x32xf32>
    %434 = vector.extract_strided_slice %431 {offsets = [0, 64], sizes = [8, 32], strides = [1, 1]} : vector<8x128xf32> to vector<8x32xf32>
    %435 = vector.extract_strided_slice %430 {offsets = [0, 96], sizes = [8, 32], strides = [1, 1]} : vector<8x128xf32> to vector<8x32xf32>
    %436 = arith.mulf %433, %420 : vector<8x32xf32>
    %437 = arith.mulf %432, %434 : vector<8x32xf32>
    %438 = arith.addf %436, %437 : vector<8x32xf32>
    %439 = math.tanh %438 : vector<8x32xf32>
    %440 = arith.mulf %435, %439 : vector<8x32xf32>
    %441 = vector.extract_strided_slice %311 {offsets = [56, 0], sizes = [8, 128], strides = [1, 1]} : vector<64x128xf32> to vector<8x128xf32>
    %cst_73 = arith.constant dense<0.000000e+00> : vector<8x128xf32>
    %442 = tpu.matmul %440, %312, %cst_73 {dimension_numbers = #tpu.dot_dimension_numbers<[1], [0], [0], [1], [0, 0, 1, 1], [], []>} : vector<8x32xf32>, vector<32x128xf32>, vector<8x128xf32> -> vector<8x128xf32>
    %443 = arith.addf %441, %442 : vector<8x128xf32>
    %444 = arith.negf %443 : vector<8x128xf32>
    %445 = math.exp %444 : vector<8x128xf32>
    %cst_74 = arith.constant 1.000000e+00 : f32
    %446 = vector.broadcast %cst_74 : f32 to vector<8x128xf32>
    %447 = arith.addf %446, %445 : vector<8x128xf32>
    %448 = arith.divf %446, %447 : vector<8x128xf32>
    %449 = math.tanh %443 : vector<8x128xf32>
    %450 = vector.extract_strided_slice %448 {offsets = [0, 0], sizes = [8, 32], strides = [1, 1]} : vector<8x128xf32> to vector<8x32xf32>
    %451 = vector.extract_strided_slice %448 {offsets = [0, 32], sizes = [8, 32], strides = [1, 1]} : vector<8x128xf32> to vector<8x32xf32>
    %452 = vector.extract_strided_slice %449 {offsets = [0, 64], sizes = [8, 32], strides = [1, 1]} : vector<8x128xf32> to vector<8x32xf32>
    %453 = vector.extract_strided_slice %448 {offsets = [0, 96], sizes = [8, 32], strides = [1, 1]} : vector<8x128xf32> to vector<8x32xf32>
    %454 = arith.mulf %451, %438 : vector<8x32xf32>
    %455 = arith.mulf %450, %452 : vector<8x32xf32>
    %456 = arith.addf %454, %455 : vector<8x32xf32>
    %457 = math.tanh %456 : vector<8x32xf32>
    %458 = arith.mulf %453, %457 : vector<8x32xf32>
    %459 = tpu.concatenate %332, %350, %368, %386, %404, %422, %440, %458 in 0 : vector<8x32xf32>, vector<8x32xf32>, vector<8x32xf32>, vector<8x32xf32>, vector<8x32xf32>, vector<8x32xf32>, vector<8x32xf32>, vector<8x32xf32> -> vector<64x32xf32>
    %c0_75 = arith.constant 0 : index
    %c0_76 = arith.constant 0 : index
    %460 = vector.load %arg10[%c0_75, %c0_76] : memref<32x16xf32, #tpu.memory_space<vmem>>, vector<32x16xf32>
    %cst_77 = arith.constant dense<0.000000e+00> : vector<64x16xf32>
    %461 = tpu.matmul %459, %460, %cst_77 {dimension_numbers = #tpu.dot_dimension_numbers<[1], [0], [0], [1], [0, 0, 1, 1], [], []>} : vector<64x32xf32>, vector<32x16xf32>, vector<64x16xf32> -> vector<64x16xf32>
    %c0_78 = arith.constant 0 : index
    %c0_79 = arith.constant 0 : index
    %462 = vector.load %arg11[%c0_78, %c0_79] : memref<1x16xf32, #tpu.memory_space<vmem>>, vector<1x16xf32>
    %463 = vector.broadcast %462 : vector<1x16xf32> to vector<64x16xf32>
    %464 = arith.addf %461, %463 : vector<64x16xf32>
    %cst_80 = arith.constant 0.000000e+00 : f32
    %465 = vector.broadcast %cst_80 : f32 to vector<64x16xf32>
    %466 = arith.maximumf %464, %465 : vector<64x16xf32>
    %c0_81 = arith.constant 0 : index
    %c0_82 = arith.constant 0 : index
    %467 = vector.load %arg12[%c0_81, %c0_82] : memref<16x2xf32, #tpu.memory_space<vmem>>, vector<16x2xf32>
    %cst_83 = arith.constant dense<0.000000e+00> : vector<64x2xf32>
    %468 = tpu.matmul %466, %467, %cst_83 {dimension_numbers = #tpu.dot_dimension_numbers<[1], [0], [0], [1], [0, 0, 1, 1], [], []>} : vector<64x16xf32>, vector<16x2xf32>, vector<64x2xf32> -> vector<64x2xf32>
    %c0_84 = arith.constant 0 : index
    %c0_85 = arith.constant 0 : index
    %469 = vector.load %arg13[%c0_84, %c0_85] : memref<1x2xf32, #tpu.memory_space<vmem>>, vector<1x2xf32>
    %470 = vector.broadcast %469 : vector<1x2xf32> to vector<64x2xf32>
    %471 = arith.addf %468, %470 : vector<64x2xf32>
    %c0_86 = arith.constant 0 : index
    %c0_87 = arith.constant 0 : index
    %472 = vector.load %arg14[%c0_86, %c0_87] : memref<64x2xf32, #tpu.memory_space<vmem>>, vector<64x2xf32>
    tpu.vector_store %arg14[%c0_86, %c0_87], %471 {strides = array<i32>} : memref<64x2xf32, #tpu.memory_space<vmem>>, vector<64x2xf32>,
    return
  }
}

</mosaic_0001>

<llo_original>
// kernel: rnn_forward.1
$region0: #{rnn_forward.1}
  #allocation0 [shape = 'u32[]', space=smem, size = 0x4, offset = 0x4, fixed_abs, tag = 'smem constant byte address 0x4 - core index']
  #allocation1 [shape = 'u32[144,128]{1,0:T(1,128)}', space=vmem, size = 0x12000, scoped, tag = 'internal scratch']
  %s0 = inlined_call_operand.vmem [shape: f32[64,37], index: 0, kind: input, shape index: {}]
  %s1 = inlined_call_operand.vmem [shape: f32[37,128], index: 1, kind: input, shape index: {}]
  %s2 = inlined_call_operand.vmem [shape: f32[32,128], index: 2, kind: input, shape index: {}]
  %s3 = inlined_call_operand.hbm [shape: f32[1,128], index: 3, kind: input, shape index: {}]
  %s4 = inlined_call_operand.vmem [shape: f32[32,128], index: 4, kind: input, shape index: {}]
  %s5 = inlined_call_operand.vmem [shape: f32[32,128], index: 5, kind: input, shape index: {}]
  %s6 = inlined_call_operand.vmem [shape: f32[1,128], index: 6, kind: input, shape index: {}]
  %s7 = inlined_call_operand.vmem [shape: f32[32,128], index: 7, kind: input, shape index: {}]
  %s8 = inlined_call_operand.hbm [shape: f32[32,128], index: 8, kind: input, shape index: {}]
  %s9 = inlined_call_operand.vmem [shape: f32[1,128], index: 9, kind: input, shape index: {}]
  %s10 = inlined_call_operand.vmem [shape: f32[32,16], index: 10, kind: input, shape index: {}]
  %s11 = inlined_call_operand.hbm [shape: f32[1,16], index: 11, kind: input, shape index: {}]
  %s12 = inlined_call_operand.vmem [shape: f32[16,2], index: 12, kind: input, shape index: {}]
  %s13 = inlined_call_operand.hbm [shape: f32[1,2], index: 13, kind: input, shape index: {}]
  %s14 = inlined_call_operand.vmem [shape: f32[64,2], index: 14, kind: output, shape index: {}]
  %s15 = sld [smem:[#allocation0]]
  $region82: #{rnn_forward.1} parent=0
    _
  %s17 = ssub.s32 1, %s15
  %s18 = scalar_select 0, %s17, %s15
  $region1: #{rnn_forward.1} parent=0
    #allocation2 [shape = 'u8[512]{0}', space=vmem, size = 0x400, scoped, tag = 'input window, operand 3, single buffered']
    #allocation3 [shape = 's32[1]{0}', space=sflag, size = 0x4, scoped, tag = 'scoped memory for rnn_forward.1']
    #allocation4 [shape = 'u8[16384]{0}', space=vmem, size = 0x4000, scoped, tag = 'input window, operand 8, single buffered']
    #allocation5 [shape = 's32[1]{0}', space=sflag, size = 0x4, scoped, tag = 'scoped memory for rnn_forward.1']
    #allocation6 [shape = 'u8[512]{0}', space=vmem, size = 0x400, scoped, tag = 'input window, operand 11, single buffered']
    #allocation7 [shape = 'u8[512]{0}', space=vmem, size = 0x400, scoped, tag = 'input window, operand 13, single buffered']
    #allocation8 [shape = 's32[1]{0}', space=sflag, size = 0x4, scoped, tag = 'scoped memory for rnn_forward.1']
    %19 = vsyncpa [#allocation3], 0
    %20 = vsyncpa [#allocation5], 0
    %21 = vsyncpa [#allocation8], 0
    // Predicated region
    $region2: #{rnn_forward.1} parent=1 // pred_check
      _
    $region3: #{rnn_forward.1} parent=1 // pred_check_branch
      %23 = sbr.rel (0) target = $region5
    $region4: #{rnn_forward.1} parent=1 // pred_region
      _
    $region5: #{rnn_forward.1} parent=1 // pred_fallthru
      _
    // Predicated region
    $region6: #{rnn_forward.1} parent=1 // pred_check
      _
    $region7: #{rnn_forward.1} parent=1 // pred_check_branch
      %25 = sbr.rel (0) target = $region9
    $region8: #{rnn_forward.1} parent=1 // pred_region
      _
    $region9: #{rnn_forward.1} parent=1 // pred_fallthru
      _
    // Predicated region
    $region10: #{rnn_forward.1} parent=1 // pred_check
      _
    $region11: #{rnn_forward.1} parent=1 // pred_check_branch
      %27 = sbr.rel (0) target = $region13
    $region12: #{rnn_forward.1} parent=1 // pred_region
      _
    $region13: #{rnn_forward.1} parent=1 // pred_fallthru
      _
    // Predicated region
    $region14: #{rnn_forward.1} parent=1 // pred_check
      _
    $region15: #{rnn_forward.1} parent=1 // pred_check_branch
      %29 = sbr.rel (0) target = $region17
    $region16: #{rnn_forward.1} parent=1 // pred_region
      %s31 = ssub.s32 16, 16
      %32 = vsyncadd [#allocation3], %s31
      %s34 = sshll.u32 [#allocation2], 4
      %s35 = int_to_ptr.vmem [resolvable:$true] %s34
      %37 = dma.hbm_to_vmem [thread:$0]  %s3, 16, %s35, [#allocation3]
    $region17: #{rnn_forward.1} parent=1 // pred_fallthru
      _
    // Predicated region
    $region18: #{rnn_forward.1} parent=1 // pred_check
      _
    $region19: #{rnn_forward.1} parent=1 // pred_check_branch
      %39 = sbr.rel (0) target = $region21
    $region20: #{rnn_forward.1} parent=1 // pred_region
      _
    $region21: #{rnn_forward.1} parent=1 // pred_fallthru
      _
    // Predicated region
    $region22: #{rnn_forward.1} parent=1 // pred_check
      _
    $region23: #{rnn_forward.1} parent=1 // pred_check_branch
      %41 = sbr.rel (0) target = $region25
    $region24: #{rnn_forward.1} parent=1 // pred_region
      _
    $region25: #{rnn_forward.1} parent=1 // pred_fallthru
      _
    // Predicated region
    $region26: #{rnn_forward.1} parent=1 // pred_check
      _
    $region27: #{rnn_forward.1} parent=1 // pred_check_branch
      %43 = sbr.rel (0) target = $region29
    $region28: #{rnn_forward.1} parent=1 // pred_region
      _
    $region29: #{rnn_forward.1} parent=1 // pred_fallthru
      _
    // Predicated region
    $region30: #{rnn_forward.1} parent=1 // pred_check
      _
    $region31: #{rnn_forward.1} parent=1 // pred_check_branch
      %45 = sbr.rel (0) target = $region33
    $region32: #{rnn_forward.1} parent=1 // pred_region
      _
    $region33: #{rnn_forward.1} parent=1 // pred_fallthru
      _
    // Predicated region
    $region34: #{rnn_forward.1} parent=1 // pred_check
      _
    $region35: #{rnn_forward.1} parent=1 // pred_check_branch
      %47 = sbr.rel (0) target = $region37
    $region36: #{rnn_forward.1} parent=1 // pred_region
      %s49 = ssub.s32 512, 512
      %50 = vsyncadd [#allocation5], %s49
      %s51 = sshll.u32 [#allocation4], 4
      %s52 = int_to_ptr.vmem [resolvable:$true] %s51
      %57 = dma.hbm_to_vmem [thread:$0]  %s8, 512, %s52, [#allocation5], 128, 128, 8
    $region37: #{rnn_forward.1} parent=1 // pred_fallthru
      _
    // Predicated region
    $region38: #{rnn_forward.1} parent=1 // pred_check
      _
    $region39: #{rnn_forward.1} parent=1 // pred_check_branch
      %59 = sbr.rel (0) target = $region41
    $region40: #{rnn_forward.1} parent=1 // pred_region
      _
    $region41: #{rnn_forward.1} parent=1 // pred_fallthru
      _
    // Predicated region
    $region42: #{rnn_forward.1} parent=1 // pred_check
      _
    $region43: #{rnn_forward.1} parent=1 // pred_check_branch
      %61 = sbr.rel (0) target = $region45
    $region44: #{rnn_forward.1} parent=1 // pred_region
      _
    $region45: #{rnn_forward.1} parent=1 // pred_fallthru
      _
    // Predicated region
    $region46: #{rnn_forward.1} parent=1 // pred_check
      _
    $region47: #{rnn_forward.1} parent=1 // pred_check_branch
      %63 = sbr.rel (0) target = $region49
    $region48: #{rnn_forward.1} parent=1 // pred_region
      %s65 = ssub.s32 16, 16
      %66 = vsyncadd [#allocation5], %s65
      %s68 = sshll.u32 [#allocation6], 4
      %s69 = int_to_ptr.vmem [resolvable:$true] %s68
      %71 = dma.hbm_to_vmem [thread:$0]  %s11, 16, %s69, [#allocation5]
    $region49: #{rnn_forward.1} parent=1 // pred_fallthru
      _
    // Predicated region
    $region50: #{rnn_forward.1} parent=1 // pred_check
      _
    $region51: #{rnn_forward.1} parent=1 // pred_check_branch
      %73 = sbr.rel (0) target = $region53
    $region52: #{rnn_forward.1} parent=1 // pred_region
      _
    $region53: #{rnn_forward.1} parent=1 // pred_fallthru
      _
    // Predicated region
    $region54: #{rnn_forward.1} parent=1 // pred_check
      _
    $region55: #{rnn_forward.1} parent=1 // pred_check_branch
      %75 = sbr.rel (0) target = $region57
    $region56: #{rnn_forward.1} parent=1 // pred_region
      %s77 = ssub.s32 16, 16
      %78 = vsyncadd [#allocation8], %s77
      %s80 = sshll.u32 [#allocation7], 4
      %s81 = int_to_ptr.vmem [resolvable:$true] %s80
      %83 = dma.hbm_to_vmem [thread:$0]  %s13, 16, %s81, [#allocation8]
    $region57: #{rnn_forward.1} parent=1 // pred_fallthru
      _
    // Predicated region
    $region58: #{rnn_forward.1} parent=1 // pred_check
      _
    $region59: #{rnn_forward.1} parent=1 // pred_check_branch
      %85 = sbr.rel (0) target = $region61
    $region60: #{rnn_forward.1} parent=1 // pred_region
      %86 = dma.done [#allocation3], 16
    $region61: #{rnn_forward.1} parent=1 // pred_fallthru
      _
    // Predicated region
    $region62: #{rnn_forward.1} parent=1 // pred_check
      _
    $region63: #{rnn_forward.1} parent=1 // pred_check_branch
      %88 = sbr.rel (0) target = $region65
    $region64: #{rnn_forward.1} parent=1 // pred_region
      %89 = dma.done [#allocation5], 512
    $region65: #{rnn_forward.1} parent=1 // pred_fallthru
      _
    // Predicated region
    $region66: #{rnn_forward.1} parent=1 // pred_check
      _
    $region67: #{rnn_forward.1} parent=1 // pred_check_branch
      %91 = sbr.rel (0) target = $region69
    $region68: #{rnn_forward.1} parent=1 // pred_region
      %92 = dma.done [#allocation5], 16
    $region69: #{rnn_forward.1} parent=1 // pred_fallthru
      _
    // Predicated region
    $region70: #{rnn_forward.1} parent=1 // pred_check
      _
    $region71: #{rnn_forward.1} parent=1 // pred_check_branch
      %94 = sbr.rel (0) target = $region73
    $region72: #{rnn_forward.1} parent=1 // pred_region
      %95 = dma.done [#allocation8], 16
    $region73: #{rnn_forward.1} parent=1 // pred_fallthru
      _
    %v96 = vld [vmem:[%s0] sm:$0xff]
    %v97 = vld [vmem:[%s0 + $0x8] sm:$0xff]
    %v98 = vld [vmem:[%s0 + $0x10] sm:$0xff]
    %v99 = vld [vmem:[%s0 + $0x18] sm:$0xff]
    %v100 = vld [vmem:[%s0 + $0x20] sm:$0xff]
    %v101 = vld [vmem:[%s0 + $0x28] sm:$0xff]
    %v102 = vld [vmem:[%s0 + $0x30] sm:$0xff]
    %v103 = vld [vmem:[%s0 + $0x38] sm:$0xff]
    %v104 = vld [vmem:[%s1] sm:$0xff]
    %v105 = vld [vmem:[%s1 + $0x8] sm:$0xff]
    %v106 = vld [vmem:[%s1 + $0x10] sm:$0xff]
    %v107 = vld [vmem:[%s1 + $0x18] sm:$0xff]
    %v108 = vld [vmem:[%s1 + $0x20] sm:$0x1f]
    %v109 = vld [vmem:[#allocation2] sm:$0x1]
    %v111 = vlaneseq
    %v112 = vshrl.u32 %v111, 7
    %v113 = vsub.s32 0, %v112
    %v114 = vrot.slane %v109, %v113
    %vm116 = vcmask 302080
    %v118 = vsel %vm116, %v96, 0
    %v121 = vsel %vm116, %v97, 0
    %v124 = vsel %vm116, %v98, 0
    %v127 = vsel %vm116, %v99, 0
    %v130 = vsel %vm116, %v100, 0
    %v133 = vsel %vm116, %v101, 0
    %v136 = vsel %vm116, %v102, 0
    %v139 = vsel %vm116, %v103, 0
    %vm141 = vcmask 1044480
    %v143 = vsel %vm141, %v108, 0
    %145 = vmatprep.subr.mxu0 0.0
    %146 = vmatpush1.msra.mxu0 %v104
    %147 = vmatprep.subr.mxu0 0.0
    %148 = vmatpush1.msra.mxu0 %v105
    %149 = vmatprep.subr.mxu0 0.0
    %150 = vmatpush1.msra.mxu0 %v106
    %151 = vmatprep.subr.mxu0 0.0
    %152 = vmatpush1.msra.mxu0 %v107
    %153 = vmatprep.subr.mxu0 0.0
    %154 = vmatpush1.msra.mxu0 %v143
    %155 = vmatprep.subr.mxu0 0.0
    %156 = vmatpush1.msra.mxu0 0.0
    %157 = vmatprep.subr.mxu0 0.0
    %158 = vmatpush1.msra.mxu0 0.0
    %159 = vmatprep.subr.mxu0 0.0
    %160 = vmatpush1.msra.mxu0 0.0
    %161 = vmatprep.subr.mxu0 0.0
    %162 = vmatpush1.msra.mxu0 0.0
    %163 = vmatprep.subr.mxu0 0.0
    %164 = vmatpush1.msra.mxu0 0.0
    %165 = vmatprep.subr.mxu0 0.0
    %166 = vmatpush1.msra.mxu0 0.0
    %167 = vmatprep.subr.mxu0 0.0
    %168 = vmatpush1.msra.mxu0 0.0
    %169 = vmatprep.subr.mxu0 0.0
    %170 = vmatpush1.msra.mxu0 0.0
    %171 = vmatprep.subr.mxu0 0.0
    %172 = vmatpush1.msra.mxu0 0.0
    %173 = vmatprep.subr.mxu0 0.0
    %174 = vmatpush1.msra.mxu0 0.0
    %175 = vmatprep.subr.mxu0 0.0
    %176 = vmatpush1.msra.mxu0 0.0
    %177 = vmatprep.subr.mxu0 0.0
    %178 = vmatpush1.msra.mxu0 0.0
    %179 = vmatprep.subr.mxu0 0.0
    %180 = vmatpush1.msra.mxu0 0.0
    %181 = vmatprep.subr.mxu0 0.0
    %182 = vmatpush1.msra.mxu0 0.0
    %183 = vmatprep.subr.mxu0 0.0
    %184 = vmatpush1.msra.mxu0 0.0
    %185 = vmatprep.subr.mxu0 0.0
    %186 = vmatpush1.msra.mxu0 0.0
    %187 = vmatprep.subr.mxu0 0.0
    %188 = vmatpush1.msra.mxu0 0.0
    %189 = vmatprep.subr.mxu0 0.0
    %190 = vmatpush1.msra.mxu0 0.0
    %191 = vmatprep.subr.mxu0 0.0
    %192 = vmatpush1.msra.mxu0 0.0
    %193 = vmatprep.subr.mxu0 0.0
    %194 = vmatpush1.msra.mxu0 0.0
    %195 = vmatprep.subr.mxu0 0.0
    %196 = vmatpush1.msra.mxu0 0.0
    %197 = vmatprep.subr.mxu0 0.0
    %198 = vmatpush1.msra.mxu0 0.0
    %199 = vmatprep.subr.mxu0 0.0
    %200 = vmatpush1.msra.mxu0 0.0
    %201 = vmatprep.subr.mxu0 0.0
    %202 = vmatpush1.msra.mxu0 0.0
    %203 = vmatprep.subr.mxu0 0.0
    %204 = vmatpush1.msra.mxu0 0.0
    %205 = vmatprep.subr.mxu0 0.0
    %206 = vmatpush1.msra.mxu0 0.0
    %207 = vmatprep.subr.mxu0 0.0
    %208 = vmatpush1.msra.mxu0 0.0
    %209 = vmatprep.mubr.f32.mxu0 0.0
    %210 = vmatmul.mubr.f32.gmra.mrb[0].mxu0 %v118
    %v211 = vpop.f32.mrb[0].mxu0
    %v212 = vadd.f32 %v114, %v211
    %v213 = vpop.f32.mrb[0].mxu0
    %214 = vmatprep.mubr.f32.mxu0 0.0
    %215 = vmatmul.mubr.f32.gmra.mrb[0].mxu0 %v121
    %v216 = vpop.f32.mrb[0].mxu0
    %v217 = vadd.f32 %v114, %v216
    %v218 = vpop.f32.mrb[0].mxu0
    %219 = vmatprep.mubr.f32.mxu0 0.0
    %220 = vmatmul.mubr.f32.gmra.mrb[0].mxu0 %v124
    %v221 = vpop.f32.mrb[0].mxu0
    %v222 = vadd.f32 %v114, %v221
    %v223 = vpop.f32.mrb[0].mxu0
    %224 = vmatprep.mubr.f32.mxu0 0.0
    %225 = vmatmul.mubr.f32.gmra.mrb[0].mxu0 %v127
    %v226 = vpop.f32.mrb[0].mxu0
    %v227 = vadd.f32 %v114, %v226
    %v228 = vpop.f32.mrb[0].mxu0
    %229 = vmatprep.mubr.f32.mxu0 0.0
    %230 = vmatmul.mubr.f32.gmra.mrb[0].mxu0 %v130
    %v231 = vpop.f32.mrb[0].mxu0
    %v232 = vadd.f32 %v114, %v231
    %v233 = vpop.f32.mrb[0].mxu0
    %234 = vmatprep.mubr.f32.mxu0 0.0
    %235 = vmatmul.mubr.f32.gmra.mrb[0].mxu0 %v133
    %v236 = vpop.f32.mrb[0].mxu0
    %v237 = vadd.f32 %v114, %v236
    %v238 = vpop.f32.mrb[0].mxu0
    %239 = vmatprep.mubr.f32.mxu0 0.0
    %240 = vmatmul.mubr.f32.gmra.mrb[0].mxu0 %v136
    %v241 = vpop.f32.mrb[0].mxu0
    %v242 = vadd.f32 %v114, %v241
    %v243 = vpop.f32.mrb[0].mxu0
    %244 = vmatprep.mubr.f32.mxu0 0.0
    %245 = vmatmul.mubr.f32.gmra.mrb[0].mxu0 %v139
    %v246 = vpop.f32.mrb[0].mxu0
    %v247 = vadd.f32 %v114, %v246
    %v248 = vpop.f32.mrb[0].mxu0
    %249 = vdwg.mxu0
    %v250 = vld [vmem:[%s2] sm:$0xff]
    %v251 = vld [vmem:[%s2 + $0x8] sm:$0xff]
    %v252 = vld [vmem:[%s2 + $0x10] sm:$0xff]
    %v253 = vld [vmem:[%s2 + $0x18] sm:$0xff]
    %vm254 = vcmask 261120
    %v256 = vsel %vm254, 0.0, 0
    %258 = vmatprep.subr.mxu0 0.0
    %259 = vmatpush1.msra.mxu0 %v250
    %260 = vmatprep.subr.mxu0 0.0
    %261 = vmatpush1.msra.mxu0 %v251
    %262 = vmatprep.subr.mxu0 0.0
    %263 = vmatpush1.msra.mxu0 %v252
    %264 = vmatprep.subr.mxu0 0.0
    %265 = vmatpush1.msra.mxu0 %v253
    %266 = vmatprep.subr.mxu0 0.0
    %267 = vmatpush1.msra.mxu0 0.0
    %268 = vmatprep.subr.mxu0 0.0
    %269 = vmatpush1.msra.mxu0 0.0
    %270 = vmatprep.subr.mxu0 0.0
    %271 = vmatpush1.msra.mxu0 0.0
    %272 = vmatprep.subr.mxu0 0.0
    %273 = vmatpush1.msra.mxu0 0.0
    %274 = vmatprep.subr.mxu0 0.0
    %275 = vmatpush1.msra.mxu0 0.0
    %276 = vmatprep.subr.mxu0 0.0
    %277 = vmatpush1.msra.mxu0 0.0
    %278 = vmatprep.subr.mxu0 0.0
    %279 = vmatpush1.msra.mxu0 0.0
    %280 = vmatprep.subr.mxu0 0.0
    %281 = vmatpush1.msra.mxu0 0.0
    %282 = vmatprep.subr.mxu0 0.0
    %283 = vmatpush1.msra.mxu0 0.0
    %284 = vmatprep.subr.mxu0 0.0
    %285 = vmatpush1.msra.mxu0 0.0
    %286 = vmatprep.subr.mxu0 0.0
    %287 = vmatpush1.msra.mxu0 0.0
    %288 = vmatprep.subr.mxu0 0.0
    %289 = vmatpush1.msra.mxu0 0.0
    %290 = vmatprep.subr.mxu0 0.0
    %291 = vmatpush1.msra.mxu0 0.0
    %292 = vmatprep.subr.mxu0 0.0
    %293 = vmatpush1.msra.mxu0 0.0
    %294 = vmatprep.subr.mxu0 0.0
    %295 = vmatpush1.msra.mxu0 0.0
    %296 = vmatprep.subr.mxu0 0.0
    %297 = vmatpush1.msra.mxu0 0.0
    %298 = vmatprep.subr.mxu0 0.0
    %299 = vmatpush1.msra.mxu0 0.0
    %300 = vmatprep.subr.mxu0 0.0
    %301 = vmatpush1.msra.mxu0 0.0
    %302 = vmatprep.subr.mxu0 0.0
    %303 = vmatpush1.msra.mxu0 0.0
    %304 = vmatprep.subr.mxu0 0.0
    %305 = vmatpush1.msra.mxu0 0.0
    %306 = vmatprep.subr.mxu0 0.0
    %307 = vmatpush1.msra.mxu0 0.0
    %308 = vmatprep.subr.mxu0 0.0
    %309 = vmatpush1.msra.mxu0 0.0
    %310 = vmatprep.subr.mxu0 0.0
    %311 = vmatpush1.msra.mxu0 0.0
    %312 = vmatprep.subr.mxu0 0.0
    %313 = vmatpush1.msra.mxu0 0.0
    %314 = vmatprep.subr.mxu0 0.0
    %315 = vmatpush1.msra.mxu0 0.0
    %316 = vmatprep.subr.mxu0 0.0
    %317 = vmatpush1.msra.mxu0 0.0
    %318 = vmatprep.subr.mxu0 0.0
    %319 = vmatpush1.msra.mxu0 0.0
    %320 = vmatprep.subr.mxu0 0.0
    %321 = vmatpush1.msra.mxu0 0.0
    %322 = vmatprep.mubr.f32.mxu0 0.0
    %323 = vmatmul.mubr.f32.gmra.mrb[0].mxu0 %v256
    %v324 = vpop.f32.mrb[0].mxu0
    %v325 = vadd.f32 0.0, %v324
    %v326 = vpop.f32.mrb[0].mxu0
    %327 = vdwg.mxu0
    %v328 = vadd.f32 %v212, %v325
    %v329 = vxor.u32 %v328, 2147483648
    %v330 = vmul.f32 %v329, 1.442695
    %v331 = vpow.pop %v330
    %v332 = vadd.f32 %v331, 1.0
    %v333 = vrcp.pop %v332
    %v334 = vmul.f32 1.0, %v333
    %v335 = vtanh.pop %v328
    %v336 = vmul.f32 %v334, 0.0
    %338 = vrot.lane.b32.xlu0 %v335, 64
    %v339 = vpop.permute.xlu0 %338
    %v341 = vmul.f32 %v334, %v339
    %343 = vrot.lane.b32.xlu0 %v341, 32
    %v344 = vpop.permute.xlu0 %343
    %v346 = vadd.f32 %v336, %v344
    %v347 = vtanh.pop %v346
    %349 = vrot.lane.b32.xlu0 %v347, 64
    %v350 = vpop.permute.xlu0 %349
    %v352 = vmul.f32 %v334, %v350
    %354 = vrot.lane.b32.xlu0 %v352, 32
    %v355 = vpop.permute.xlu0 %354
    %v356 = vsel %vm254, %v355, 0
    %358 = vmatprep.subr.mxu0 0.0
    %359 = vmatpush1.msra.mxu0 %v250
    %360 = vmatprep.subr.mxu0 0.0
    %361 = vmatpush1.msra.mxu0 %v251
    %362 = vmatprep.subr.mxu0 0.0
    %363 = vmatpush1.msra.mxu0 %v252
    %364 = vmatprep.subr.mxu0 0.0
    %365 = vmatpush1.msra.mxu0 %v253
    %366 = vmatprep.subr.mxu0 0.0
    %367 = vmatpush1.msra.mxu0 0.0
    %368 = vmatprep.subr.mxu0 0.0
    %369 = vmatpush1.msra.mxu0 0.0
    %370 = vmatprep.subr.mxu0 0.0
    %371 = vmatpush1.msra.mxu0 0.0
    %372 = vmatprep.subr.mxu0 0.0
    %373 = vmatpush1.msra.mxu0 0.0
    %374 = vmatprep.subr.mxu0 0.0
    %375 = vmatpush1.msra.mxu0 0.0
    %376 = vmatprep.subr.mxu0 0.0
    %377 = vmatpush1.msra.mxu0 0.0
    %378 = vmatprep.subr.mxu0 0.0
    %379 = vmatpush1.msra.mxu0 0.0
    %380 = vmatprep.subr.mxu0 0.0
    %381 = vmatpush1.msra.mxu0 0.0
    %382 = vmatprep.subr.mxu0 0.0
    %383 = vmatpush1.msra.mxu0 0.0
    %384 = vmatprep.subr.mxu0 0.0
    %385 = vmatpush1.msra.mxu0 0.0
    %386 = vmatprep.subr.mxu0 0.0
    %387 = vmatpush1.msra.mxu0 0.0
    %388 = vmatprep.subr.mxu0 0.0
    %389 = vmatpush1.msra.mxu0 0.0
    %390 = vmatprep.subr.mxu0 0.0
    %391 = vmatpush1.msra.mxu0 0.0
    %392 = vmatprep.subr.mxu0 0.0
    %393 = vmatpush1.msra.mxu0 0.0
    %394 = vmatprep.subr.mxu0 0.0
    %395 = vmatpush1.msra.mxu0 0.0
    %396 = vmatprep.subr.mxu0 0.0
    %397 = vmatpush1.msra.mxu0 0.0
    %398 = vmatprep.subr.mxu0 0.0
    %399 = vmatpush1.msra.mxu0 0.0
    %400 = vmatprep.subr.mxu0 0.0
    %401 = vmatpush1.msra.mxu0 0.0
    %402 = vmatprep.subr.mxu0 0.0
    %403 = vmatpush1.msra.mxu0 0.0
    %404 = vmatprep.subr.mxu0 0.0
    %405 = vmatpush1.msra.mxu0 0.0
    %406 = vmatprep.subr.mxu0 0.0
    %407 = vmatpush1.msra.mxu0 0.0
    %408 = vmatprep.subr.mxu0 0.0
    %409 = vmatpush1.msra.mxu0 0.0
    %410 = vmatprep.subr.mxu0 0.0
    %411 = vmatpush1.msra.mxu0 0.0
    %412 = vmatprep.subr.mxu0 0.0
    %413 = vmatpush1.msra.mxu0 0.0
    %414 = vmatprep.subr.mxu0 0.0
    %415 = vmatpush1.msra.mxu0 0.0
    %416 = vmatprep.subr.mxu0 0.0
    %417 = vmatpush1.msra.mxu0 0.0
    %418 = vmatprep.subr.mxu0 0.0
    %419 = vmatpush1.msra.mxu0 0.0
    %420 = vmatprep.subr.mxu0 0.0
    %421 = vmatpush1.msra.mxu0 0.0
    %422 = vmatprep.mubr.f32.mxu0 0.0
    %423 = vmatmul.mubr.f32.gmra.mrb[0].mxu0 %v356
    %v424 = vpop.f32.mrb[0].mxu0
    %v425 = vadd.f32 0.0, %v424
    %v426 = vpop.f32.mrb[0].mxu0
    %427 = vdwg.mxu0
    %v428 = vadd.f32 %v217, %v425
    %v429 = vxor.u32 %v428, 2147483648
    %v430 = vmul.f32 %v429, 1.442695
    %v431 = vpow.pop %v430
    %v432 = vadd.f32 %v431, 1.0
    %v433 = vrcp.pop %v432
    %v434 = vmul.f32 1.0, %v433
    %v435 = vtanh.pop %v428
    %v436 = vmul.f32 %v434, %v346
    %438 = vrot.lane.b32.xlu0 %v435, 64
    %v439 = vpop.permute.xlu0 %438
    %v441 = vmul.f32 %v434, %v439
    %443 = vrot.lane.b32.xlu0 %v441, 32
    %v444 = vpop.permute.xlu0 %443
    %v446 = vadd.f32 %v436, %v444
    %v447 = vtanh.pop %v446
    %449 = vrot.lane.b32.xlu0 %v447, 64
    %v450 = vpop.permute.xlu0 %449
    %v452 = vmul.f32 %v434, %v450
    %454 = vrot.lane.b32.xlu0 %v452, 32
    %v455 = vpop.permute.xlu0 %454
    %v456 = vsel %vm254, %v455, 0
    %458 = vmatprep.subr.mxu0 0.0
    %459 = vmatpush1.msra.mxu0 %v250
    %460 = vmatprep.subr.mxu0 0.0
    %461 = vmatpush1.msra.mxu0 %v251
    %462 = vmatprep.subr.mxu0 0.0
    %463 = vmatpush1.msra.mxu0 %v252
    %464 = vmatprep.subr.mxu0 0.0
    %465 = vmatpush1.msra.mxu0 %v253
    %466 = vmatprep.subr.mxu0 0.0
    %467 = vmatpush1.msra.mxu0 0.0
    %468 = vmatprep.subr.mxu0 0.0
    %469 = vmatpush1.msra.mxu0 0.0
    %470 = vmatprep.subr.mxu0 0.0
    %471 = vmatpush1.msra.mxu0 0.0
    %472 = vmatprep.subr.mxu0 0.0
    %473 = vmatpush1.msra.mxu0 0.0
    %474 = vmatprep.subr.mxu0 0.0
    %475 = vmatpush1.msra.mxu0 0.0
    %476 = vmatprep.subr.mxu0 0.0
    %477 = vmatpush1.msra.mxu0 0.0
    %478 = vmatprep.subr.mxu0 0.0
    %479 = vmatpush1.msra.mxu0 0.0
    %480 = vmatprep.subr.mxu0 0.0
    %481 = vmatpush1.msra.mxu0 0.0
    %482 = vmatprep.subr.mxu0 0.0
    %483 = vmatpush1.msra.mxu0 0.0
    %484 = vmatprep.subr.mxu0 0.0
    %485 = vmatpush1.msra.mxu0 0.0
    %486 = vmatprep.subr.mxu0 0.0
    %487 = vmatpush1.msra.mxu0 0.0
    %488 = vmatprep.subr.mxu0 0.0
    %489 = vmatpush1.msra.mxu0 0.0
    %490 = vmatprep.subr.mxu0 0.0
    %491 = vmatpush1.msra.mxu0 0.0
    %492 = vmatprep.subr.mxu0 0.0
    %493 = vmatpush1.msra.mxu0 0.0
    %494 = vmatprep.subr.mxu0 0.0
    %495 = vmatpush1.msra.mxu0 0.0
    %496 = vmatprep.subr.mxu0 0.0
    %497 = vmatpush1.msra.mxu0 0.0
    %498 = vmatprep.subr.mxu0 0.0
    %499 = vmatpush1.msra.mxu0 0.0
    %500 = vmatprep.subr.mxu0 0.0
    %501 = vmatpush1.msra.mxu0 0.0
    %502 = vmatprep.subr.mxu0 0.0
    %503 = vmatpush1.msra.mxu0 0.0
    %504 = vmatprep.subr.mxu0 0.0
    %505 = vmatpush1.msra.mxu0 0.0
    %506 = vmatprep.subr.mxu0 0.0
    %507 = vmatpush1.msra.mxu0 0.0
    %508 = vmatprep.subr.mxu0 0.0
    %509 = vmatpush1.msra.mxu0 0.0
    %510 = vmatprep.subr.mxu0 0.0
    %511 = vmatpush1.msra.mxu0 0.0
    %512 = vmatprep.subr.mxu0 0.0
    %513 = vmatpush1.msra.mxu0 0.0
    %514 = vmatprep.subr.mxu0 0.0
    %515 = vmatpush1.msra.mxu0 0.0
    %516 = vmatprep.subr.mxu0 0.0
    %517 = vmatpush1.msra.mxu0 0.0
    %518 = vmatprep.subr.mxu0 0.0
    %519 = vmatpush1.msra.mxu0 0.0
    %520 = vmatprep.subr.mxu0 0.0
    %521 = vmatpush1.msra.mxu0 0.0
    %522 = vmatprep.mubr.f32.mxu0 0.0
    %523 = vmatmul.mubr.f32.gmra.mrb[0].mxu0 %v456
    %v524 = vpop.f32.mrb[0].mxu0
    %v525 = vadd.f32 0.0, %v524
    %v526 = vpop.f32.mrb[0].mxu0
    %527 = vdwg.mxu0
    %v528 = vadd.f32 %v222, %v525
    %v529 = vxor.u32 %v528, 2147483648
    %v530 = vmul.f32 %v529, 1.442695
    %v531 = vpow.pop %v530
    %v532 = vadd.f32 %v531, 1.0
    %v533 = vrcp.pop %v532
    %v534 = vmul.f32 1.0, %v533
    %v535 = vtanh.pop %v528
    %v536 = vmul.f32 %v534, %v446
    %538 = vrot.lane.b32.xlu0 %v535, 64
    %v539 = vpop.permute.xlu0 %538
    %v541 = vmul.f32 %v534, %v539
    %543 = vrot.lane.b32.xlu0 %v541, 32
    %v544 = vpop.permute.xlu0 %543
    %v546 = vadd.f32 %v536, %v544
    %v547 = vtanh.pop %v546
    %549 = vrot.lane.b32.xlu0 %v547, 64
    %v550 = vpop.permute.xlu0 %549
    %v552 = vmul.f32 %v534, %v550
    %554 = vrot.lane.b32.xlu0 %v552, 32
    %v555 = vpop.permute.xlu0 %554
    %v556 = vsel %vm254, %v555, 0
    %558 = vmatprep.subr.mxu0 0.0
    %559 = vmatpush1.msra.mxu0 %v250
    %560 = vmatprep.subr.mxu0 0.0
    %561 = vmatpush1.msra.mxu0 %v251
    %562 = vmatprep.subr.mxu0 0.0
    %563 = vmatpush1.msra.mxu0 %v252
    %564 = vmatprep.subr.mxu0 0.0
    %565 = vmatpush1.msra.mxu0 %v253
    %566 = vmatprep.subr.mxu0 0.0
    %567 = vmatpush1.msra.mxu0 0.0
    %568 = vmatprep.subr.mxu0 0.0
    %569 = vmatpush1.msra.mxu0 0.0
    %570 = vmatprep.subr.mxu0 0.0
    %571 = vmatpush1.msra.mxu0 0.0
    %572 = vmatprep.subr.mxu0 0.0
    %573 = vmatpush1.msra.mxu0 0.0
    %574 = vmatprep.subr.mxu0 0.0
    %575 = vmatpush1.msra.mxu0 0.0
    %576 = vmatprep.subr.mxu0 0.0
    %577 = vmatpush1.msra.mxu0 0.0
    %578 = vmatprep.subr.mxu0 0.0
    %579 = vmatpush1.msra.mxu0 0.0
    %580 = vmatprep.subr.mxu0 0.0
    %581 = vmatpush1.msra.mxu0 0.0
    %582 = vmatprep.subr.mxu0 0.0
    %583 = vmatpush1.msra.mxu0 0.0
    %584 = vmatprep.subr.mxu0 0.0
    %585 = vmatpush1.msra.mxu0 0.0
    %586 = vmatprep.subr.mxu0 0.0
    %587 = vmatpush1.msra.mxu0 0.0
    %588 = vmatprep.subr.mxu0 0.0
    %589 = vmatpush1.msra.mxu0 0.0
    %590 = vmatprep.subr.mxu0 0.0
    %591 = vmatpush1.msra.mxu0 0.0
    %592 = vmatprep.subr.mxu0 0.0
    %593 = vmatpush1.msra.mxu0 0.0
    %594 = vmatprep.subr.mxu0 0.0
    %595 = vmatpush1.msra.mxu0 0.0
    %596 = vmatprep.subr.mxu0 0.0
    %597 = vmatpush1.msra.mxu0 0.0
    %598 = vmatprep.subr.mxu0 0.0
    %599 = vmatpush1.msra.mxu0 0.0
    %600 = vmatprep.subr.mxu0 0.0
    %601 = vmatpush1.msra.mxu0 0.0
    %602 = vmatprep.subr.mxu0 0.0
    %603 = vmatpush1.msra.mxu0 0.0
    %604 = vmatprep.subr.mxu0 0.0
    %605 = vmatpush1.msra.mxu0 0.0
    %606 = vmatprep.subr.mxu0 0.0
    %607 = vmatpush1.msra.mxu0 0.0
    %608 = vmatprep.subr.mxu0 0.0
    %609 = vmatpush1.msra.mxu0 0.0
    %610 = vmatprep.subr.mxu0 0.0
    %611 = vmatpush1.msra.mxu0 0.0
    %612 = vmatprep.subr.mxu0 0.0
    %613 = vmatpush1.msra.mxu0 0.0
    %614 = vmatprep.subr.mxu0 0.0
    %615 = vmatpush1.msra.mxu0 0.0
    %616 = vmatprep.subr.mxu0 0.0
    %617 = vmatpush1.msra.mxu0 0.0
    %618 = vmatprep.subr.mxu0 0.0
    %619 = vmatpush1.msra.mxu0 0.0
    %620 = vmatprep.subr.mxu0 0.0
    %621 = vmatpush1.msra.mxu0 0.0
    %622 = vmatprep.mubr.f32.mxu0 0.0
    %623 = vmatmul.mubr.f32.gmra.mrb[0].mxu0 %v556
    %v624 = vpop.f32.mrb[0].mxu0
    %v625 = vadd.f32 0.0, %v624
    %v626 = vpop.f32.mrb[0].mxu0
    %627 = vdwg.mxu0
    %v628 = vadd.f32 %v227, %v625
    %v629 = vxor.u32 %v628, 2147483648
    %v630 = vmul.f32 %v629, 1.442695
    %v631 = vpow.pop %v630
    %v632 = vadd.f32 %v631, 1.0
    %v633 = vrcp.pop %v632
    %v634 = vmul.f32 1.0, %v633
    %v635 = vtanh.pop %v628
    %v636 = vmul.f32 %v634, %v546
    %638 = vrot.lane.b32.xlu0 %v635, 64
    %v639 = vpop.permute.xlu0 %638
    %v641 = vmul.f32 %v634, %v639
    %643 = vrot.lane.b32.xlu0 %v641, 32
    %v644 = vpop.permute.xlu0 %643
    %v646 = vadd.f32 %v636, %v644
    %v647 = vtanh.pop %v646
    %649 = vrot.lane.b32.xlu0 %v647, 64
    %v650 = vpop.permute.xlu0 %649
    %v652 = vmul.f32 %v634, %v650
    %654 = vrot.lane.b32.xlu0 %v652, 32
    %v655 = vpop.permute.xlu0 %654
    %v656 = vsel %vm254, %v655, 0
    %658 = vmatprep.subr.mxu0 0.0
    %659 = vmatpush1.msra.mxu0 %v250
    %660 = vmatprep.subr.mxu0 0.0
    %661 = vmatpush1.msra.mxu0 %v251
    %662 = vmatprep.subr.mxu0 0.0
    %663 = vmatpush1.msra.mxu0 %v252
    %664 = vmatprep.subr.mxu0 0.0
    %665 = vmatpush1.msra.mxu0 %v253
    %666 = vmatprep.subr.mxu0 0.0
    %667 = vmatpush1.msra.mxu0 0.0
    %668 = vmatprep.subr.mxu0 0.0
    %669 = vmatpush1.msra.mxu0 0.0
    %670 = vmatprep.subr.mxu0 0.0
    %671 = vmatpush1.msra.mxu0 0.0
    %672 = vmatprep.subr.mxu0 0.0
    %673 = vmatpush1.msra.mxu0 0.0
    %674 = vmatprep.subr.mxu0 0.0
    %675 = vmatpush1.msra.mxu0 0.0
    %676 = vmatprep.subr.mxu0 0.0
    %677 = vmatpush1.msra.mxu0 0.0
    %678 = vmatprep.subr.mxu0 0.0
    %679 = vmatpush1.msra.mxu0 0.0
    %680 = vmatprep.subr.mxu0 0.0
    %681 = vmatpush1.msra.mxu0 0.0
    %682 = vmatprep.subr.mxu0 0.0
    %683 = vmatpush1.msra.mxu0 0.0
    %684 = vmatprep.subr.mxu0 0.0
    %685 = vmatpush1.msra.mxu0 0.0
    %686 = vmatprep.subr.mxu0 0.0
    %687 = vmatpush1.msra.mxu0 0.0
    %688 = vmatprep.subr.mxu0 0.0
    %689 = vmatpush1.msra.mxu0 0.0
    %690 = vmatprep.subr.mxu0 0.0
    %691 = vmatpush1.msra.mxu0 0.0
    %692 = vmatprep.subr.mxu0 0.0
    %693 = vmatpush1.msra.mxu0 0.0
    %694 = vmatprep.subr.mxu0 0.0
    %695 = vmatpush1.msra.mxu0 0.0
    %696 = vmatprep.subr.mxu0 0.0
    %697 = vmatpush1.msra.mxu0 0.0
    %698 = vmatprep.subr.mxu0 0.0
    %699 = vmatpush1.msra.mxu0 0.0
    %700 = vmatprep.subr.mxu0 0.0
    %701 = vmatpush1.msra.mxu0 0.0
    %702 = vmatprep.subr.mxu0 0.0
    %703 = vmatpush1.msra.mxu0 0.0
    %704 = vmatprep.subr.mxu0 0.0
    %705 = vmatpush1.msra.mxu0 0.0
    %706 = vmatprep.subr.mxu0 0.0
    %707 = vmatpush1.msra.mxu0 0.0
    %708 = vmatprep.subr.mxu0 0.0
    %709 = vmatpush1.msra.mxu0 0.0
    %710 = vmatprep.subr.mxu0 0.0
    %711 = vmatpush1.msra.mxu0 0.0
    %712 = vmatprep.subr.mxu0 0.0
    %713 = vmatpush1.msra.mxu0 0.0
    %714 = vmatprep.subr.mxu0 0.0
    %715 = vmatpush1.msra.mxu0 0.0
    %716 = vmatprep.subr.mxu0 0.0
    %717 = vmatpush1.msra.mxu0 0.0
    %718 = vmatprep.subr.mxu0 0.0
    %719 = vmatpush1.msra.mxu0 0.0
    %720 = vmatprep.subr.mxu0 0.0
    %721 = vmatpush1.msra.mxu0 0.0
    %722 = vmatprep.mubr.f32.mxu0 0.0
    %723 = vmatmul.mubr.f32.gmra.mrb[0].mxu0 %v656
    %v724 = vpop.f32.mrb[0].mxu0
    %v725 = vadd.f32 0.0, %v724
    %v726 = vpop.f32.mrb[0].mxu0
    %727 = vdwg.mxu0
    %v728 = vadd.f32 %v232, %v725
    %v729 = vxor.u32 %v728, 2147483648
    %v730 = vmul.f32 %v729, 1.442695
    %v731 = vpow.pop %v730
    %v732 = vadd.f32 %v731, 1.0
    %v733 = vrcp.pop %v732
    %v734 = vmul.f32 1.0, %v733
    %v735 = vtanh.pop %v728
    %v736 = vmul.f32 %v734, %v646
    %738 = vrot.lane.b32.xlu0 %v735, 64
    %v739 = vpop.permute.xlu0 %738
    %v741 = vmul.f32 %v734, %v739
    %743 = vrot.lane.b32.xlu0 %v741, 32
    %v744 = vpop.permute.xlu0 %743
    %v746 = vadd.f32 %v736, %v744
    %v747 = vtanh.pop %v746
    %749 = vrot.lane.b32.xlu0 %v747, 64
    %v750 = vpop.permute.xlu0 %749
    %v752 = vmul.f32 %v734, %v750
    %754 = vrot.lane.b32.xlu0 %v752, 32
    %v755 = vpop.permute.xlu0 %754
    %v756 = vsel %vm254, %v755, 0
    %758 = vmatprep.subr.mxu0 0.0
    %759 = vmatpush1.msra.mxu0 %v250
    %760 = vmatprep.subr.mxu0 0.0
    %761 = vmatpush1.msra.mxu0 %v251
    %762 = vmatprep.subr.mxu0 0.0
    %763 = vmatpush1.msra.mxu0 %v252
    %764 = vmatprep.subr.mxu0 0.0
    %765 = vmatpush1.msra.mxu0 %v253
    %766 = vmatprep.subr.mxu0 0.0
    %767 = vmatpush1.msra.mxu0 0.0
    %768 = vmatprep.subr.mxu0 0.0
    %769 = vmatpush1.msra.mxu0 0.0
    %770 = vmatprep.subr.mxu0 0.0
    %771 = vmatpush1.msra.mxu0 0.0
    %772 = vmatprep.subr.mxu0 0.0
    %773 = vmatpush1.msra.mxu0 0.0
    %774 = vmatprep.subr.mxu0 0.0
    %775 = vmatpush1.msra.mxu0 0.0
    %776 = vmatprep.subr.mxu0 0.0
    %777 = vmatpush1.msra.mxu0 0.0
    %778 = vmatprep.subr.mxu0 0.0
    %779 = vmatpush1.msra.mxu0 0.0
    %780 = vmatprep.subr.mxu0 0.0
    %781 = vmatpush1.msra.mxu0 0.0
    %782 = vmatprep.subr.mxu0 0.0
    %783 = vmatpush1.msra.mxu0 0.0
    %784 = vmatprep.subr.mxu0 0.0
    %785 = vmatpush1.msra.mxu0 0.0
    %786 = vmatprep.subr.mxu0 0.0
    %787 = vmatpush1.msra.mxu0 0.0
    %788 = vmatprep.subr.mxu0 0.0
    %789 = vmatpush1.msra.mxu0 0.0
    %790 = vmatprep.subr.mxu0 0.0
    %791 = vmatpush1.msra.mxu0 0.0
    %792 = vmatprep.subr.mxu0 0.0
    %793 = vmatpush1.msra.mxu0 0.0
    %794 = vmatprep.subr.mxu0 0.0
    %795 = vmatpush1.msra.mxu0 0.0
    %796 = vmatprep.subr.mxu0 0.0
    %797 = vmatpush1.msra.mxu0 0.0
    %798 = vmatprep.subr.mxu0 0.0
    %799 = vmatpush1.msra.mxu0 0.0
    %800 = vmatprep.subr.mxu0 0.0
    %801 = vmatpush1.msra.mxu0 0.0
    %802 = vmatprep.subr.mxu0 0.0
    %803 = vmatpush1.msra.mxu0 0.0
    %804 = vmatprep.subr.mxu0 0.0
    %805 = vmatpush1.msra.mxu0 0.0
    %806 = vmatprep.subr.mxu0 0.0
    %807 = vmatpush1.msra.mxu0 0.0
    %808 = vmatprep.subr.mxu0 0.0
    %809 = vmatpush1.msra.mxu0 0.0
    %810 = vmatprep.subr.mxu0 0.0
    %811 = vmatpush1.msra.mxu0 0.0
    %812 = vmatprep.subr.mxu0 0.0
    %813 = vmatpush1.msra.mxu0 0.0
    %814 = vmatprep.subr.mxu0 0.0
    %815 = vmatpush1.msra.mxu0 0.0
    %816 = vmatprep.subr.mxu0 0.0
    %817 = vmatpush1.msra.mxu0 0.0
    %818 = vmatprep.subr.mxu0 0.0
    %819 = vmatpush1.msra.mxu0 0.0
    %820 = vmatprep.subr.mxu0 0.0
    %821 = vmatpush1.msra.mxu0 0.0
    %822 = vmatprep.mubr.f32.mxu0 0.0
    %823 = vmatmul.mubr.f32.gmra.mrb[0].mxu0 %v756
    %v824 = vpop.f32.mrb[0].mxu0
    %v825 = vadd.f32 0.0, %v824
    %v826 = vpop.f32.mrb[0].mxu0
    %827 = vdwg.mxu0
    %v828 = vadd.f32 %v237, %v825
    %v829 = vxor.u32 %v828, 2147483648
    %v830 = vmul.f32 %v829, 1.442695
    %v831 = vpow.pop %v830
    %v832 = vadd.f32 %v831, 1.0
    %v833 = vrcp.pop %v832
    %v834 = vmul.f32 1.0, %v833
    %v835 = vtanh.pop %v828
    %v836 = vmul.f32 %v834, %v746
    %838 = vrot.lane.b32.xlu0 %v835, 64
    %v839 = vpop.permute.xlu0 %838
    %v841 = vmul.f32 %v834, %v839
    %843 = vrot.lane.b32.xlu0 %v841, 32
    %v844 = vpop.permute.xlu0 %843
    %v846 = vadd.f32 %v836, %v844
    %v847 = vtanh.pop %v846
    %849 = vrot.lane.b32.xlu0 %v847, 64
    %v850 = vpop.permute.xlu0 %849
    %v852 = vmul.f32 %v834, %v850
    %854 = vrot.lane.b32.xlu0 %v852, 32
    %v855 = vpop.permute.xlu0 %854
    %v856 = vsel %vm254, %v855, 0
    %858 = vmatprep.subr.mxu0 0.0
    %859 = vmatpush1.msra.mxu0 %v250
    %860 = vmatprep.subr.mxu0 0.0
    %861 = vmatpush1.msra.mxu0 %v251
    %862 = vmatprep.subr.mxu0 0.0
    %863 = vmatpush1.msra.mxu0 %v252
    %864 = vmatprep.subr.mxu0 0.0
    %865 = vmatpush1.msra.mxu0 %v253
    %866 = vmatprep.subr.mxu0 0.0
    %867 = vmatpush1.msra.mxu0 0.0
    %868 = vmatprep.subr.mxu0 0.0
    %869 = vmatpush1.msra.mxu0 0.0
    %870 = vmatprep.subr.mxu0 0.0
    %871 = vmatpush1.msra.mxu0 0.0
    %872 = vmatprep.subr.mxu0 0.0
    %873 = vmatpush1.msra.mxu0 0.0
    %874 = vmatprep.subr.mxu0 0.0
    %875 = vmatpush1.msra.mxu0 0.0
    %876 = vmatprep.subr.mxu0 0.0
    %877 = vmatpush1.msra.mxu0 0.0
    %878 = vmatprep.subr.mxu0 0.0
    %879 = vmatpush1.msra.mxu0 0.0
    %880 = vmatprep.subr.mxu0 0.0
    %881 = vmatpush1.msra.mxu0 0.0
    %882 = vmatprep.subr.mxu0 0.0
    %883 = vmatpush1.msra.mxu0 0.0
    %884 = vmatprep.subr.mxu0 0.0
    %885 = vmatpush1.msra.mxu0 0.0
    %886 = vmatprep.subr.mxu0 0.0
    %887 = vmatpush1.msra.mxu0 0.0
    %888 = vmatprep.subr.mxu0 0.0
    %889 = vmatpush1.msra.mxu0 0.0
    %890 = vmatprep.subr.mxu0 0.0
    %891 = vmatpush1.msra.mxu0 0.0
    %892 = vmatprep.subr.mxu0 0.0
    %893 = vmatpush1.msra.mxu0 0.0
    %894 = vmatprep.subr.mxu0 0.0
    %895 = vmatpush1.msra.mxu0 0.0
    %896 = vmatprep.subr.mxu0 0.0
    %897 = vmatpush1.msra.mxu0 0.0
    %898 = vmatprep.subr.mxu0 0.0
    %899 = vmatpush1.msra.mxu0 0.0
    %900 = vmatprep.subr.mxu0 0.0
    %901 = vmatpush1.msra.mxu0 0.0
    %902 = vmatprep.subr.mxu0 0.0
    %903 = vmatpush1.msra.mxu0 0.0
    %904 = vmatprep.subr.mxu0 0.0
    %905 = vmatpush1.msra.mxu0 0.0
    %906 = vmatprep.subr.mxu0 0.0
    %907 = vmatpush1.msra.mxu0 0.0
    %908 = vmatprep.subr.mxu0 0.0
    %909 = vmatpush1.msra.mxu0 0.0
    %910 = vmatprep.subr.mxu0 0.0
    %911 = vmatpush1.msra.mxu0 0.0
    %912 = vmatprep.subr.mxu0 0.0
    %913 = vmatpush1.msra.mxu0 0.0
    %914 = vmatprep.subr.mxu0 0.0
    %915 = vmatpush1.msra.mxu0 0.0
    %916 = vmatprep.subr.mxu0 0.0
    %917 = vmatpush1.msra.mxu0 0.0
    %918 = vmatprep.subr.mxu0 0.0
    %919 = vmatpush1.msra.mxu0 0.0
    %920 = vmatprep.subr.mxu0 0.0
    %921 = vmatpush1.msra.mxu0 0.0
    %922 = vmatprep.mubr.f32.mxu0 0.0
    %923 = vmatmul.mubr.f32.gmra.mrb[0].mxu0 %v856
    %v924 = vpop.f32.mrb[0].mxu0
    %v925 = vadd.f32 0.0, %v924
    %v926 = vpop.f32.mrb[0].mxu0
    %927 = vdwg.mxu0
    %v928 = vadd.f32 %v242, %v925
    %v929 = vxor.u32 %v928, 2147483648
    %v930 = vmul.f32 %v929, 1.442695
    %v931 = vpow.pop %v930
    %v932 = vadd.f32 %v931, 1.0
    %v933 = vrcp.pop %v932
    %v934 = vmul.f32 1.0, %v933
    %v935 = vtanh.pop %v928
    %v936 = vmul.f32 %v934, %v846
    %938 = vrot.lane.b32.xlu0 %v935, 64
    %v939 = vpop.permute.xlu0 %938
    %v941 = vmul.f32 %v934, %v939
    %943 = vrot.lane.b32.xlu0 %v941, 32
    %v944 = vpop.permute.xlu0 %943
    %v946 = vadd.f32 %v936, %v944
    %v947 = vtanh.pop %v946
    %949 = vrot.lane.b32.xlu0 %v947, 64
    %v950 = vpop.permute.xlu0 %949
    %v952 = vmul.f32 %v934, %v950
    %954 = vrot.lane.b32.xlu0 %v952, 32
    %v955 = vpop.permute.xlu0 %954
    %v956 = vsel %vm254, %v955, 0
    %958 = vmatprep.subr.mxu0 0.0
    %959 = vmatpush1.msra.mxu0 %v250
    %960 = vmatprep.subr.mxu0 0.0
    %961 = vmatpush1.msra.mxu0 %v251
    %962 = vmatprep.subr.mxu0 0.0
    %963 = vmatpush1.msra.mxu0 %v252
    %964 = vmatprep.subr.mxu0 0.0
    %965 = vmatpush1.msra.mxu0 %v253
    %966 = vmatprep.subr.mxu0 0.0
    %967 = vmatpush1.msra.mxu0 0.0
    %968 = vmatprep.subr.mxu0 0.0
    %969 = vmatpush1.msra.mxu0 0.0
    %970 = vmatprep.subr.mxu0 0.0
    %971 = vmatpush1.msra.mxu0 0.0
    %972 = vmatprep.subr.mxu0 0.0
    %973 = vmatpush1.msra.mxu0 0.0
    %974 = vmatprep.subr.mxu0 0.0
    %975 = vmatpush1.msra.mxu0 0.0
    %976 = vmatprep.subr.mxu0 0.0
    %977 = vmatpush1.msra.mxu0 0.0
    %978 = vmatprep.subr.mxu0 0.0
    %979 = vmatpush1.msra.mxu0 0.0
    %980 = vmatprep.subr.mxu0 0.0
    %981 = vmatpush1.msra.mxu0 0.0
    %982 = vmatprep.subr.mxu0 0.0
    %983 = vmatpush1.msra.mxu0 0.0
    %984 = vmatprep.subr.mxu0 0.0
    %985 = vmatpush1.msra.mxu0 0.0
    %986 = vmatprep.subr.mxu0 0.0
    %987 = vmatpush1.msra.mxu0 0.0
    %988 = vmatprep.subr.mxu0 0.0
    %989 = vmatpush1.msra.mxu0 0.0
    %990 = vmatprep.subr.mxu0 0.0
    %991 = vmatpush1.msra.mxu0 0.0
    %992 = vmatprep.subr.mxu0 0.0
    %993 = vmatpush1.msra.mxu0 0.0
    %994 = vmatprep.subr.mxu0 0.0
    %995 = vmatpush1.msra.mxu0 0.0
    %996 = vmatprep.subr.mxu0 0.0
    %997 = vmatpush1.msra.mxu0 0.0
    %998 = vmatprep.subr.mxu0 0.0
    %999 = vmatpush1.msra.mxu0 0.0
    %1000 = vmatprep.subr.mxu0 0.0
    %1001 = vmatpush1.msra.mxu0 0.0
    %1002 = vmatprep.subr.mxu0 0.0
    %1003 = vmatpush1.msra.mxu0 0.0
    %1004 = vmatprep.subr.mxu0 0.0
    %1005 = vmatpush1.msra.mxu0 0.0
    %1006 = vmatprep.subr.mxu0 0.0
    %1007 = vmatpush1.msra.mxu0 0.0
    %1008 = vmatprep.subr.mxu0 0.0
    %1009 = vmatpush1.msra.mxu0 0.0
    %1010 = vmatprep.subr.mxu0 0.0
    %1011 = vmatpush1.msra.mxu0 0.0
    %1012 = vmatprep.subr.mxu0 0.0
    %1013 = vmatpush1.msra.mxu0 0.0
    %1014 = vmatprep.subr.mxu0 0.0
    %1015 = vmatpush1.msra.mxu0 0.0
    %1016 = vmatprep.subr.mxu0 0.0
    %1017 = vmatpush1.msra.mxu0 0.0
    %1018 = vmatprep.subr.mxu0 0.0
    %1019 = vmatpush1.msra.mxu0 0.0
    %1020 = vmatprep.subr.mxu0 0.0
    %1021 = vmatpush1.msra.mxu0 0.0
    %1022 = vmatprep.mubr.f32.mxu0 0.0
    %1023 = vmatmul.mubr.f32.gmra.mrb[0].mxu0 %v956
    %v1024 = vpop.f32.mrb[0].mxu0
    %v1025 = vadd.f32 0.0, %v1024
    %v1026 = vpop.f32.mrb[0].mxu0
    %1027 = vdwg.mxu0
    %v1028 = vadd.f32 %v247, %v1025
    %v1029 = vxor.u32 %v1028, 2147483648
    %v1030 = vmul.f32 %v1029, 1.442695
    %v1031 = vpow.pop %v1030
    %v1032 = vadd.f32 %v1031, 1.0
    %v1033 = vrcp.pop %v1032
    %v1034 = vmul.f32 1.0, %v1033
    %v1035 = vtanh.pop %v1028
    %v1036 = vmul.f32 %v1034, %v946
    %1038 = vrot.lane.b32.xlu0 %v1035, 64
    %v1039 = vpop.permute.xlu0 %1038
    %v1041 = vmul.f32 %v1034, %v1039
    %1043 = vrot.lane.b32.xlu0 %v1041, 32
    %v1044 = vpop.permute.xlu0 %1043
    %v1046 = vadd.f32 %v1036, %v1044
    %v1047 = vtanh.pop %v1046
    %1049 = vrot.lane.b32.xlu0 %v1047, 64
    %v1050 = vpop.permute.xlu0 %1049
    %v1052 = vmul.f32 %v1034, %v1050
    %v1053 = vld [vmem:[%s4] sm:$0xff]
    %v1054 = vld [vmem:[%s4 + $0x8] sm:$0xff]
    %v1055 = vld [vmem:[%s4 + $0x10] sm:$0xff]
    %v1056 = vld [vmem:[%s4 + $0x18] sm:$0xff]
    %v1057 = vld [vmem:[%s6] sm:$0x1]
    %v1059 = vlaneseq
    %v1060 = vshrl.u32 %v1059, 7
    %v1061 = vsub.s32 0, %v1060
    %v1062 = vrot.slane %v1057, %v1061
    %1065 = vrot.lane.b32.xlu0 %v1052, 32
    %v1066 = vpop.permute.xlu0 %1065
    %v1067 = vsel %vm254, %v1066, 0
    %1069 = vmatprep.subr.mxu0 0.0
    %1070 = vmatpush1.msra.mxu0 %v1053
    %1071 = vmatprep.subr.mxu0 0.0
    %1072 = vmatpush1.msra.mxu0 %v1054
    %1073 = vmatprep.subr.mxu0 0.0
    %1074 = vmatpush1.msra.mxu0 %v1055
    %1075 = vmatprep.subr.mxu0 0.0
    %1076 = vmatpush1.msra.mxu0 %v1056
    %1077 = vmatprep.subr.mxu0 0.0
    %1078 = vmatpush1.msra.mxu0 0.0
    %1079 = vmatprep.subr.mxu0 0.0
    %1080 = vmatpush1.msra.mxu0 0.0
    %1081 = vmatprep.subr.mxu0 0.0
    %1082 = vmatpush1.msra.mxu0 0.0
    %1083 = vmatprep.subr.mxu0 0.0
    %1084 = vmatpush1.msra.mxu0 0.0
    %1085 = vmatprep.subr.mxu0 0.0
    %1086 = vmatpush1.msra.mxu0 0.0
    %1087 = vmatprep.subr.mxu0 0.0
    %1088 = vmatpush1.msra.mxu0 0.0
    %1089 = vmatprep.subr.mxu0 0.0
    %1090 = vmatpush1.msra.mxu0 0.0
    %1091 = vmatprep.subr.mxu0 0.0
    %1092 = vmatpush1.msra.mxu0 0.0
    %1093 = vmatprep.subr.mxu0 0.0
    %1094 = vmatpush1.msra.mxu0 0.0
    %1095 = vmatprep.subr.mxu0 0.0
    %1096 = vmatpush1.msra.mxu0 0.0
    %1097 = vmatprep.subr.mxu0 0.0
    %1098 = vmatpush1.msra.mxu0 0.0
    %1099 = vmatprep.subr.mxu0 0.0
    %1100 = vmatpush1.msra.mxu0 0.0
    %1101 = vmatprep.subr.mxu0 0.0
    %1102 = vmatpush1.msra.mxu0 0.0
    %1103 = vmatprep.subr.mxu0 0.0
    %1104 = vmatpush1.msra.mxu0 0.0
    %1105 = vmatprep.subr.mxu0 0.0
    %1106 = vmatpush1.msra.mxu0 0.0
    %1107 = vmatprep.subr.mxu0 0.0
    %1108 = vmatpush1.msra.mxu0 0.0
    %1109 = vmatprep.subr.mxu0 0.0
    %1110 = vmatpush1.msra.mxu0 0.0
    %1111 = vmatprep.subr.mxu0 0.0
    %1112 = vmatpush1.msra.mxu0 0.0
    %1113 = vmatprep.subr.mxu0 0.0
    %1114 = vmatpush1.msra.mxu0 0.0
    %1115 = vmatprep.subr.mxu0 0.0
    %1116 = vmatpush1.msra.mxu0 0.0
    %1117 = vmatprep.subr.mxu0 0.0
    %1118 = vmatpush1.msra.mxu0 0.0
    %1119 = vmatprep.subr.mxu0 0.0
    %1120 = vmatpush1.msra.mxu0 0.0
    %1121 = vmatprep.subr.mxu0 0.0
    %1122 = vmatpush1.msra.mxu0 0.0
    %1123 = vmatprep.subr.mxu0 0.0
    %1124 = vmatpush1.msra.mxu0 0.0
    %1125 = vmatprep.subr.mxu0 0.0
    %1126 = vmatpush1.msra.mxu0 0.0
    %1127 = vmatprep.subr.mxu0 0.0
    %1128 = vmatpush1.msra.mxu0 0.0
    %1129 = vmatprep.subr.mxu0 0.0
    %1130 = vmatpush1.msra.mxu0 0.0
    %1131 = vmatprep.subr.mxu0 0.0
    %1132 = vmatpush1.msra.mxu0 0.0
    %1133 = vmatprep.mubr.f32.mxu0 0.0
    %1134 = vmatmul.mubr.f32.gmra.mrb[0].mxu0 %v356
    %v1135 = vpop.f32.mrb[0].mxu0
    %v1136 = vadd.f32 %v1062, %v1135
    %v1137 = vpop.f32.mrb[0].mxu0
    %1138 = vmatprep.mubr.f32.mxu0 0.0
    %1139 = vmatmul.mubr.f32.gmra.mrb[0].mxu0 %v456
    %v1140 = vpop.f32.mrb[0].mxu0
    %v1141 = vadd.f32 %v1062, %v1140
    %v1142 = vpop.f32.mrb[0].mxu0
    %1143 = vmatprep.mubr.f32.mxu0 0.0
    %1144 = vmatmul.mubr.f32.gmra.mrb[0].mxu0 %v556
    %v1145 = vpop.f32.mrb[0].mxu0
    %v1146 = vadd.f32 %v1062, %v1145
    %v1147 = vpop.f32.mrb[0].mxu0
    %1148 = vmatprep.mubr.f32.mxu0 0.0
    %1149 = vmatmul.mubr.f32.gmra.mrb[0].mxu0 %v656
    %v1150 = vpop.f32.mrb[0].mxu0
    %v1151 = vadd.f32 %v1062, %v1150
    %v1152 = vpop.f32.mrb[0].mxu0
    %1153 = vmatprep.mubr.f32.mxu0 0.0
    %1154 = vmatmul.mubr.f32.gmra.mrb[0].mxu0 %v756
    %v1155 = vpop.f32.mrb[0].mxu0
    %v1156 = vadd.f32 %v1062, %v1155
    %v1157 = vpop.f32.mrb[0].mxu0
    %1158 = vmatprep.mubr.f32.mxu0 0.0
    %1159 = vmatmul.mubr.f32.gmra.mrb[0].mxu0 %v856
    %v1160 = vpop.f32.mrb[0].mxu0
    %v1161 = vadd.f32 %v1062, %v1160
    %v1162 = vpop.f32.mrb[0].mxu0
    %1163 = vmatprep.mubr.f32.mxu0 0.0
    %1164 = vmatmul.mubr.f32.gmra.mrb[0].mxu0 %v956
    %v1165 = vpop.f32.mrb[0].mxu0
    %v1166 = vadd.f32 %v1062, %v1165
    %v1167 = vpop.f32.mrb[0].mxu0
    %1168 = vmatprep.mubr.f32.mxu0 0.0
    %1169 = vmatmul.mubr.f32.gmra.mrb[0].mxu0 %v1067
    %v1170 = vpop.f32.mrb[0].mxu0
    %v1171 = vadd.f32 %v1062, %v1170
    %v1172 = vpop.f32.mrb[0].mxu0
    %1173 = vdwg.mxu0
    %v1174 = vld [vmem:[%s5] sm:$0xff]
    %v1175 = vld [vmem:[%s5 + $0x8] sm:$0xff]
    %v1176 = vld [vmem:[%s5 + $0x10] sm:$0xff]
    %v1177 = vld [vmem:[%s5 + $0x18] sm:$0xff]
    %1178 = vmatprep.subr.mxu0 0.0
    %1179 = vmatpush1.msra.mxu0 %v1174
    %1180 = vmatprep.subr.mxu0 0.0
    %1181 = vmatpush1.msra.mxu0 %v1175
    %1182 = vmatprep.subr.mxu0 0.0
    %1183 = vmatpush1.msra.mxu0 %v1176
    %1184 = vmatprep.subr.mxu0 0.0
    %1185 = vmatpush1.msra.mxu0 %v1177
    %1186 = vmatprep.subr.mxu0 0.0
    %1187 = vmatpush1.msra.mxu0 0.0
    %1188 = vmatprep.subr.mxu0 0.0
    %1189 = vmatpush1.msra.mxu0 0.0
    %1190 = vmatprep.subr.mxu0 0.0
    %1191 = vmatpush1.msra.mxu0 0.0
    %1192 = vmatprep.subr.mxu0 0.0
    %1193 = vmatpush1.msra.mxu0 0.0
    %1194 = vmatprep.subr.mxu0 0.0
    %1195 = vmatpush1.msra.mxu0 0.0
    %1196 = vmatprep.subr.mxu0 0.0
    %1197 = vmatpush1.msra.mxu0 0.0
    %1198 = vmatprep.subr.mxu0 0.0
    %1199 = vmatpush1.msra.mxu0 0.0
    %1200 = vmatprep.subr.mxu0 0.0
    %1201 = vmatpush1.msra.mxu0 0.0
    %1202 = vmatprep.subr.mxu0 0.0
    %1203 = vmatpush1.msra.mxu0 0.0
    %1204 = vmatprep.subr.mxu0 0.0
    %1205 = vmatpush1.msra.mxu0 0.0
    %1206 = vmatprep.subr.mxu0 0.0
    %1207 = vmatpush1.msra.mxu0 0.0
    %1208 = vmatprep.subr.mxu0 0.0
    %1209 = vmatpush1.msra.mxu0 0.0
    %1210 = vmatprep.subr.mxu0 0.0
    %1211 = vmatpush1.msra.mxu0 0.0
    %1212 = vmatprep.subr.mxu0 0.0
    %1213 = vmatpush1.msra.mxu0 0.0
    %1214 = vmatprep.subr.mxu0 0.0
    %1215 = vmatpush1.msra.mxu0 0.0
    %1216 = vmatprep.subr.mxu0 0.0
    %1217 = vmatpush1.msra.mxu0 0.0
    %1218 = vmatprep.subr.mxu0 0.0
    %1219 = vmatpush1.msra.mxu0 0.0
    %1220 = vmatprep.subr.mxu0 0.0
    %1221 = vmatpush1.msra.mxu0 0.0
    %1222 = vmatprep.subr.mxu0 0.0
    %1223 = vmatpush1.msra.mxu0 0.0
    %1224 = vmatprep.subr.mxu0 0.0
    %1225 = vmatpush1.msra.mxu0 0.0
    %1226 = vmatprep.subr.mxu0 0.0
    %1227 = vmatpush1.msra.mxu0 0.0
    %1228 = vmatprep.subr.mxu0 0.0
    %1229 = vmatpush1.msra.mxu0 0.0
    %1230 = vmatprep.subr.mxu0 0.0
    %1231 = vmatpush1.msra.mxu0 0.0
    %1232 = vmatprep.subr.mxu0 0.0
    %1233 = vmatpush1.msra.mxu0 0.0
    %1234 = vmatprep.subr.mxu0 0.0
    %1235 = vmatpush1.msra.mxu0 0.0
    %1236 = vmatprep.subr.mxu0 0.0
    %1237 = vmatpush1.msra.mxu0 0.0
    %1238 = vmatprep.subr.mxu0 0.0
    %1239 = vmatpush1.msra.mxu0 0.0
    %1240 = vmatprep.subr.mxu0 0.0
    %1241 = vmatpush1.msra.mxu0 0.0
    %1242 = vmatprep.mubr.f32.mxu0 0.0
    %1243 = vmatmul.mubr.f32.gmra.mrb[0].mxu0 %v256
    %v1244 = vpop.f32.mrb[0].mxu0
    %v1245 = vadd.f32 0.0, %v1244
    %v1246 = vpop.f32.mrb[0].mxu0
    %1247 = vdwg.mxu0
    %v1248 = vadd.f32 %v1136, %v1245
    %v1249 = vxor.u32 %v1248, 2147483648
    %v1250 = vmul.f32 %v1249, 1.442695
    %v1251 = vpow.pop %v1250
    %v1252 = vadd.f32 %v1251, 1.0
    %v1253 = vrcp.pop %v1252
    %v1254 = vmul.f32 1.0, %v1253
    %v1255 = vtanh.pop %v1248
    %v1256 = vmul.f32 %v1254, 0.0
    %1258 = vrot.lane.b32.xlu0 %v1255, 64
    %v1259 = vpop.permute.xlu0 %1258
    %v1261 = vmul.f32 %v1254, %v1259
    %1263 = vrot.lane.b32.xlu0 %v1261, 32
    %v1264 = vpop.permute.xlu0 %1263
    %v1266 = vadd.f32 %v1256, %v1264
    %v1267 = vtanh.pop %v1266
    %1269 = vrot.lane.b32.xlu0 %v1267, 64
    %v1270 = vpop.permute.xlu0 %1269
    %v1272 = vmul.f32 %v1254, %v1270
    %1274 = vrot.lane.b32.xlu0 %v1272, 32
    %v1275 = vpop.permute.xlu0 %1274
    %v1276 = vsel %vm254, %v1275, 0
    %1278 = vmatprep.subr.mxu0 0.0
    %1279 = vmatpush1.msra.mxu0 %v1174
    %1280 = vmatprep.subr.mxu0 0.0
    %1281 = vmatpush1.msra.mxu0 %v1175
    %1282 = vmatprep.subr.mxu0 0.0
    %1283 = vmatpush1.msra.mxu0 %v1176
    %1284 = vmatprep.subr.mxu0 0.0
    %1285 = vmatpush1.msra.mxu0 %v1177
    %1286 = vmatprep.subr.mxu0 0.0
    %1287 = vmatpush1.msra.mxu0 0.0
    %1288 = vmatprep.subr.mxu0 0.0
    %1289 = vmatpush1.msra.mxu0 0.0
    %1290 = vmatprep.subr.mxu0 0.0
    %1291 = vmatpush1.msra.mxu0 0.0
    %1292 = vmatprep.subr.mxu0 0.0
    %1293 = vmatpush1.msra.mxu0 0.0
    %1294 = vmatprep.subr.mxu0 0.0
    %1295 = vmatpush1.msra.mxu0 0.0
    %1296 = vmatprep.subr.mxu0 0.0
    %1297 = vmatpush1.msra.mxu0 0.0
    %1298 = vmatprep.subr.mxu0 0.0
    %1299 = vmatpush1.msra.mxu0 0.0
    %1300 = vmatprep.subr.mxu0 0.0
    %1301 = vmatpush1.msra.mxu0 0.0
    %1302 = vmatprep.subr.mxu0 0.0
    %1303 = vmatpush1.msra.mxu0 0.0
    %1304 = vmatprep.subr.mxu0 0.0
    %1305 = vmatpush1.msra.mxu0 0.0
    %1306 = vmatprep.subr.mxu0 0.0
    %1307 = vmatpush1.msra.mxu0 0.0
    %1308 = vmatprep.subr.mxu0 0.0
    %1309 = vmatpush1.msra.mxu0 0.0
    %1310 = vmatprep.subr.mxu0 0.0
    %1311 = vmatpush1.msra.mxu0 0.0
    %1312 = vmatprep.subr.mxu0 0.0
    %1313 = vmatpush1.msra.mxu0 0.0
    %1314 = vmatprep.subr.mxu0 0.0
    %1315 = vmatpush1.msra.mxu0 0.0
    %1316 = vmatprep.subr.mxu0 0.0
    %1317 = vmatpush1.msra.mxu0 0.0
    %1318 = vmatprep.subr.mxu0 0.0
    %1319 = vmatpush1.msra.mxu0 0.0
    %1320 = vmatprep.subr.mxu0 0.0
    %1321 = vmatpush1.msra.mxu0 0.0
    %1322 = vmatprep.subr.mxu0 0.0
    %1323 = vmatpush1.msra.mxu0 0.0
    %1324 = vmatprep.subr.mxu0 0.0
    %1325 = vmatpush1.msra.mxu0 0.0
    %1326 = vmatprep.subr.mxu0 0.0
    %1327 = vmatpush1.msra.mxu0 0.0
    %1328 = vmatprep.subr.mxu0 0.0
    %1329 = vmatpush1.msra.mxu0 0.0
    %1330 = vmatprep.subr.mxu0 0.0
    %1331 = vmatpush1.msra.mxu0 0.0
    %1332 = vmatprep.subr.mxu0 0.0
    %1333 = vmatpush1.msra.mxu0 0.0
    %1334 = vmatprep.subr.mxu0 0.0
    %1335 = vmatpush1.msra.mxu0 0.0
    %1336 = vmatprep.subr.mxu0 0.0
    %1337 = vmatpush1.msra.mxu0 0.0
    %1338 = vmatprep.subr.mxu0 0.0
    %1339 = vmatpush1.msra.mxu0 0.0
    %1340 = vmatprep.subr.mxu0 0.0
    %1341 = vmatpush1.msra.mxu0 0.0
    %1342 = vmatprep.mubr.f32.mxu0 0.0
    %1343 = vmatmul.mubr.f32.gmra.mrb[0].mxu0 %v1276
    %v1344 = vpop.f32.mrb[0].mxu0
    %v1345 = vadd.f32 0.0, %v1344
    %v1346 = vpop.f32.mrb[0].mxu0
    %1347 = vdwg.mxu0
    %v1348 = vadd.f32 %v1141, %v1345
    %v1349 = vxor.u32 %v1348, 2147483648
    %v1350 = vmul.f32 %v1349, 1.442695
    %v1351 = vpow.pop %v1350
    %v1352 = vadd.f32 %v1351, 1.0
    %v1353 = vrcp.pop %v1352
    %v1354 = vmul.f32 1.0, %v1353
    %v1355 = vtanh.pop %v1348
    %v1356 = vmul.f32 %v1354, %v1266
    %1358 = vrot.lane.b32.xlu0 %v1355, 64
    %v1359 = vpop.permute.xlu0 %1358
    %v1361 = vmul.f32 %v1354, %v1359
    %1363 = vrot.lane.b32.xlu0 %v1361, 32
    %v1364 = vpop.permute.xlu0 %1363
    %v1366 = vadd.f32 %v1356, %v1364
    %v1367 = vtanh.pop %v1366
    %1369 = vrot.lane.b32.xlu0 %v1367, 64
    %v1370 = vpop.permute.xlu0 %1369
    %v1372 = vmul.f32 %v1354, %v1370
    %1374 = vrot.lane.b32.xlu0 %v1372, 32
    %v1375 = vpop.permute.xlu0 %1374
    %v1376 = vsel %vm254, %v1375, 0
    %1378 = vmatprep.subr.mxu0 0.0
    %1379 = vmatpush1.msra.mxu0 %v1174
    %1380 = vmatprep.subr.mxu0 0.0
    %1381 = vmatpush1.msra.mxu0 %v1175
    %1382 = vmatprep.subr.mxu0 0.0
    %1383 = vmatpush1.msra.mxu0 %v1176
    %1384 = vmatprep.subr.mxu0 0.0
    %1385 = vmatpush1.msra.mxu0 %v1177
    %1386 = vmatprep.subr.mxu0 0.0
    %1387 = vmatpush1.msra.mxu0 0.0
    %1388 = vmatprep.subr.mxu0 0.0
    %1389 = vmatpush1.msra.mxu0 0.0
    %1390 = vmatprep.subr.mxu0 0.0
    %1391 = vmatpush1.msra.mxu0 0.0
    %1392 = vmatprep.subr.mxu0 0.0
    %1393 = vmatpush1.msra.mxu0 0.0
    %1394 = vmatprep.subr.mxu0 0.0
    %1395 = vmatpush1.msra.mxu0 0.0
    %1396 = vmatprep.subr.mxu0 0.0
    %1397 = vmatpush1.msra.mxu0 0.0
    %1398 = vmatprep.subr.mxu0 0.0
    %1399 = vmatpush1.msra.mxu0 0.0
    %1400 = vmatprep.subr.mxu0 0.0
    %1401 = vmatpush1.msra.mxu0 0.0
    %1402 = vmatprep.subr.mxu0 0.0
    %1403 = vmatpush1.msra.mxu0 0.0
    %1404 = vmatprep.subr.mxu0 0.0
    %1405 = vmatpush1.msra.mxu0 0.0
    %1406 = vmatprep.subr.mxu0 0.0
    %1407 = vmatpush1.msra.mxu0 0.0
    %1408 = vmatprep.subr.mxu0 0.0
    %1409 = vmatpush1.msra.mxu0 0.0
    %1410 = vmatprep.subr.mxu0 0.0
    %1411 = vmatpush1.msra.mxu0 0.0
    %1412 = vmatprep.subr.mxu0 0.0
    %1413 = vmatpush1.msra.mxu0 0.0
    %1414 = vmatprep.subr.mxu0 0.0
    %1415 = vmatpush1.msra.mxu0 0.0
    %1416 = vmatprep.subr.mxu0 0.0
    %1417 = vmatpush1.msra.mxu0 0.0
    %1418 = vmatprep.subr.mxu0 0.0
    %1419 = vmatpush1.msra.mxu0 0.0
    %1420 = vmatprep.subr.mxu0 0.0
    %1421 = vmatpush1.msra.mxu0 0.0
    %1422 = vmatprep.subr.mxu0 0.0
    %1423 = vmatpush1.msra.mxu0 0.0
    %1424 = vmatprep.subr.mxu0 0.0
    %1425 = vmatpush1.msra.mxu0 0.0
    %1426 = vmatprep.subr.mxu0 0.0
    %1427 = vmatpush1.msra.mxu0 0.0
    %1428 = vmatprep.subr.mxu0 0.0
    %1429 = vmatpush1.msra.mxu0 0.0
    %1430 = vmatprep.subr.mxu0 0.0
    %1431 = vmatpush1.msra.mxu0 0.0
    %1432 = vmatprep.subr.mxu0 0.0
    %1433 = vmatpush1.msra.mxu0 0.0
    %1434 = vmatprep.subr.mxu0 0.0
    %1435 = vmatpush1.msra.mxu0 0.0
    %1436 = vmatprep.subr.mxu0 0.0
    %1437 = vmatpush1.msra.mxu0 0.0
    %1438 = vmatprep.subr.mxu0 0.0
    %1439 = vmatpush1.msra.mxu0 0.0
    %1440 = vmatprep.subr.mxu0 0.0
    %1441 = vmatpush1.msra.mxu0 0.0
    %1442 = vmatprep.mubr.f32.mxu0 0.0
    %1443 = vmatmul.mubr.f32.gmra.mrb[0].mxu0 %v1376
    %v1444 = vpop.f32.mrb[0].mxu0
    %v1445 = vadd.f32 0.0, %v1444
    %v1446 = vpop.f32.mrb[0].mxu0
    %1447 = vdwg.mxu0
    %v1448 = vadd.f32 %v1146, %v1445
    %v1449 = vxor.u32 %v1448, 2147483648
    %v1450 = vmul.f32 %v1449, 1.442695
    %v1451 = vpow.pop %v1450
    %v1452 = vadd.f32 %v1451, 1.0
    %v1453 = vrcp.pop %v1452
    %v1454 = vmul.f32 1.0, %v1453
    %v1455 = vtanh.pop %v1448
    %v1456 = vmul.f32 %v1454, %v1366
    %1458 = vrot.lane.b32.xlu0 %v1455, 64
    %v1459 = vpop.permute.xlu0 %1458
    %v1461 = vmul.f32 %v1454, %v1459
    %1463 = vrot.lane.b32.xlu0 %v1461, 32
    %v1464 = vpop.permute.xlu0 %1463
    %v1466 = vadd.f32 %v1456, %v1464
    %v1467 = vtanh.pop %v1466
    %1469 = vrot.lane.b32.xlu0 %v1467, 64
    %v1470 = vpop.permute.xlu0 %1469
    %v1472 = vmul.f32 %v1454, %v1470
    %1474 = vrot.lane.b32.xlu0 %v1472, 32
    %v1475 = vpop.permute.xlu0 %1474
    %v1476 = vsel %vm254, %v1475, 0
    %1478 = vmatprep.subr.mxu0 0.0
    %1479 = vmatpush1.msra.mxu0 %v1174
    %1480 = vmatprep.subr.mxu0 0.0
    %1481 = vmatpush1.msra.mxu0 %v1175
    %1482 = vmatprep.subr.mxu0 0.0
    %1483 = vmatpush1.msra.mxu0 %v1176
    %1484 = vmatprep.subr.mxu0 0.0
    %1485 = vmatpush1.msra.mxu0 %v1177
    %1486 = vmatprep.subr.mxu0 0.0
    %1487 = vmatpush1.msra.mxu0 0.0
    %1488 = vmatprep.subr.mxu0 0.0
    %1489 = vmatpush1.msra.mxu0 0.0
    %1490 = vmatprep.subr.mxu0 0.0
    %1491 = vmatpush1.msra.mxu0 0.0
    %1492 = vmatprep.subr.mxu0 0.0
    %1493 = vmatpush1.msra.mxu0 0.0
    %1494 = vmatprep.subr.mxu0 0.0
    %1495 = vmatpush1.msra.mxu0 0.0
    %1496 = vmatprep.subr.mxu0 0.0
    %1497 = vmatpush1.msra.mxu0 0.0
    %1498 = vmatprep.subr.mxu0 0.0
    %1499 = vmatpush1.msra.mxu0 0.0
    %1500 = vmatprep.subr.mxu0 0.0
    %1501 = vmatpush1.msra.mxu0 0.0
    %1502 = vmatprep.subr.mxu0 0.0
    %1503 = vmatpush1.msra.mxu0 0.0
    %1504 = vmatprep.subr.mxu0 0.0
    %1505 = vmatpush1.msra.mxu0 0.0
    %1506 = vmatprep.subr.mxu0 0.0
    %1507 = vmatpush1.msra.mxu0 0.0
    %1508 = vmatprep.subr.mxu0 0.0
    %1509 = vmatpush1.msra.mxu0 0.0
    %1510 = vmatprep.subr.mxu0 0.0
    %1511 = vmatpush1.msra.mxu0 0.0
    %1512 = vmatprep.subr.mxu0 0.0
    %1513 = vmatpush1.msra.mxu0 0.0
    %1514 = vmatprep.subr.mxu0 0.0
    %1515 = vmatpush1.msra.mxu0 0.0
    %1516 = vmatprep.subr.mxu0 0.0
    %1517 = vmatpush1.msra.mxu0 0.0
    %1518 = vmatprep.subr.mxu0 0.0
    %1519 = vmatpush1.msra.mxu0 0.0
    %1520 = vmatprep.subr.mxu0 0.0
    %1521 = vmatpush1.msra.mxu0 0.0
    %1522 = vmatprep.subr.mxu0 0.0
    %1523 = vmatpush1.msra.mxu0 0.0
    %1524 = vmatprep.subr.mxu0 0.0
    %1525 = vmatpush1.msra.mxu0 0.0
    %1526 = vmatprep.subr.mxu0 0.0
    %1527 = vmatpush1.msra.mxu0 0.0
    %1528 = vmatprep.subr.mxu0 0.0
    %1529 = vmatpush1.msra.mxu0 0.0
    %1530 = vmatprep.subr.mxu0 0.0
    %1531 = vmatpush1.msra.mxu0 0.0
    %1532 = vmatprep.subr.mxu0 0.0
    %1533 = vmatpush1.msra.mxu0 0.0
    %1534 = vmatprep.subr.mxu0 0.0
    %1535 = vmatpush1.msra.mxu0 0.0
    %1536 = vmatprep.subr.mxu0 0.0
    %1537 = vmatpush1.msra.mxu0 0.0
    %1538 = vmatprep.subr.mxu0 0.0
    %1539 = vmatpush1.msra.mxu0 0.0
    %1540 = vmatprep.subr.mxu0 0.0
    %1541 = vmatpush1.msra.mxu0 0.0
    %1542 = vmatprep.mubr.f32.mxu0 0.0
    %1543 = vmatmul.mubr.f32.gmra.mrb[0].mxu0 %v1476
    %v1544 = vpop.f32.mrb[0].mxu0
    %v1545 = vadd.f32 0.0, %v1544
    %v1546 = vpop.f32.mrb[0].mxu0
    %1547 = vdwg.mxu0
    %v1548 = vadd.f32 %v1151, %v1545
    %v1549 = vxor.u32 %v1548, 2147483648
    %v1550 = vmul.f32 %v1549, 1.442695
    %v1551 = vpow.pop %v1550
    %v1552 = vadd.f32 %v1551, 1.0
    %v1553 = vrcp.pop %v1552
    %v1554 = vmul.f32 1.0, %v1553
    %v1555 = vtanh.pop %v1548
    %v1556 = vmul.f32 %v1554, %v1466
    %1558 = vrot.lane.b32.xlu0 %v1555, 64
    %v1559 = vpop.permute.xlu0 %1558
    %v1561 = vmul.f32 %v1554, %v1559
    %1563 = vrot.lane.b32.xlu0 %v1561, 32
    %v1564 = vpop.permute.xlu0 %1563
    %v1566 = vadd.f32 %v1556, %v1564
    %v1567 = vtanh.pop %v1566
    %1569 = vrot.lane.b32.xlu0 %v1567, 64
    %v1570 = vpop.permute.xlu0 %1569
    %v1572 = vmul.f32 %v1554, %v1570
    %1574 = vrot.lane.b32.xlu0 %v1572, 32
    %v1575 = vpop.permute.xlu0 %1574
    %v1576 = vsel %vm254, %v1575, 0
    %1578 = vmatprep.subr.mxu0 0.0
    %1579 = vmatpush1.msra.mxu0 %v1174
    %1580 = vmatprep.subr.mxu0 0.0
    %1581 = vmatpush1.msra.mxu0 %v1175
    %1582 = vmatprep.subr.mxu0 0.0
    %1583 = vmatpush1.msra.mxu0 %v1176
    %1584 = vmatprep.subr.mxu0 0.0
    %1585 = vmatpush1.msra.mxu0 %v1177
    %1586 = vmatprep.subr.mxu0 0.0
    %1587 = vmatpush1.msra.mxu0 0.0
    %1588 = vmatprep.subr.mxu0 0.0
    %1589 = vmatpush1.msra.mxu0 0.0
    %1590 = vmatprep.subr.mxu0 0.0
    %1591 = vmatpush1.msra.mxu0 0.0
    %1592 = vmatprep.subr.mxu0 0.0
    %1593 = vmatpush1.msra.mxu0 0.0
    %1594 = vmatprep.subr.mxu0 0.0
    %1595 = vmatpush1.msra.mxu0 0.0
    %1596 = vmatprep.subr.mxu0 0.0
    %1597 = vmatpush1.msra.mxu0 0.0
    %1598 = vmatprep.subr.mxu0 0.0
    %1599 = vmatpush1.msra.mxu0 0.0
    %1600 = vmatprep.subr.mxu0 0.0
    %1601 = vmatpush1.msra.mxu0 0.0
    %1602 = vmatprep.subr.mxu0 0.0
    %1603 = vmatpush1.msra.mxu0 0.0
    %1604 = vmatprep.subr.mxu0 0.0
    %1605 = vmatpush1.msra.mxu0 0.0
    %1606 = vmatprep.subr.mxu0 0.0
    %1607 = vmatpush1.msra.mxu0 0.0
    %1608 = vmatprep.subr.mxu0 0.0
    %1609 = vmatpush1.msra.mxu0 0.0
    %1610 = vmatprep.subr.mxu0 0.0
    %1611 = vmatpush1.msra.mxu0 0.0
    %1612 = vmatprep.subr.mxu0 0.0
    %1613 = vmatpush1.msra.mxu0 0.0
    %1614 = vmatprep.subr.mxu0 0.0
    %1615 = vmatpush1.msra.mxu0 0.0
    %1616 = vmatprep.subr.mxu0 0.0
    %1617 = vmatpush1.msra.mxu0 0.0
    %1618 = vmatprep.subr.mxu0 0.0
    %1619 = vmatpush1.msra.mxu0 0.0
    %1620 = vmatprep.subr.mxu0 0.0
    %1621 = vmatpush1.msra.mxu0 0.0
    %1622 = vmatprep.subr.mxu0 0.0
    %1623 = vmatpush1.msra.mxu0 0.0
    %1624 = vmatprep.subr.mxu0 0.0
    %1625 = vmatpush1.msra.mxu0 0.0
    %1626 = vmatprep.subr.mxu0 0.0
    %1627 = vmatpush1.msra.mxu0 0.0
    %1628 = vmatprep.subr.mxu0 0.0
    %1629 = vmatpush1.msra.mxu0 0.0
    %1630 = vmatprep.subr.mxu0 0.0
    %1631 = vmatpush1.msra.mxu0 0.0
    %1632 = vmatprep.subr.mxu0 0.0
    %1633 = vmatpush1.msra.mxu0 0.0
    %1634 = vmatprep.subr.mxu0 0.0
    %1635 = vmatpush1.msra.mxu0 0.0
    %1636 = vmatprep.subr.mxu0 0.0
    %1637 = vmatpush1.msra.mxu0 0.0
    %1638 = vmatprep.subr.mxu0 0.0
    %1639 = vmatpush1.msra.mxu0 0.0
    %1640 = vmatprep.subr.mxu0 0.0
    %1641 = vmatpush1.msra.mxu0 0.0
    %1642 = vmatprep.mubr.f32.mxu0 0.0
    %1643 = vmatmul.mubr.f32.gmra.mrb[0].mxu0 %v1576
    %v1644 = vpop.f32.mrb[0].mxu0
    %v1645 = vadd.f32 0.0, %v1644
    %v1646 = vpop.f32.mrb[0].mxu0
    %1647 = vdwg.mxu0
    %v1648 = vadd.f32 %v1156, %v1645
    %v1649 = vxor.u32 %v1648, 2147483648
    %v1650 = vmul.f32 %v1649, 1.442695
    %v1651 = vpow.pop %v1650
    %v1652 = vadd.f32 %v1651, 1.0
    %v1653 = vrcp.pop %v1652
    %v1654 = vmul.f32 1.0, %v1653
    %v1655 = vtanh.pop %v1648
    %v1656 = vmul.f32 %v1654, %v1566
    %1658 = vrot.lane.b32.xlu0 %v1655, 64
    %v1659 = vpop.permute.xlu0 %1658
    %v1661 = vmul.f32 %v1654, %v1659
    %1663 = vrot.lane.b32.xlu0 %v1661, 32
    %v1664 = vpop.permute.xlu0 %1663
    %v1666 = vadd.f32 %v1656, %v1664
    %v1667 = vtanh.pop %v1666
    %1669 = vrot.lane.b32.xlu0 %v1667, 64
    %v1670 = vpop.permute.xlu0 %1669
    %v1672 = vmul.f32 %v1654, %v1670
    %1674 = vrot.lane.b32.xlu0 %v1672, 32
    %v1675 = vpop.permute.xlu0 %1674
    %v1676 = vsel %vm254, %v1675, 0
    %1678 = vmatprep.subr.mxu0 0.0
    %1679 = vmatpush1.msra.mxu0 %v1174
    %1680 = vmatprep.subr.mxu0 0.0
    %1681 = vmatpush1.msra.mxu0 %v1175
    %1682 = vmatprep.subr.mxu0 0.0
    %1683 = vmatpush1.msra.mxu0 %v1176
    %1684 = vmatprep.subr.mxu0 0.0
    %1685 = vmatpush1.msra.mxu0 %v1177
    %1686 = vmatprep.subr.mxu0 0.0
    %1687 = vmatpush1.msra.mxu0 0.0
    %1688 = vmatprep.subr.mxu0 0.0
    %1689 = vmatpush1.msra.mxu0 0.0
    %1690 = vmatprep.subr.mxu0 0.0
    %1691 = vmatpush1.msra.mxu0 0.0
    %1692 = vmatprep.subr.mxu0 0.0
    %1693 = vmatpush1.msra.mxu0 0.0
    %1694 = vmatprep.subr.mxu0 0.0
    %1695 = vmatpush1.msra.mxu0 0.0
    %1696 = vmatprep.subr.mxu0 0.0
    %1697 = vmatpush1.msra.mxu0 0.0
    %1698 = vmatprep.subr.mxu0 0.0
    %1699 = vmatpush1.msra.mxu0 0.0
    %1700 = vmatprep.subr.mxu0 0.0
    %1701 = vmatpush1.msra.mxu0 0.0
    %1702 = vmatprep.subr.mxu0 0.0
    %1703 = vmatpush1.msra.mxu0 0.0
    %1704 = vmatprep.subr.mxu0 0.0
    %1705 = vmatpush1.msra.mxu0 0.0
    %1706 = vmatprep.subr.mxu0 0.0
    %1707 = vmatpush1.msra.mxu0 0.0
    %1708 = vmatprep.subr.mxu0 0.0
    %1709 = vmatpush1.msra.mxu0 0.0
    %1710 = vmatprep.subr.mxu0 0.0
    %1711 = vmatpush1.msra.mxu0 0.0
    %1712 = vmatprep.subr.mxu0 0.0
    %1713 = vmatpush1.msra.mxu0 0.0
    %1714 = vmatprep.subr.mxu0 0.0
    %1715 = vmatpush1.msra.mxu0 0.0
    %1716 = vmatprep.subr.mxu0 0.0
    %1717 = vmatpush1.msra.mxu0 0.0
    %1718 = vmatprep.subr.mxu0 0.0
    %1719 = vmatpush1.msra.mxu0 0.0
    %1720 = vmatprep.subr.mxu0 0.0
    %1721 = vmatpush1.msra.mxu0 0.0
    %1722 = vmatprep.subr.mxu0 0.0
    %1723 = vmatpush1.msra.mxu0 0.0
    %1724 = vmatprep.subr.mxu0 0.0
    %1725 = vmatpush1.msra.mxu0 0.0
    %1726 = vmatprep.subr.mxu0 0.0
    %1727 = vmatpush1.msra.mxu0 0.0
    %1728 = vmatprep.subr.mxu0 0.0
    %1729 = vmatpush1.msra.mxu0 0.0
    %1730 = vmatprep.subr.mxu0 0.0
    %1731 = vmatpush1.msra.mxu0 0.0
    %1732 = vmatprep.subr.mxu0 0.0
    %1733 = vmatpush1.msra.mxu0 0.0
    %1734 = vmatprep.subr.mxu0 0.0
    %1735 = vmatpush1.msra.mxu0 0.0
    %1736 = vmatprep.subr.mxu0 0.0
    %1737 = vmatpush1.msra.mxu0 0.0
    %1738 = vmatprep.subr.mxu0 0.0
    %1739 = vmatpush1.msra.mxu0 0.0
    %1740 = vmatprep.subr.mxu0 0.0
    %1741 = vmatpush1.msra.mxu0 0.0
    %1742 = vmatprep.mubr.f32.mxu0 0.0
    %1743 = vmatmul.mubr.f32.gmra.mrb[0].mxu0 %v1676
    %v1744 = vpop.f32.mrb[0].mxu0
    %v1745 = vadd.f32 0.0, %v1744
    %v1746 = vpop.f32.mrb[0].mxu0
    %1747 = vdwg.mxu0
    %v1748 = vadd.f32 %v1161, %v1745
    %v1749 = vxor.u32 %v1748, 2147483648
    %v1750 = vmul.f32 %v1749, 1.442695
    %v1751 = vpow.pop %v1750
    %v1752 = vadd.f32 %v1751, 1.0
    %v1753 = vrcp.pop %v1752
    %v1754 = vmul.f32 1.0, %v1753
    %v1755 = vtanh.pop %v1748
    %v1756 = vmul.f32 %v1754, %v1666
    %1758 = vrot.lane.b32.xlu0 %v1755, 64
    %v1759 = vpop.permute.xlu0 %1758
    %v1761 = vmul.f32 %v1754, %v1759
    %1763 = vrot.lane.b32.xlu0 %v1761, 32
    %v1764 = vpop.permute.xlu0 %1763
    %v1766 = vadd.f32 %v1756, %v1764
    %v1767 = vtanh.pop %v1766
    %1769 = vrot.lane.b32.xlu0 %v1767, 64
    %v1770 = vpop.permute.xlu0 %1769
    %v1772 = vmul.f32 %v1754, %v1770
    %1774 = vrot.lane.b32.xlu0 %v1772, 32
    %v1775 = vpop.permute.xlu0 %1774
    %v1776 = vsel %vm254, %v1775, 0
    %1778 = vmatprep.subr.mxu0 0.0
    %1779 = vmatpush1.msra.mxu0 %v1174
    %1780 = vmatprep.subr.mxu0 0.0
    %1781 = vmatpush1.msra.mxu0 %v1175
    %1782 = vmatprep.subr.mxu0 0.0
    %1783 = vmatpush1.msra.mxu0 %v1176
    %1784 = vmatprep.subr.mxu0 0.0
    %1785 = vmatpush1.msra.mxu0 %v1177
    %1786 = vmatprep.subr.mxu0 0.0
    %1787 = vmatpush1.msra.mxu0 0.0
    %1788 = vmatprep.subr.mxu0 0.0
    %1789 = vmatpush1.msra.mxu0 0.0
    %1790 = vmatprep.subr.mxu0 0.0
    %1791 = vmatpush1.msra.mxu0 0.0
    %1792 = vmatprep.subr.mxu0 0.0
    %1793 = vmatpush1.msra.mxu0 0.0
    %1794 = vmatprep.subr.mxu0 0.0
    %1795 = vmatpush1.msra.mxu0 0.0
    %1796 = vmatprep.subr.mxu0 0.0
    %1797 = vmatpush1.msra.mxu0 0.0
    %1798 = vmatprep.subr.mxu0 0.0
    %1799 = vmatpush1.msra.mxu0 0.0
    %1800 = vmatprep.subr.mxu0 0.0
    %1801 = vmatpush1.msra.mxu0 0.0
    %1802 = vmatprep.subr.mxu0 0.0
    %1803 = vmatpush1.msra.mxu0 0.0
    %1804 = vmatprep.subr.mxu0 0.0
    %1805 = vmatpush1.msra.mxu0 0.0
    %1806 = vmatprep.subr.mxu0 0.0
    %1807 = vmatpush1.msra.mxu0 0.0
    %1808 = vmatprep.subr.mxu0 0.0
    %1809 = vmatpush1.msra.mxu0 0.0
    %1810 = vmatprep.subr.mxu0 0.0
    %1811 = vmatpush1.msra.mxu0 0.0
    %1812 = vmatprep.subr.mxu0 0.0
    %1813 = vmatpush1.msra.mxu0 0.0
    %1814 = vmatprep.subr.mxu0 0.0
    %1815 = vmatpush1.msra.mxu0 0.0
    %1816 = vmatprep.subr.mxu0 0.0
    %1817 = vmatpush1.msra.mxu0 0.0
    %1818 = vmatprep.subr.mxu0 0.0
    %1819 = vmatpush1.msra.mxu0 0.0
    %1820 = vmatprep.subr.mxu0 0.0
    %1821 = vmatpush1.msra.mxu0 0.0
    %1822 = vmatprep.subr.mxu0 0.0
    %1823 = vmatpush1.msra.mxu0 0.0
    %1824 = vmatprep.subr.mxu0 0.0
    %1825 = vmatpush1.msra.mxu0 0.0
    %1826 = vmatprep.subr.mxu0 0.0
    %1827 = vmatpush1.msra.mxu0 0.0
    %1828 = vmatprep.subr.mxu0 0.0
    %1829 = vmatpush1.msra.mxu0 0.0
    %1830 = vmatprep.subr.mxu0 0.0
    %1831 = vmatpush1.msra.mxu0 0.0
    %1832 = vmatprep.subr.mxu0 0.0
    %1833 = vmatpush1.msra.mxu0 0.0
    %1834 = vmatprep.subr.mxu0 0.0
    %1835 = vmatpush1.msra.mxu0 0.0
    %1836 = vmatprep.subr.mxu0 0.0
    %1837 = vmatpush1.msra.mxu0 0.0
    %1838 = vmatprep.subr.mxu0 0.0
    %1839 = vmatpush1.msra.mxu0 0.0
    %1840 = vmatprep.subr.mxu0 0.0
    %1841 = vmatpush1.msra.mxu0 0.0
    %1842 = vmatprep.mubr.f32.mxu0 0.0
    %1843 = vmatmul.mubr.f32.gmra.mrb[0].mxu0 %v1776
    %v1844 = vpop.f32.mrb[0].mxu0
    %v1845 = vadd.f32 0.0, %v1844
    %v1846 = vpop.f32.mrb[0].mxu0
    %1847 = vdwg.mxu0
    %v1848 = vadd.f32 %v1166, %v1845
    %v1849 = vxor.u32 %v1848, 2147483648
    %v1850 = vmul.f32 %v1849, 1.442695
    %v1851 = vpow.pop %v1850
    %v1852 = vadd.f32 %v1851, 1.0
    %v1853 = vrcp.pop %v1852
    %v1854 = vmul.f32 1.0, %v1853
    %v1855 = vtanh.pop %v1848
    %v1856 = vmul.f32 %v1854, %v1766
    %1858 = vrot.lane.b32.xlu0 %v1855, 64
    %v1859 = vpop.permute.xlu0 %1858
    %v1861 = vmul.f32 %v1854, %v1859
    %1863 = vrot.lane.b32.xlu0 %v1861, 32
    %v1864 = vpop.permute.xlu0 %1863
    %v1866 = vadd.f32 %v1856, %v1864
    %v1867 = vtanh.pop %v1866
    %1869 = vrot.lane.b32.xlu0 %v1867, 64
    %v1870 = vpop.permute.xlu0 %1869
    %v1872 = vmul.f32 %v1854, %v1870
    %1874 = vrot.lane.b32.xlu0 %v1872, 32
    %v1875 = vpop.permute.xlu0 %1874
    %v1876 = vsel %vm254, %v1875, 0
    %1878 = vmatprep.subr.mxu0 0.0
    %1879 = vmatpush1.msra.mxu0 %v1174
    %1880 = vmatprep.subr.mxu0 0.0
    %1881 = vmatpush1.msra.mxu0 %v1175
    %1882 = vmatprep.subr.mxu0 0.0
    %1883 = vmatpush1.msra.mxu0 %v1176
    %1884 = vmatprep.subr.mxu0 0.0
    %1885 = vmatpush1.msra.mxu0 %v1177
    %1886 = vmatprep.subr.mxu0 0.0
    %1887 = vmatpush1.msra.mxu0 0.0
    %1888 = vmatprep.subr.mxu0 0.0
    %1889 = vmatpush1.msra.mxu0 0.0
    %1890 = vmatprep.subr.mxu0 0.0
    %1891 = vmatpush1.msra.mxu0 0.0
    %1892 = vmatprep.subr.mxu0 0.0
    %1893 = vmatpush1.msra.mxu0 0.0
    %1894 = vmatprep.subr.mxu0 0.0
    %1895 = vmatpush1.msra.mxu0 0.0
    %1896 = vmatprep.subr.mxu0 0.0
    %1897 = vmatpush1.msra.mxu0 0.0
    %1898 = vmatprep.subr.mxu0 0.0
    %1899 = vmatpush1.msra.mxu0 0.0
    %1900 = vmatprep.subr.mxu0 0.0
    %1901 = vmatpush1.msra.mxu0 0.0
    %1902 = vmatprep.subr.mxu0 0.0
    %1903 = vmatpush1.msra.mxu0 0.0
    %1904 = vmatprep.subr.mxu0 0.0
    %1905 = vmatpush1.msra.mxu0 0.0
    %1906 = vmatprep.subr.mxu0 0.0
    %1907 = vmatpush1.msra.mxu0 0.0
    %1908 = vmatprep.subr.mxu0 0.0
    %1909 = vmatpush1.msra.mxu0 0.0
    %1910 = vmatprep.subr.mxu0 0.0
    %1911 = vmatpush1.msra.mxu0 0.0
    %1912 = vmatprep.subr.mxu0 0.0
    %1913 = vmatpush1.msra.mxu0 0.0
    %1914 = vmatprep.subr.mxu0 0.0
    %1915 = vmatpush1.msra.mxu0 0.0
    %1916 = vmatprep.subr.mxu0 0.0
    %1917 = vmatpush1.msra.mxu0 0.0
    %1918 = vmatprep.subr.mxu0 0.0
    %1919 = vmatpush1.msra.mxu0 0.0
    %1920 = vmatprep.subr.mxu0 0.0
    %1921 = vmatpush1.msra.mxu0 0.0
    %1922 = vmatprep.subr.mxu0 0.0
    %1923 = vmatpush1.msra.mxu0 0.0
    %1924 = vmatprep.subr.mxu0 0.0
    %1925 = vmatpush1.msra.mxu0 0.0
    %1926 = vmatprep.subr.mxu0 0.0
    %1927 = vmatpush1.msra.mxu0 0.0
    %1928 = vmatprep.subr.mxu0 0.0
    %1929 = vmatpush1.msra.mxu0 0.0
    %1930 = vmatprep.subr.mxu0 0.0
    %1931 = vmatpush1.msra.mxu0 0.0
    %1932 = vmatprep.subr.mxu0 0.0
    %1933 = vmatpush1.msra.mxu0 0.0
    %1934 = vmatprep.subr.mxu0 0.0
    %1935 = vmatpush1.msra.mxu0 0.0
    %1936 = vmatprep.subr.mxu0 0.0
    %1937 = vmatpush1.msra.mxu0 0.0
    %1938 = vmatprep.subr.mxu0 0.0
    %1939 = vmatpush1.msra.mxu0 0.0
    %1940 = vmatprep.subr.mxu0 0.0
    %1941 = vmatpush1.msra.mxu0 0.0
    %1942 = vmatprep.mubr.f32.mxu0 0.0
    %1943 = vmatmul.mubr.f32.gmra.mrb[0].mxu0 %v1876
    %v1944 = vpop.f32.mrb[0].mxu0
    %v1945 = vadd.f32 0.0, %v1944
    %v1946 = vpop.f32.mrb[0].mxu0
    %1947 = vdwg.mxu0
    %v1948 = vadd.f32 %v1171, %v1945
    %v1949 = vxor.u32 %v1948, 2147483648
    %v1950 = vmul.f32 %v1949, 1.442695
    %v1951 = vpow.pop %v1950
    %v1952 = vadd.f32 %v1951, 1.0
    %v1953 = vrcp.pop %v1952
    %v1954 = vmul.f32 1.0, %v1953
    %v1955 = vtanh.pop %v1948
    %v1956 = vmul.f32 %v1954, %v1866
    %1958 = vrot.lane.b32.xlu0 %v1955, 64
    %v1959 = vpop.permute.xlu0 %1958
    %v1961 = vmul.f32 %v1954, %v1959
    %1963 = vrot.lane.b32.xlu0 %v1961, 32
    %v1964 = vpop.permute.xlu0 %1963
    %v1966 = vadd.f32 %v1956, %v1964
    %v1967 = vtanh.pop %v1966
    %1969 = vrot.lane.b32.xlu0 %v1967, 64
    %v1970 = vpop.permute.xlu0 %1969
    %v1972 = vmul.f32 %v1954, %v1970
    %v1973 = vld [vmem:[%s7] sm:$0xff]
    %v1974 = vld [vmem:[%s7 + $0x8] sm:$0xff]
    %v1975 = vld [vmem:[%s7 + $0x10] sm:$0xff]
    %v1976 = vld [vmem:[%s7 + $0x18] sm:$0xff]
    %v1977 = vld [vmem:[%s9] sm:$0x1]
    %v1979 = vlaneseq
    %v1980 = vshrl.u32 %v1979, 7
    %v1981 = vsub.s32 0, %v1980
    %v1982 = vrot.slane %v1977, %v1981
    %1985 = vrot.lane.b32.xlu0 %v1972, 32
    %v1986 = vpop.permute.xlu0 %1985
    %v1987 = vsel %vm254, %v1986, 0
    %1989 = vmatprep.subr.mxu0 0.0
    %1990 = vmatpush1.msra.mxu0 %v1973
    %1991 = vmatprep.subr.mxu0 0.0
    %1992 = vmatpush1.msra.mxu0 %v1974
    %1993 = vmatprep.subr.mxu0 0.0
    %1994 = vmatpush1.msra.mxu0 %v1975
    %1995 = vmatprep.subr.mxu0 0.0
    %1996 = vmatpush1.msra.mxu0 %v1976
    %1997 = vmatprep.subr.mxu0 0.0
    %1998 = vmatpush1.msra.mxu0 0.0
    %1999 = vmatprep.subr.mxu0 0.0
    %2000 = vmatpush1.msra.mxu0 0.0
    %2001 = vmatprep.subr.mxu0 0.0
    %2002 = vmatpush1.msra.mxu0 0.0
    %2003 = vmatprep.subr.mxu0 0.0
    %2004 = vmatpush1.msra.mxu0 0.0
    %2005 = vmatprep.subr.mxu0 0.0
    %2006 = vmatpush1.msra.mxu0 0.0
    %2007 = vmatprep.subr.mxu0 0.0
    %2008 = vmatpush1.msra.mxu0 0.0
    %2009 = vmatprep.subr.mxu0 0.0
    %2010 = vmatpush1.msra.mxu0 0.0
    %2011 = vmatprep.subr.mxu0 0.0
    %2012 = vmatpush1.msra.mxu0 0.0
    %2013 = vmatprep.subr.mxu0 0.0
    %2014 = vmatpush1.msra.mxu0 0.0
    %2015 = vmatprep.subr.mxu0 0.0
    %2016 = vmatpush1.msra.mxu0 0.0
    %2017 = vmatprep.subr.mxu0 0.0
    %2018 = vmatpush1.msra.mxu0 0.0
    %2019 = vmatprep.subr.mxu0 0.0
    %2020 = vmatpush1.msra.mxu0 0.0
    %2021 = vmatprep.subr.mxu0 0.0
    %2022 = vmatpush1.msra.mxu0 0.0
    %2023 = vmatprep.subr.mxu0 0.0
    %2024 = vmatpush1.msra.mxu0 0.0
    %2025 = vmatprep.subr.mxu0 0.0
    %2026 = vmatpush1.msra.mxu0 0.0
    %2027 = vmatprep.subr.mxu0 0.0
    %2028 = vmatpush1.msra.mxu0 0.0
    %2029 = vmatprep.subr.mxu0 0.0
    %2030 = vmatpush1.msra.mxu0 0.0
    %2031 = vmatprep.subr.mxu0 0.0
    %2032 = vmatpush1.msra.mxu0 0.0
    %2033 = vmatprep.subr.mxu0 0.0
    %2034 = vmatpush1.msra.mxu0 0.0
    %2035 = vmatprep.subr.mxu0 0.0
    %2036 = vmatpush1.msra.mxu0 0.0
    %2037 = vmatprep.subr.mxu0 0.0
    %2038 = vmatpush1.msra.mxu0 0.0
    %2039 = vmatprep.subr.mxu0 0.0
    %2040 = vmatpush1.msra.mxu0 0.0
    %2041 = vmatprep.subr.mxu0 0.0
    %2042 = vmatpush1.msra.mxu0 0.0
    %2043 = vmatprep.subr.mxu0 0.0
    %2044 = vmatpush1.msra.mxu0 0.0
    %2045 = vmatprep.subr.mxu0 0.0
    %2046 = vmatpush1.msra.mxu0 0.0
    %2047 = vmatprep.subr.mxu0 0.0
    %2048 = vmatpush1.msra.mxu0 0.0
    %2049 = vmatprep.subr.mxu0 0.0
    %2050 = vmatpush1.msra.mxu0 0.0
    %2051 = vmatprep.subr.mxu0 0.0
    %2052 = vmatpush1.msra.mxu0 0.0
    %2053 = vmatprep.mubr.f32.mxu0 0.0
    %2054 = vmatmul.mubr.f32.gmra.mrb[0].mxu0 %v1276
    %v2055 = vpop.f32.mrb[0].mxu0
    %v2056 = vadd.f32 %v1982, %v2055
    %v2057 = vpop.f32.mrb[0].mxu0
    %2058 = vmatprep.mubr.f32.mxu0 0.0
    %2059 = vmatmul.mubr.f32.gmra.mrb[0].mxu0 %v1376
    %v2060 = vpop.f32.mrb[0].mxu0
    %v2061 = vadd.f32 %v1982, %v2060
    %v2062 = vpop.f32.mrb[0].mxu0
    %2063 = vmatprep.mubr.f32.mxu0 0.0
    %2064 = vmatmul.mubr.f32.gmra.mrb[0].mxu0 %v1476
    %v2065 = vpop.f32.mrb[0].mxu0
    %v2066 = vadd.f32 %v1982, %v2065
    %v2067 = vpop.f32.mrb[0].mxu0
    %2068 = vmatprep.mubr.f32.mxu0 0.0
    %2069 = vmatmul.mubr.f32.gmra.mrb[0].mxu0 %v1576
    %v2070 = vpop.f32.mrb[0].mxu0
    %v2071 = vadd.f32 %v1982, %v2070
    %v2072 = vpop.f32.mrb[0].mxu0
    %2073 = vmatprep.mubr.f32.mxu0 0.0
    %2074 = vmatmul.mubr.f32.gmra.mrb[0].mxu0 %v1676
    %v2075 = vpop.f32.mrb[0].mxu0
    %v2076 = vadd.f32 %v1982, %v2075
    %v2077 = vpop.f32.mrb[0].mxu0
    %2078 = vmatprep.mubr.f32.mxu0 0.0
    %2079 = vmatmul.mubr.f32.gmra.mrb[0].mxu0 %v1776
    %v2080 = vpop.f32.mrb[0].mxu0
    %v2081 = vadd.f32 %v1982, %v2080
    %v2082 = vpop.f32.mrb[0].mxu0
    %2083 = vmatprep.mubr.f32.mxu0 0.0
    %2084 = vmatmul.mubr.f32.gmra.mrb[0].mxu0 %v1876
    %v2085 = vpop.f32.mrb[0].mxu0
    %v2086 = vadd.f32 %v1982, %v2085
    %v2087 = vpop.f32.mrb[0].mxu0
    %2088 = vmatprep.mubr.f32.mxu0 0.0
    %2089 = vmatmul.mubr.f32.gmra.mrb[0].mxu0 %v1987
    %v2090 = vpop.f32.mrb[0].mxu0
    %v2091 = vadd.f32 %v1982, %v2090
    %v2092 = vpop.f32.mrb[0].mxu0
    %2093 = vdwg.mxu0
    %v2094 = vld [vmem:[#allocation4] sm:$0xff]
    %v2095 = vld [vmem:[#allocation4 + $0x8] sm:$0xff]
    %v2096 = vld [vmem:[#allocation4 + $0x10] sm:$0xff]
    %v2097 = vld [vmem:[#allocation4 + $0x18] sm:$0xff]
    %2098 = vmatprep.subr.mxu0 0.0
    %2099 = vmatpush1.msra.mxu0 %v2094
    %2100 = vmatprep.subr.mxu0 0.0
    %2101 = vmatpush1.msra.mxu0 %v2095
    %2102 = vmatprep.subr.mxu0 0.0
    %2103 = vmatpush1.msra.mxu0 %v2096
    %2104 = vmatprep.subr.mxu0 0.0
    %2105 = vmatpush1.msra.mxu0 %v2097
    %2106 = vmatprep.subr.mxu0 0.0
    %2107 = vmatpush1.msra.mxu0 0.0
    %2108 = vmatprep.subr.mxu0 0.0
    %2109 = vmatpush1.msra.mxu0 0.0
    %2110 = vmatprep.subr.mxu0 0.0
    %2111 = vmatpush1.msra.mxu0 0.0
    %2112 = vmatprep.subr.mxu0 0.0
    %2113 = vmatpush1.msra.mxu0 0.0
    %2114 = vmatprep.subr.mxu0 0.0
    %2115 = vmatpush1.msra.mxu0 0.0
    %2116 = vmatprep.subr.mxu0 0.0
    %2117 = vmatpush1.msra.mxu0 0.0
    %2118 = vmatprep.subr.mxu0 0.0
    %2119 = vmatpush1.msra.mxu0 0.0
    %2120 = vmatprep.subr.mxu0 0.0
    %2121 = vmatpush1.msra.mxu0 0.0
    %2122 = vmatprep.subr.mxu0 0.0
    %2123 = vmatpush1.msra.mxu0 0.0
    %2124 = vmatprep.subr.mxu0 0.0
    %2125 = vmatpush1.msra.mxu0 0.0
    %2126 = vmatprep.subr.mxu0 0.0
    %2127 = vmatpush1.msra.mxu0 0.0
    %2128 = vmatprep.subr.mxu0 0.0
    %2129 = vmatpush1.msra.mxu0 0.0
    %2130 = vmatprep.subr.mxu0 0.0
    %2131 = vmatpush1.msra.mxu0 0.0
    %2132 = vmatprep.subr.mxu0 0.0
    %2133 = vmatpush1.msra.mxu0 0.0
    %2134 = vmatprep.subr.mxu0 0.0
    %2135 = vmatpush1.msra.mxu0 0.0
    %2136 = vmatprep.subr.mxu0 0.0
    %2137 = vmatpush1.msra.mxu0 0.0
    %2138 = vmatprep.subr.mxu0 0.0
    %2139 = vmatpush1.msra.mxu0 0.0
    %2140 = vmatprep.subr.mxu0 0.0
    %2141 = vmatpush1.msra.mxu0 0.0
    %2142 = vmatprep.subr.mxu0 0.0
    %2143 = vmatpush1.msra.mxu0 0.0
    %2144 = vmatprep.subr.mxu0 0.0
    %2145 = vmatpush1.msra.mxu0 0.0
    %2146 = vmatprep.subr.mxu0 0.0
    %2147 = vmatpush1.msra.mxu0 0.0
    %2148 = vmatprep.subr.mxu0 0.0
    %2149 = vmatpush1.msra.mxu0 0.0
    %2150 = vmatprep.subr.mxu0 0.0
    %2151 = vmatpush1.msra.mxu0 0.0
    %2152 = vmatprep.subr.mxu0 0.0
    %2153 = vmatpush1.msra.mxu0 0.0
    %2154 = vmatprep.subr.mxu0 0.0
    %2155 = vmatpush1.msra.mxu0 0.0
    %2156 = vmatprep.subr.mxu0 0.0
    %2157 = vmatpush1.msra.mxu0 0.0
    %2158 = vmatprep.subr.mxu0 0.0
    %2159 = vmatpush1.msra.mxu0 0.0
    %2160 = vmatprep.subr.mxu0 0.0
    %2161 = vmatpush1.msra.mxu0 0.0
    %2162 = vmatprep.mubr.f32.mxu0 0.0
    %2163 = vmatmul.mubr.f32.gmra.mrb[0].mxu0 %v256
    %v2164 = vpop.f32.mrb[0].mxu0
    %v2165 = vadd.f32 0.0, %v2164
    %v2166 = vpop.f32.mrb[0].mxu0
    %2167 = vdwg.mxu0
    %v2168 = vadd.f32 %v2056, %v2165
    %v2169 = vxor.u32 %v2168, 2147483648
    %v2170 = vmul.f32 %v2169, 1.442695
    %v2171 = vpow.pop %v2170
    %v2172 = vadd.f32 %v2171, 1.0
    %v2173 = vrcp.pop %v2172
    %v2174 = vmul.f32 1.0, %v2173
    %v2175 = vtanh.pop %v2168
    %v2176 = vmul.f32 %v2174, 0.0
    %2178 = vrot.lane.b32.xlu0 %v2175, 64
    %v2179 = vpop.permute.xlu0 %2178
    %v2181 = vmul.f32 %v2174, %v2179
    %2183 = vrot.lane.b32.xlu0 %v2181, 32
    %v2184 = vpop.permute.xlu0 %2183
    %v2186 = vadd.f32 %v2176, %v2184
    %v2187 = vtanh.pop %v2186
    %2189 = vrot.lane.b32.xlu0 %v2187, 64
    %v2190 = vpop.permute.xlu0 %2189
    %v2192 = vmul.f32 %v2174, %v2190
    %2194 = vrot.lane.b32.xlu0 %v2192, 32
    %v2195 = vpop.permute.xlu0 %2194
    %v2196 = vsel %vm254, %v2195, 0
    %2198 = vmatprep.subr.mxu0 0.0
    %2199 = vmatpush1.msra.mxu0 %v2094
    %2200 = vmatprep.subr.mxu0 0.0
    %2201 = vmatpush1.msra.mxu0 %v2095
    %2202 = vmatprep.subr.mxu0 0.0
    %2203 = vmatpush1.msra.mxu0 %v2096
    %2204 = vmatprep.subr.mxu0 0.0
    %2205 = vmatpush1.msra.mxu0 %v2097
    %2206 = vmatprep.subr.mxu0 0.0
    %2207 = vmatpush1.msra.mxu0 0.0
    %2208 = vmatprep.subr.mxu0 0.0
    %2209 = vmatpush1.msra.mxu0 0.0
    %2210 = vmatprep.subr.mxu0 0.0
    %2211 = vmatpush1.msra.mxu0 0.0
    %2212 = vmatprep.subr.mxu0 0.0
    %2213 = vmatpush1.msra.mxu0 0.0
    %2214 = vmatprep.subr.mxu0 0.0
    %2215 = vmatpush1.msra.mxu0 0.0
    %2216 = vmatprep.subr.mxu0 0.0
    %2217 = vmatpush1.msra.mxu0 0.0
    %2218 = vmatprep.subr.mxu0 0.0
    %2219 = vmatpush1.msra.mxu0 0.0
    %2220 = vmatprep.subr.mxu0 0.0
    %2221 = vmatpush1.msra.mxu0 0.0
    %2222 = vmatprep.subr.mxu0 0.0
    %2223 = vmatpush1.msra.mxu0 0.0
    %2224 = vmatprep.subr.mxu0 0.0
    %2225 = vmatpush1.msra.mxu0 0.0
    %2226 = vmatprep.subr.mxu0 0.0
    %2227 = vmatpush1.msra.mxu0 0.0
    %2228 = vmatprep.subr.mxu0 0.0
    %2229 = vmatpush1.msra.mxu0 0.0
    %2230 = vmatprep.subr.mxu0 0.0
    %2231 = vmatpush1.msra.mxu0 0.0
    %2232 = vmatprep.subr.mxu0 0.0
    %2233 = vmatpush1.msra.mxu0 0.0
    %2234 = vmatprep.subr.mxu0 0.0
    %2235 = vmatpush1.msra.mxu0 0.0
    %2236 = vmatprep.subr.mxu0 0.0
    %2237 = vmatpush1.msra.mxu0 0.0
    %2238 = vmatprep.subr.mxu0 0.0
    %2239 = vmatpush1.msra.mxu0 0.0
    %2240 = vmatprep.subr.mxu0 0.0
    %2241 = vmatpush1.msra.mxu0 0.0
    %2242 = vmatprep.subr.mxu0 0.0
    %2243 = vmatpush1.msra.mxu0 0.0
    %2244 = vmatprep.subr.mxu0 0.0
    %2245 = vmatpush1.msra.mxu0 0.0
    %2246 = vmatprep.subr.mxu0 0.0
    %2247 = vmatpush1.msra.mxu0 0.0
    %2248 = vmatprep.subr.mxu0 0.0
    %2249 = vmatpush1.msra.mxu0 0.0
    %2250 = vmatprep.subr.mxu0 0.0
    %2251 = vmatpush1.msra.mxu0 0.0
    %2252 = vmatprep.subr.mxu0 0.0
    %2253 = vmatpush1.msra.mxu0 0.0
    %2254 = vmatprep.subr.mxu0 0.0
    %2255 = vmatpush1.msra.mxu0 0.0
    %2256 = vmatprep.subr.mxu0 0.0
    %2257 = vmatpush1.msra.mxu0 0.0
    %2258 = vmatprep.subr.mxu0 0.0
    %2259 = vmatpush1.msra.mxu0 0.0
    %2260 = vmatprep.subr.mxu0 0.0
    %2261 = vmatpush1.msra.mxu0 0.0
    %2262 = vmatprep.mubr.f32.mxu0 0.0
    %2263 = vmatmul.mubr.f32.gmra.mrb[0].mxu0 %v2196
    %v2264 = vpop.f32.mrb[0].mxu0
    %v2265 = vadd.f32 0.0, %v2264
    %v2266 = vpop.f32.mrb[0].mxu0
    %2267 = vdwg.mxu0
    %v2268 = vadd.f32 %v2061, %v2265
    %v2269 = vxor.u32 %v2268, 2147483648
    %v2270 = vmul.f32 %v2269, 1.442695
    %v2271 = vpow.pop %v2270
    %v2272 = vadd.f32 %v2271, 1.0
    %v2273 = vrcp.pop %v2272
    %v2274 = vmul.f32 1.0, %v2273
    %v2275 = vtanh.pop %v2268
    %v2276 = vmul.f32 %v2274, %v2186
    %2278 = vrot.lane.b32.xlu0 %v2275, 64
    %v2279 = vpop.permute.xlu0 %2278
    %v2281 = vmul.f32 %v2274, %v2279
    %2283 = vrot.lane.b32.xlu0 %v2281, 32
    %v2284 = vpop.permute.xlu0 %2283
    %v2286 = vadd.f32 %v2276, %v2284
    %v2287 = vtanh.pop %v2286
    %2289 = vrot.lane.b32.xlu0 %v2287, 64
    %v2290 = vpop.permute.xlu0 %2289
    %v2292 = vmul.f32 %v2274, %v2290
    %2294 = vrot.lane.b32.xlu0 %v2292, 32
    %v2295 = vpop.permute.xlu0 %2294
    %v2296 = vsel %vm254, %v2295, 0
    %2298 = vmatprep.subr.mxu0 0.0
    %2299 = vmatpush1.msra.mxu0 %v2094
    %2300 = vmatprep.subr.mxu0 0.0
    %2301 = vmatpush1.msra.mxu0 %v2095
    %2302 = vmatprep.subr.mxu0 0.0
    %2303 = vmatpush1.msra.mxu0 %v2096
    %2304 = vmatprep.subr.mxu0 0.0
    %2305 = vmatpush1.msra.mxu0 %v2097
    %2306 = vmatprep.subr.mxu0 0.0
    %2307 = vmatpush1.msra.mxu0 0.0
    %2308 = vmatprep.subr.mxu0 0.0
    %2309 = vmatpush1.msra.mxu0 0.0
    %2310 = vmatprep.subr.mxu0 0.0
    %2311 = vmatpush1.msra.mxu0 0.0
    %2312 = vmatprep.subr.mxu0 0.0
    %2313 = vmatpush1.msra.mxu0 0.0
    %2314 = vmatprep.subr.mxu0 0.0
    %2315 = vmatpush1.msra.mxu0 0.0
    %2316 = vmatprep.subr.mxu0 0.0
    %2317 = vmatpush1.msra.mxu0 0.0
    %2318 = vmatprep.subr.mxu0 0.0
    %2319 = vmatpush1.msra.mxu0 0.0
    %2320 = vmatprep.subr.mxu0 0.0
    %2321 = vmatpush1.msra.mxu0 0.0
    %2322 = vmatprep.subr.mxu0 0.0
    %2323 = vmatpush1.msra.mxu0 0.0
    %2324 = vmatprep.subr.mxu0 0.0
    %2325 = vmatpush1.msra.mxu0 0.0
    %2326 = vmatprep.subr.mxu0 0.0
    %2327 = vmatpush1.msra.mxu0 0.0
    %2328 = vmatprep.subr.mxu0 0.0
    %2329 = vmatpush1.msra.mxu0 0.0
    %2330 = vmatprep.subr.mxu0 0.0
    %2331 = vmatpush1.msra.mxu0 0.0
    %2332 = vmatprep.subr.mxu0 0.0
    %2333 = vmatpush1.msra.mxu0 0.0
    %2334 = vmatprep.subr.mxu0 0.0
    %2335 = vmatpush1.msra.mxu0 0.0
    %2336 = vmatprep.subr.mxu0 0.0
    %2337 = vmatpush1.msra.mxu0 0.0
    %2338 = vmatprep.subr.mxu0 0.0
    %2339 = vmatpush1.msra.mxu0 0.0
    %2340 = vmatprep.subr.mxu0 0.0
    %2341 = vmatpush1.msra.mxu0 0.0
    %2342 = vmatprep.subr.mxu0 0.0
    %2343 = vmatpush1.msra.mxu0 0.0
    %2344 = vmatprep.subr.mxu0 0.0
    %2345 = vmatpush1.msra.mxu0 0.0
    %2346 = vmatprep.subr.mxu0 0.0
    %2347 = vmatpush1.msra.mxu0 0.0
    %2348 = vmatprep.subr.mxu0 0.0
    %2349 = vmatpush1.msra.mxu0 0.0
    %2350 = vmatprep.subr.mxu0 0.0
    %2351 = vmatpush1.msra.mxu0 0.0
    %2352 = vmatprep.subr.mxu0 0.0
    %2353 = vmatpush1.msra.mxu0 0.0
    %2354 = vmatprep.subr.mxu0 0.0
    %2355 = vmatpush1.msra.mxu0 0.0
    %2356 = vmatprep.subr.mxu0 0.0
    %2357 = vmatpush1.msra.mxu0 0.0
    %2358 = vmatprep.subr.mxu0 0.0
    %2359 = vmatpush1.msra.mxu0 0.0
    %2360 = vmatprep.subr.mxu0 0.0
    %2361 = vmatpush1.msra.mxu0 0.0
    %2362 = vmatprep.mubr.f32.mxu0 0.0
    %2363 = vmatmul.mubr.f32.gmra.mrb[0].mxu0 %v2296
    %v2364 = vpop.f32.mrb[0].mxu0
    %v2365 = vadd.f32 0.0, %v2364
    %v2366 = vpop.f32.mrb[0].mxu0
    %2367 = vdwg.mxu0
    %v2368 = vadd.f32 %v2066, %v2365
    %v2369 = vxor.u32 %v2368, 2147483648
    %v2370 = vmul.f32 %v2369, 1.442695
    %v2371 = vpow.pop %v2370
    %v2372 = vadd.f32 %v2371, 1.0
    %v2373 = vrcp.pop %v2372
    %v2374 = vmul.f32 1.0, %v2373
    %v2375 = vtanh.pop %v2368
    %v2376 = vmul.f32 %v2374, %v2286
    %2378 = vrot.lane.b32.xlu0 %v2375, 64
    %v2379 = vpop.permute.xlu0 %2378
    %v2381 = vmul.f32 %v2374, %v2379
    %2383 = vrot.lane.b32.xlu0 %v2381, 32
    %v2384 = vpop.permute.xlu0 %2383
    %v2386 = vadd.f32 %v2376, %v2384
    %v2387 = vtanh.pop %v2386
    %2389 = vrot.lane.b32.xlu0 %v2387, 64
    %v2390 = vpop.permute.xlu0 %2389
    %v2392 = vmul.f32 %v2374, %v2390
    %2394 = vrot.lane.b32.xlu0 %v2392, 32
    %v2395 = vpop.permute.xlu0 %2394
    %v2396 = vsel %vm254, %v2395, 0
    %2398 = vmatprep.subr.mxu0 0.0
    %2399 = vmatpush1.msra.mxu0 %v2094
    %2400 = vmatprep.subr.mxu0 0.0
    %2401 = vmatpush1.msra.mxu0 %v2095
    %2402 = vmatprep.subr.mxu0 0.0
    %2403 = vmatpush1.msra.mxu0 %v2096
    %2404 = vmatprep.subr.mxu0 0.0
    %2405 = vmatpush1.msra.mxu0 %v2097
    %2406 = vmatprep.subr.mxu0 0.0
    %2407 = vmatpush1.msra.mxu0 0.0
    %2408 = vmatprep.subr.mxu0 0.0
    %2409 = vmatpush1.msra.mxu0 0.0
    %2410 = vmatprep.subr.mxu0 0.0
    %2411 = vmatpush1.msra.mxu0 0.0
    %2412 = vmatprep.subr.mxu0 0.0
    %2413 = vmatpush1.msra.mxu0 0.0
    %2414 = vmatprep.subr.mxu0 0.0
    %2415 = vmatpush1.msra.mxu0 0.0
    %2416 = vmatprep.subr.mxu0 0.0
    %2417 = vmatpush1.msra.mxu0 0.0
    %2418 = vmatprep.subr.mxu0 0.0
    %2419 = vmatpush1.msra.mxu0 0.0
    %2420 = vmatprep.subr.mxu0 0.0
    %2421 = vmatpush1.msra.mxu0 0.0
    %2422 = vmatprep.subr.mxu0 0.0
    %2423 = vmatpush1.msra.mxu0 0.0
    %2424 = vmatprep.subr.mxu0 0.0
    %2425 = vmatpush1.msra.mxu0 0.0
    %2426 = vmatprep.subr.mxu0 0.0
    %2427 = vmatpush1.msra.mxu0 0.0
    %2428 = vmatprep.subr.mxu0 0.0
    %2429 = vmatpush1.msra.mxu0 0.0
    %2430 = vmatprep.subr.mxu0 0.0
    %2431 = vmatpush1.msra.mxu0 0.0
    %2432 = vmatprep.subr.mxu0 0.0
    %2433 = vmatpush1.msra.mxu0 0.0
    %2434 = vmatprep.subr.mxu0 0.0
    %2435 = vmatpush1.msra.mxu0 0.0
    %2436 = vmatprep.subr.mxu0 0.0
    %2437 = vmatpush1.msra.mxu0 0.0
    %2438 = vmatprep.subr.mxu0 0.0
    %2439 = vmatpush1.msra.mxu0 0.0
    %2440 = vmatprep.subr.mxu0 0.0
    %2441 = vmatpush1.msra.mxu0 0.0
    %2442 = vmatprep.subr.mxu0 0.0
    %2443 = vmatpush1.msra.mxu0 0.0
    %2444 = vmatprep.subr.mxu0 0.0
    %2445 = vmatpush1.msra.mxu0 0.0
    %2446 = vmatprep.subr.mxu0 0.0
    %2447 = vmatpush1.msra.mxu0 0.0
    %2448 = vmatprep.subr.mxu0 0.0
    %2449 = vmatpush1.msra.mxu0 0.0
    %2450 = vmatprep.subr.mxu0 0.0
    %2451 = vmatpush1.msra.mxu0 0.0
    %2452 = vmatprep.subr.mxu0 0.0
    %2453 = vmatpush1.msra.mxu0 0.0
    %2454 = vmatprep.subr.mxu0 0.0
    %2455 = vmatpush1.msra.mxu0 0.0
    %2456 = vmatprep.subr.mxu0 0.0
    %2457 = vmatpush1.msra.mxu0 0.0
    %2458 = vmatprep.subr.mxu0 0.0
    %2459 = vmatpush1.msra.mxu0 0.0
    %2460 = vmatprep.subr.mxu0 0.0
    %2461 = vmatpush1.msra.mxu0 0.0
    %2462 = vmatprep.mubr.f32.mxu0 0.0
    %2463 = vmatmul.mubr.f32.gmra.mrb[0].mxu0 %v2396
    %v2464 = vpop.f32.mrb[0].mxu0
    %v2465 = vadd.f32 0.0, %v2464
    %v2466 = vpop.f32.mrb[0].mxu0
    %2467 = vdwg.mxu0
    %v2468 = vadd.f32 %v2071, %v2465
    %v2469 = vxor.u32 %v2468, 2147483648
    %v2470 = vmul.f32 %v2469, 1.442695
    %v2471 = vpow.pop %v2470
    %v2472 = vadd.f32 %v2471, 1.0
    %v2473 = vrcp.pop %v2472
    %v2474 = vmul.f32 1.0, %v2473
    %v2475 = vtanh.pop %v2468
    %v2476 = vmul.f32 %v2474, %v2386
    %2478 = vrot.lane.b32.xlu0 %v2475, 64
    %v2479 = vpop.permute.xlu0 %2478
    %v2481 = vmul.f32 %v2474, %v2479
    %2483 = vrot.lane.b32.xlu0 %v2481, 32
    %v2484 = vpop.permute.xlu0 %2483
    %v2486 = vadd.f32 %v2476, %v2484
    %v2487 = vtanh.pop %v2486
    %2489 = vrot.lane.b32.xlu0 %v2487, 64
    %v2490 = vpop.permute.xlu0 %2489
    %v2492 = vmul.f32 %v2474, %v2490
    %2494 = vrot.lane.b32.xlu0 %v2492, 32
    %v2495 = vpop.permute.xlu0 %2494
    %v2496 = vsel %vm254, %v2495, 0
    %2498 = vmatprep.subr.mxu0 0.0
    %2499 = vmatpush1.msra.mxu0 %v2094
    %2500 = vmatprep.subr.mxu0 0.0
    %2501 = vmatpush1.msra.mxu0 %v2095
    %2502 = vmatprep.subr.mxu0 0.0
    %2503 = vmatpush1.msra.mxu0 %v2096
    %2504 = vmatprep.subr.mxu0 0.0
    %2505 = vmatpush1.msra.mxu0 %v2097
    %2506 = vmatprep.subr.mxu0 0.0
    %2507 = vmatpush1.msra.mxu0 0.0
    %2508 = vmatprep.subr.mxu0 0.0
    %2509 = vmatpush1.msra.mxu0 0.0
    %2510 = vmatprep.subr.mxu0 0.0
    %2511 = vmatpush1.msra.mxu0 0.0
    %2512 = vmatprep.subr.mxu0 0.0
    %2513 = vmatpush1.msra.mxu0 0.0
    %2514 = vmatprep.subr.mxu0 0.0
    %2515 = vmatpush1.msra.mxu0 0.0
    %2516 = vmatprep.subr.mxu0 0.0
    %2517 = vmatpush1.msra.mxu0 0.0
    %2518 = vmatprep.subr.mxu0 0.0
    %2519 = vmatpush1.msra.mxu0 0.0
    %2520 = vmatprep.subr.mxu0 0.0
    %2521 = vmatpush1.msra.mxu0 0.0
    %2522 = vmatprep.subr.mxu0 0.0
    %2523 = vmatpush1.msra.mxu0 0.0
    %2524 = vmatprep.subr.mxu0 0.0
    %2525 = vmatpush1.msra.mxu0 0.0
    %2526 = vmatprep.subr.mxu0 0.0
    %2527 = vmatpush1.msra.mxu0 0.0
    %2528 = vmatprep.subr.mxu0 0.0
    %2529 = vmatpush1.msra.mxu0 0.0
    %2530 = vmatprep.subr.mxu0 0.0
    %2531 = vmatpush1.msra.mxu0 0.0
    %2532 = vmatprep.subr.mxu0 0.0
    %2533 = vmatpush1.msra.mxu0 0.0
    %2534 = vmatprep.subr.mxu0 0.0
    %2535 = vmatpush1.msra.mxu0 0.0
    %2536 = vmatprep.subr.mxu0 0.0
    %2537 = vmatpush1.msra.mxu0 0.0
    %2538 = vmatprep.subr.mxu0 0.0
    %2539 = vmatpush1.msra.mxu0 0.0
    %2540 = vmatprep.subr.mxu0 0.0
    %2541 = vmatpush1.msra.mxu0 0.0
    %2542 = vmatprep.subr.mxu0 0.0
    %2543 = vmatpush1.msra.mxu0 0.0
    %2544 = vmatprep.subr.mxu0 0.0
    %2545 = vmatpush1.msra.mxu0 0.0
    %2546 = vmatprep.subr.mxu0 0.0
    %2547 = vmatpush1.msra.mxu0 0.0
    %2548 = vmatprep.subr.mxu0 0.0
    %2549 = vmatpush1.msra.mxu0 0.0
    %2550 = vmatprep.subr.mxu0 0.0
    %2551 = vmatpush1.msra.mxu0 0.0
    %2552 = vmatprep.subr.mxu0 0.0
    %2553 = vmatpush1.msra.mxu0 0.0
    %2554 = vmatprep.subr.mxu0 0.0
    %2555 = vmatpush1.msra.mxu0 0.0
    %2556 = vmatprep.subr.mxu0 0.0
    %2557 = vmatpush1.msra.mxu0 0.0
    %2558 = vmatprep.subr.mxu0 0.0
    %2559 = vmatpush1.msra.mxu0 0.0
    %2560 = vmatprep.subr.mxu0 0.0
    %2561 = vmatpush1.msra.mxu0 0.0
    %2562 = vmatprep.mubr.f32.mxu0 0.0
    %2563 = vmatmul.mubr.f32.gmra.mrb[0].mxu0 %v2496
    %v2564 = vpop.f32.mrb[0].mxu0
    %v2565 = vadd.f32 0.0, %v2564
    %v2566 = vpop.f32.mrb[0].mxu0
    %2567 = vdwg.mxu0
    %v2568 = vadd.f32 %v2076, %v2565
    %v2569 = vxor.u32 %v2568, 2147483648
    %v2570 = vmul.f32 %v2569, 1.442695
    %v2571 = vpow.pop %v2570
    %v2572 = vadd.f32 %v2571, 1.0
    %v2573 = vrcp.pop %v2572
    %v2574 = vmul.f32 1.0, %v2573
    %v2575 = vtanh.pop %v2568
    %v2576 = vmul.f32 %v2574, %v2486
    %2578 = vrot.lane.b32.xlu0 %v2575, 64
    %v2579 = vpop.permute.xlu0 %2578
    %v2581 = vmul.f32 %v2574, %v2579
    %2583 = vrot.lane.b32.xlu0 %v2581, 32
    %v2584 = vpop.permute.xlu0 %2583
    %v2586 = vadd.f32 %v2576, %v2584
    %v2587 = vtanh.pop %v2586
    %2589 = vrot.lane.b32.xlu0 %v2587, 64
    %v2590 = vpop.permute.xlu0 %2589
    %v2592 = vmul.f32 %v2574, %v2590
    %2594 = vrot.lane.b32.xlu0 %v2592, 32
    %v2595 = vpop.permute.xlu0 %2594
    %v2596 = vsel %vm254, %v2595, 0
    %2598 = vmatprep.subr.mxu0 0.0
    %2599 = vmatpush1.msra.mxu0 %v2094
    %2600 = vmatprep.subr.mxu0 0.0
    %2601 = vmatpush1.msra.mxu0 %v2095
    %2602 = vmatprep.subr.mxu0 0.0
    %2603 = vmatpush1.msra.mxu0 %v2096
    %2604 = vmatprep.subr.mxu0 0.0
    %2605 = vmatpush1.msra.mxu0 %v2097
    %2606 = vmatprep.subr.mxu0 0.0
    %2607 = vmatpush1.msra.mxu0 0.0
    %2608 = vmatprep.subr.mxu0 0.0
    %2609 = vmatpush1.msra.mxu0 0.0
    %2610 = vmatprep.subr.mxu0 0.0
    %2611 = vmatpush1.msra.mxu0 0.0
    %2612 = vmatprep.subr.mxu0 0.0
    %2613 = vmatpush1.msra.mxu0 0.0
    %2614 = vmatprep.subr.mxu0 0.0
    %2615 = vmatpush1.msra.mxu0 0.0
    %2616 = vmatprep.subr.mxu0 0.0
    %2617 = vmatpush1.msra.mxu0 0.0
    %2618 = vmatprep.subr.mxu0 0.0
    %2619 = vmatpush1.msra.mxu0 0.0
    %2620 = vmatprep.subr.mxu0 0.0
    %2621 = vmatpush1.msra.mxu0 0.0
    %2622 = vmatprep.subr.mxu0 0.0
    %2623 = vmatpush1.msra.mxu0 0.0
    %2624 = vmatprep.subr.mxu0 0.0
    %2625 = vmatpush1.msra.mxu0 0.0
    %2626 = vmatprep.subr.mxu0 0.0
    %2627 = vmatpush1.msra.mxu0 0.0
    %2628 = vmatprep.subr.mxu0 0.0
    %2629 = vmatpush1.msra.mxu0 0.0
    %2630 = vmatprep.subr.mxu0 0.0
    %2631 = vmatpush1.msra.mxu0 0.0
    %2632 = vmatprep.subr.mxu0 0.0
    %2633 = vmatpush1.msra.mxu0 0.0
    %2634 = vmatprep.subr.mxu0 0.0
    %2635 = vmatpush1.msra.mxu0 0.0
    %2636 = vmatprep.subr.mxu0 0.0
    %2637 = vmatpush1.msra.mxu0 0.0
    %2638 = vmatprep.subr.mxu0 0.0
    %2639 = vmatpush1.msra.mxu0 0.0
    %2640 = vmatprep.subr.mxu0 0.0
    %2641 = vmatpush1.msra.mxu0 0.0
    %2642 = vmatprep.subr.mxu0 0.0
    %2643 = vmatpush1.msra.mxu0 0.0
    %2644 = vmatprep.subr.mxu0 0.0
    %2645 = vmatpush1.msra.mxu0 0.0
    %2646 = vmatprep.subr.mxu0 0.0
    %2647 = vmatpush1.msra.mxu0 0.0
    %2648 = vmatprep.subr.mxu0 0.0
    %2649 = vmatpush1.msra.mxu0 0.0
    %2650 = vmatprep.subr.mxu0 0.0
    %2651 = vmatpush1.msra.mxu0 0.0
    %2652 = vmatprep.subr.mxu0 0.0
    %2653 = vmatpush1.msra.mxu0 0.0
    %2654 = vmatprep.subr.mxu0 0.0
    %2655 = vmatpush1.msra.mxu0 0.0
    %2656 = vmatprep.subr.mxu0 0.0
    %2657 = vmatpush1.msra.mxu0 0.0
    %2658 = vmatprep.subr.mxu0 0.0
    %2659 = vmatpush1.msra.mxu0 0.0
    %2660 = vmatprep.subr.mxu0 0.0
    %2661 = vmatpush1.msra.mxu0 0.0
    %2662 = vmatprep.mubr.f32.mxu0 0.0
    %2663 = vmatmul.mubr.f32.gmra.mrb[0].mxu0 %v2596
    %v2664 = vpop.f32.mrb[0].mxu0
    %v2665 = vadd.f32 0.0, %v2664
    %v2666 = vpop.f32.mrb[0].mxu0
    %2667 = vdwg.mxu0
    %v2668 = vadd.f32 %v2081, %v2665
    %v2669 = vxor.u32 %v2668, 2147483648
    %v2670 = vmul.f32 %v2669, 1.442695
    %v2671 = vpow.pop %v2670
    %v2672 = vadd.f32 %v2671, 1.0
    %v2673 = vrcp.pop %v2672
    %v2674 = vmul.f32 1.0, %v2673
    %v2675 = vtanh.pop %v2668
    %v2676 = vmul.f32 %v2674, %v2586
    %2678 = vrot.lane.b32.xlu0 %v2675, 64
    %v2679 = vpop.permute.xlu0 %2678
    %v2681 = vmul.f32 %v2674, %v2679
    %2683 = vrot.lane.b32.xlu0 %v2681, 32
    %v2684 = vpop.permute.xlu0 %2683
    %v2686 = vadd.f32 %v2676, %v2684
    %v2687 = vtanh.pop %v2686
    %2689 = vrot.lane.b32.xlu0 %v2687, 64
    %v2690 = vpop.permute.xlu0 %2689
    %v2692 = vmul.f32 %v2674, %v2690
    %2694 = vrot.lane.b32.xlu0 %v2692, 32
    %v2695 = vpop.permute.xlu0 %2694
    %v2696 = vsel %vm254, %v2695, 0
    %2698 = vmatprep.subr.mxu0 0.0
    %2699 = vmatpush1.msra.mxu0 %v2094
    %2700 = vmatprep.subr.mxu0 0.0
    %2701 = vmatpush1.msra.mxu0 %v2095
    %2702 = vmatprep.subr.mxu0 0.0
    %2703 = vmatpush1.msra.mxu0 %v2096
    %2704 = vmatprep.subr.mxu0 0.0
    %2705 = vmatpush1.msra.mxu0 %v2097
    %2706 = vmatprep.subr.mxu0 0.0
    %2707 = vmatpush1.msra.mxu0 0.0
    %2708 = vmatprep.subr.mxu0 0.0
    %2709 = vmatpush1.msra.mxu0 0.0
    %2710 = vmatprep.subr.mxu0 0.0
    %2711 = vmatpush1.msra.mxu0 0.0
    %2712 = vmatprep.subr.mxu0 0.0
    %2713 = vmatpush1.msra.mxu0 0.0
    %2714 = vmatprep.subr.mxu0 0.0
    %2715 = vmatpush1.msra.mxu0 0.0
    %2716 = vmatprep.subr.mxu0 0.0
    %2717 = vmatpush1.msra.mxu0 0.0
    %2718 = vmatprep.subr.mxu0 0.0
    %2719 = vmatpush1.msra.mxu0 0.0
    %2720 = vmatprep.subr.mxu0 0.0
    %2721 = vmatpush1.msra.mxu0 0.0
    %2722 = vmatprep.subr.mxu0 0.0
    %2723 = vmatpush1.msra.mxu0 0.0
    %2724 = vmatprep.subr.mxu0 0.0
    %2725 = vmatpush1.msra.mxu0 0.0
    %2726 = vmatprep.subr.mxu0 0.0
    %2727 = vmatpush1.msra.mxu0 0.0
    %2728 = vmatprep.subr.mxu0 0.0
    %2729 = vmatpush1.msra.mxu0 0.0
    %2730 = vmatprep.subr.mxu0 0.0
    %2731 = vmatpush1.msra.mxu0 0.0
    %2732 = vmatprep.subr.mxu0 0.0
    %2733 = vmatpush1.msra.mxu0 0.0
    %2734 = vmatprep.subr.mxu0 0.0
    %2735 = vmatpush1.msra.mxu0 0.0
    %2736 = vmatprep.subr.mxu0 0.0
    %2737 = vmatpush1.msra.mxu0 0.0
    %2738 = vmatprep.subr.mxu0 0.0
    %2739 = vmatpush1.msra.mxu0 0.0
    %2740 = vmatprep.subr.mxu0 0.0
    %2741 = vmatpush1.msra.mxu0 0.0
    %2742 = vmatprep.subr.mxu0 0.0
    %2743 = vmatpush1.msra.mxu0 0.0
    %2744 = vmatprep.subr.mxu0 0.0
    %2745 = vmatpush1.msra.mxu0 0.0
    %2746 = vmatprep.subr.mxu0 0.0
    %2747 = vmatpush1.msra.mxu0 0.0
    %2748 = vmatprep.subr.mxu0 0.0
    %2749 = vmatpush1.msra.mxu0 0.0
    %2750 = vmatprep.subr.mxu0 0.0
    %2751 = vmatpush1.msra.mxu0 0.0
    %2752 = vmatprep.subr.mxu0 0.0
    %2753 = vmatpush1.msra.mxu0 0.0
    %2754 = vmatprep.subr.mxu0 0.0
    %2755 = vmatpush1.msra.mxu0 0.0
    %2756 = vmatprep.subr.mxu0 0.0
    %2757 = vmatpush1.msra.mxu0 0.0
    %2758 = vmatprep.subr.mxu0 0.0
    %2759 = vmatpush1.msra.mxu0 0.0
    %2760 = vmatprep.subr.mxu0 0.0
    %2761 = vmatpush1.msra.mxu0 0.0
    %2762 = vmatprep.mubr.f32.mxu0 0.0
    %2763 = vmatmul.mubr.f32.gmra.mrb[0].mxu0 %v2696
    %v2764 = vpop.f32.mrb[0].mxu0
    %v2765 = vadd.f32 0.0, %v2764
    %v2766 = vpop.f32.mrb[0].mxu0
    %2767 = vdwg.mxu0
    %v2768 = vadd.f32 %v2086, %v2765
    %v2769 = vxor.u32 %v2768, 2147483648
    %v2770 = vmul.f32 %v2769, 1.442695
    %v2771 = vpow.pop %v2770
    %v2772 = vadd.f32 %v2771, 1.0
    %v2773 = vrcp.pop %v2772
    %v2774 = vmul.f32 1.0, %v2773
    %v2775 = vtanh.pop %v2768
    %v2776 = vmul.f32 %v2774, %v2686
    %2778 = vrot.lane.b32.xlu0 %v2775, 64
    %v2779 = vpop.permute.xlu0 %2778
    %v2781 = vmul.f32 %v2774, %v2779
    %2783 = vrot.lane.b32.xlu0 %v2781, 32
    %v2784 = vpop.permute.xlu0 %2783
    %v2786 = vadd.f32 %v2776, %v2784
    %v2787 = vtanh.pop %v2786
    %2789 = vrot.lane.b32.xlu0 %v2787, 64
    %v2790 = vpop.permute.xlu0 %2789
    %v2792 = vmul.f32 %v2774, %v2790
    %2794 = vrot.lane.b32.xlu0 %v2792, 32
    %v2795 = vpop.permute.xlu0 %2794
    %v2796 = vsel %vm254, %v2795, 0
    %2798 = vmatprep.subr.mxu0 0.0
    %2799 = vmatpush1.msra.mxu0 %v2094
    %2800 = vmatprep.subr.mxu0 0.0
    %2801 = vmatpush1.msra.mxu0 %v2095
    %2802 = vmatprep.subr.mxu0 0.0
    %2803 = vmatpush1.msra.mxu0 %v2096
    %2804 = vmatprep.subr.mxu0 0.0
    %2805 = vmatpush1.msra.mxu0 %v2097
    %2806 = vmatprep.subr.mxu0 0.0
    %2807 = vmatpush1.msra.mxu0 0.0
    %2808 = vmatprep.subr.mxu0 0.0
    %2809 = vmatpush1.msra.mxu0 0.0
    %2810 = vmatprep.subr.mxu0 0.0
    %2811 = vmatpush1.msra.mxu0 0.0
    %2812 = vmatprep.subr.mxu0 0.0
    %2813 = vmatpush1.msra.mxu0 0.0
    %2814 = vmatprep.subr.mxu0 0.0
    %2815 = vmatpush1.msra.mxu0 0.0
    %2816 = vmatprep.subr.mxu0 0.0
    %2817 = vmatpush1.msra.mxu0 0.0
    %2818 = vmatprep.subr.mxu0 0.0
    %2819 = vmatpush1.msra.mxu0 0.0
    %2820 = vmatprep.subr.mxu0 0.0
    %2821 = vmatpush1.msra.mxu0 0.0
    %2822 = vmatprep.subr.mxu0 0.0
    %2823 = vmatpush1.msra.mxu0 0.0
    %2824 = vmatprep.subr.mxu0 0.0
    %2825 = vmatpush1.msra.mxu0 0.0
    %2826 = vmatprep.subr.mxu0 0.0
    %2827 = vmatpush1.msra.mxu0 0.0
    %2828 = vmatprep.subr.mxu0 0.0
    %2829 = vmatpush1.msra.mxu0 0.0
    %2830 = vmatprep.subr.mxu0 0.0
    %2831 = vmatpush1.msra.mxu0 0.0
    %2832 = vmatprep.subr.mxu0 0.0
    %2833 = vmatpush1.msra.mxu0 0.0
    %2834 = vmatprep.subr.mxu0 0.0
    %2835 = vmatpush1.msra.mxu0 0.0
    %2836 = vmatprep.subr.mxu0 0.0
    %2837 = vmatpush1.msra.mxu0 0.0
    %2838 = vmatprep.subr.mxu0 0.0
    %2839 = vmatpush1.msra.mxu0 0.0
    %2840 = vmatprep.subr.mxu0 0.0
    %2841 = vmatpush1.msra.mxu0 0.0
    %2842 = vmatprep.subr.mxu0 0.0
    %2843 = vmatpush1.msra.mxu0 0.0
    %2844 = vmatprep.subr.mxu0 0.0
    %2845 = vmatpush1.msra.mxu0 0.0
    %2846 = vmatprep.subr.mxu0 0.0
    %2847 = vmatpush1.msra.mxu0 0.0
    %2848 = vmatprep.subr.mxu0 0.0
    %2849 = vmatpush1.msra.mxu0 0.0
    %2850 = vmatprep.subr.mxu0 0.0
    %2851 = vmatpush1.msra.mxu0 0.0
    %2852 = vmatprep.subr.mxu0 0.0
    %2853 = vmatpush1.msra.mxu0 0.0
    %2854 = vmatprep.subr.mxu0 0.0
    %2855 = vmatpush1.msra.mxu0 0.0
    %2856 = vmatprep.subr.mxu0 0.0
    %2857 = vmatpush1.msra.mxu0 0.0
    %2858 = vmatprep.subr.mxu0 0.0
    %2859 = vmatpush1.msra.mxu0 0.0
    %2860 = vmatprep.subr.mxu0 0.0
    %2861 = vmatpush1.msra.mxu0 0.0
    %2862 = vmatprep.mubr.f32.mxu0 0.0
    %2863 = vmatmul.mubr.f32.gmra.mrb[0].mxu0 %v2796
    %v2864 = vpop.f32.mrb[0].mxu0
    %v2865 = vadd.f32 0.0, %v2864
    %v2866 = vpop.f32.mrb[0].mxu0
    %2867 = vdwg.mxu0
    %v2868 = vadd.f32 %v2091, %v2865
    %v2869 = vxor.u32 %v2868, 2147483648
    %v2870 = vmul.f32 %v2869, 1.442695
    %v2871 = vpow.pop %v2870
    %v2872 = vadd.f32 %v2871, 1.0
    %v2873 = vrcp.pop %v2872
    %v2874 = vmul.f32 1.0, %v2873
    %v2875 = vtanh.pop %v2868
    %v2876 = vmul.f32 %v2874, %v2786
    %2878 = vrot.lane.b32.xlu0 %v2875, 64
    %v2879 = vpop.permute.xlu0 %2878
    %v2881 = vmul.f32 %v2874, %v2879
    %2883 = vrot.lane.b32.xlu0 %v2881, 32
    %v2884 = vpop.permute.xlu0 %2883
    %v2886 = vadd.f32 %v2876, %v2884
    %v2887 = vtanh.pop %v2886
    %2889 = vrot.lane.b32.xlu0 %v2887, 64
    %v2890 = vpop.permute.xlu0 %2889
    %v2892 = vmul.f32 %v2874, %v2890
    %v2893 = vld [vmem:[%s10] sm:$0xff]
    %v2894 = vld [vmem:[%s10 + $0x8] sm:$0xff]
    %v2895 = vld [vmem:[%s10 + $0x10] sm:$0xff]
    %v2896 = vld [vmem:[%s10 + $0x18] sm:$0xff]
    %v2897 = vld [vmem:[#allocation6] sm:$0x1]
    %v2899 = vlaneseq
    %v2900 = vshrl.u32 %v2899, 7
    %v2901 = vsub.s32 0, %v2900
    %v2902 = vrot.slane %v2897, %v2901
    %2905 = vrot.lane.b32.xlu0 %v2892, 32
    %v2906 = vpop.permute.xlu0 %2905
    %v2907 = vsel %vm254, %v2906, 0
    %2909 = vmatprep.subr.mxu0 0.0
    %2910 = vmatpush1.msra.mxu0 %v2893
    %2911 = vmatprep.subr.mxu0 0.0
    %2912 = vmatpush1.msra.mxu0 %v2894
    %2913 = vmatprep.subr.mxu0 0.0
    %2914 = vmatpush1.msra.mxu0 %v2895
    %2915 = vmatprep.subr.mxu0 0.0
    %2916 = vmatpush1.msra.mxu0 %v2896
    %2917 = vmatprep.subr.mxu0 0.0
    %2918 = vmatpush1.msra.mxu0 0.0
    %2919 = vmatprep.subr.mxu0 0.0
    %2920 = vmatpush1.msra.mxu0 0.0
    %2921 = vmatprep.subr.mxu0 0.0
    %2922 = vmatpush1.msra.mxu0 0.0
    %2923 = vmatprep.subr.mxu0 0.0
    %2924 = vmatpush1.msra.mxu0 0.0
    %2925 = vmatprep.subr.mxu0 0.0
    %2926 = vmatpush1.msra.mxu0 0.0
    %2927 = vmatprep.subr.mxu0 0.0
    %2928 = vmatpush1.msra.mxu0 0.0
    %2929 = vmatprep.subr.mxu0 0.0
    %2930 = vmatpush1.msra.mxu0 0.0
    %2931 = vmatprep.subr.mxu0 0.0
    %2932 = vmatpush1.msra.mxu0 0.0
    %2933 = vmatprep.subr.mxu0 0.0
    %2934 = vmatpush1.msra.mxu0 0.0
    %2935 = vmatprep.subr.mxu0 0.0
    %2936 = vmatpush1.msra.mxu0 0.0
    %2937 = vmatprep.subr.mxu0 0.0
    %2938 = vmatpush1.msra.mxu0 0.0
    %2939 = vmatprep.subr.mxu0 0.0
    %2940 = vmatpush1.msra.mxu0 0.0
    %2941 = vmatprep.subr.mxu0 0.0
    %2942 = vmatpush1.msra.mxu0 0.0
    %2943 = vmatprep.subr.mxu0 0.0
    %2944 = vmatpush1.msra.mxu0 0.0
    %2945 = vmatprep.subr.mxu0 0.0
    %2946 = vmatpush1.msra.mxu0 0.0
    %2947 = vmatprep.subr.mxu0 0.0
    %2948 = vmatpush1.msra.mxu0 0.0
    %2949 = vmatprep.subr.mxu0 0.0
    %2950 = vmatpush1.msra.mxu0 0.0
    %2951 = vmatprep.subr.mxu0 0.0
    %2952 = vmatpush1.msra.mxu0 0.0
    %2953 = vmatprep.subr.mxu0 0.0
    %2954 = vmatpush1.msra.mxu0 0.0
    %2955 = vmatprep.subr.mxu0 0.0
    %2956 = vmatpush1.msra.mxu0 0.0
    %2957 = vmatprep.subr.mxu0 0.0
    %2958 = vmatpush1.msra.mxu0 0.0
    %2959 = vmatprep.subr.mxu0 0.0
    %2960 = vmatpush1.msra.mxu0 0.0
    %2961 = vmatprep.subr.mxu0 0.0
    %2962 = vmatpush1.msra.mxu0 0.0
    %2963 = vmatprep.subr.mxu0 0.0
    %2964 = vmatpush1.msra.mxu0 0.0
    %2965 = vmatprep.subr.mxu0 0.0
    %2966 = vmatpush1.msra.mxu0 0.0
    %2967 = vmatprep.subr.mxu0 0.0
    %2968 = vmatpush1.msra.mxu0 0.0
    %2969 = vmatprep.subr.mxu0 0.0
    %2970 = vmatpush1.msra.mxu0 0.0
    %2971 = vmatprep.subr.mxu0 0.0
    %2972 = vmatpush1.msra.mxu0 0.0
    %2973 = vmatprep.mubr.f32.mxu0 0.0
    %2974 = vmatmul.mubr.f32.gmra.mrb[0].mxu0 %v2196
    %v2975 = vpop.f32.mrb[0].mxu0
    %v2976 = vadd.f32 %v2902, %v2975
    %v2977 = vpop.f32.mrb[0].mxu0
    %2978 = vmatprep.mubr.f32.mxu0 0.0
    %2979 = vmatmul.mubr.f32.gmra.mrb[0].mxu0 %v2296
    %v2980 = vpop.f32.mrb[0].mxu0
    %v2981 = vadd.f32 %v2902, %v2980
    %v2982 = vpop.f32.mrb[0].mxu0
    %2983 = vmatprep.mubr.f32.mxu0 0.0
    %2984 = vmatmul.mubr.f32.gmra.mrb[0].mxu0 %v2396
    %v2985 = vpop.f32.mrb[0].mxu0
    %v2986 = vadd.f32 %v2902, %v2985
    %v2987 = vpop.f32.mrb[0].mxu0
    %2988 = vmatprep.mubr.f32.mxu0 0.0
    %2989 = vmatmul.mubr.f32.gmra.mrb[0].mxu0 %v2496
    %v2990 = vpop.f32.mrb[0].mxu0
    %v2991 = vadd.f32 %v2902, %v2990
    %v2992 = vpop.f32.mrb[0].mxu0
    %2993 = vmatprep.mubr.f32.mxu0 0.0
    %2994 = vmatmul.mubr.f32.gmra.mrb[0].mxu0 %v2596
    %v2995 = vpop.f32.mrb[0].mxu0
    %v2996 = vadd.f32 %v2902, %v2995
    %v2997 = vpop.f32.mrb[0].mxu0
    %2998 = vmatprep.mubr.f32.mxu0 0.0
    %2999 = vmatmul.mubr.f32.gmra.mrb[0].mxu0 %v2696
    %v3000 = vpop.f32.mrb[0].mxu0
    %v3001 = vadd.f32 %v2902, %v3000
    %v3002 = vpop.f32.mrb[0].mxu0
    %3003 = vmatprep.mubr.f32.mxu0 0.0
    %3004 = vmatmul.mubr.f32.gmra.mrb[0].mxu0 %v2796
    %v3005 = vpop.f32.mrb[0].mxu0
    %v3006 = vadd.f32 %v2902, %v3005
    %v3007 = vpop.f32.mrb[0].mxu0
    %3008 = vmatprep.mubr.f32.mxu0 0.0
    %3009 = vmatmul.mubr.f32.gmra.mrb[0].mxu0 %v2907
    %v3010 = vpop.f32.mrb[0].mxu0
    %v3011 = vadd.f32 %v2902, %v3010
    %v3012 = vpop.f32.mrb[0].mxu0
    %3013 = vdwg.mxu0
    %v3014 = vmax.f32 %v2976, 0.0
    %v3015 = vmax.f32 %v2981, 0.0
    %v3016 = vmax.f32 %v2986, 0.0
    %v3017 = vmax.f32 %v2991, 0.0
    %v3018 = vmax.f32 %v2996, 0.0
    %v3019 = vmax.f32 %v3001, 0.0
    %v3020 = vmax.f32 %v3006, 0.0
    %v3021 = vmax.f32 %v3011, 0.0
    %v3022 = vld [vmem:[%s12] sm:$0xff]
    %v3023 = vld [vmem:[%s12 + $0x8] sm:$0xff]
    %v3024 = vld [vmem:[#allocation7] sm:$0x1]
    %v3026 = vlaneseq
    %v3027 = vshrl.u32 %v3026, 7
    %v3028 = vsub.s32 0, %v3027
    %v3029 = vrot.slane %v3024, %v3028
    %vm3031 = vcmask 130048
    %v3033 = vsel %vm3031, %v3014, 0
    %v3036 = vsel %vm3031, %v3015, 0
    %v3039 = vsel %vm3031, %v3016, 0
    %v3042 = vsel %vm3031, %v3017, 0
    %v3045 = vsel %vm3031, %v3018, 0
    %v3048 = vsel %vm3031, %v3019, 0
    %v3051 = vsel %vm3031, %v3020, 0
    %v3054 = vsel %vm3031, %v3021, 0
    %3056 = vmatprep.subr.mxu0 0.0
    %3057 = vmatpush1.msra.mxu0 %v3022
    %3058 = vmatprep.subr.mxu0 0.0
    %3059 = vmatpush1.msra.mxu0 %v3023
    %3060 = vmatprep.subr.mxu0 0.0
    %3061 = vmatpush1.msra.mxu0 0.0
    %3062 = vmatprep.subr.mxu0 0.0
    %3063 = vmatpush1.msra.mxu0 0.0
    %3064 = vmatprep.subr.mxu0 0.0
    %3065 = vmatpush1.msra.mxu0 0.0
    %3066 = vmatprep.subr.mxu0 0.0
    %3067 = vmatpush1.msra.mxu0 0.0
    %3068 = vmatprep.subr.mxu0 0.0
    %3069 = vmatpush1.msra.mxu0 0.0
    %3070 = vmatprep.subr.mxu0 0.0
    %3071 = vmatpush1.msra.mxu0 0.0
    %3072 = vmatprep.subr.mxu0 0.0
    %3073 = vmatpush1.msra.mxu0 0.0
    %3074 = vmatprep.subr.mxu0 0.0
    %3075 = vmatpush1.msra.mxu0 0.0
    %3076 = vmatprep.subr.mxu0 0.0
    %3077 = vmatpush1.msra.mxu0 0.0
    %3078 = vmatprep.subr.mxu0 0.0
    %3079 = vmatpush1.msra.mxu0 0.0
    %3080 = vmatprep.subr.mxu0 0.0
    %3081 = vmatpush1.msra.mxu0 0.0
    %3082 = vmatprep.subr.mxu0 0.0
    %3083 = vmatpush1.msra.mxu0 0.0
    %3084 = vmatprep.subr.mxu0 0.0
    %3085 = vmatpush1.msra.mxu0 0.0
    %3086 = vmatprep.subr.mxu0 0.0
    %3087 = vmatpush1.msra.mxu0 0.0
    %3088 = vmatprep.subr.mxu0 0.0
    %3089 = vmatpush1.msra.mxu0 0.0
    %3090 = vmatprep.subr.mxu0 0.0
    %3091 = vmatpush1.msra.mxu0 0.0
    %3092 = vmatprep.subr.mxu0 0.0
    %3093 = vmatpush1.msra.mxu0 0.0
    %3094 = vmatprep.subr.mxu0 0.0
    %3095 = vmatpush1.msra.mxu0 0.0
    %3096 = vmatprep.subr.mxu0 0.0
    %3097 = vmatpush1.msra.mxu0 0.0
    %3098 = vmatprep.subr.mxu0 0.0
    %3099 = vmatpush1.msra.mxu0 0.0
    %3100 = vmatprep.subr.mxu0 0.0
    %3101 = vmatpush1.msra.mxu0 0.0
    %3102 = vmatprep.subr.mxu0 0.0
    %3103 = vmatpush1.msra.mxu0 0.0
    %3104 = vmatprep.subr.mxu0 0.0
    %3105 = vmatpush1.msra.mxu0 0.0
    %3106 = vmatprep.subr.mxu0 0.0
    %3107 = vmatpush1.msra.mxu0 0.0
    %3108 = vmatprep.subr.mxu0 0.0
    %3109 = vmatpush1.msra.mxu0 0.0
    %3110 = vmatprep.subr.mxu0 0.0
    %3111 = vmatpush1.msra.mxu0 0.0
    %3112 = vmatprep.subr.mxu0 0.0
    %3113 = vmatpush1.msra.mxu0 0.0
    %3114 = vmatprep.subr.mxu0 0.0
    %3115 = vmatpush1.msra.mxu0 0.0
    %3116 = vmatprep.subr.mxu0 0.0
    %3117 = vmatpush1.msra.mxu0 0.0
    %3118 = vmatprep.subr.mxu0 0.0
    %3119 = vmatpush1.msra.mxu0 0.0
    %3120 = vmatprep.mubr.f32.mxu0 0.0
    %3121 = vmatmul.mubr.f32.gmra.mrb[0].mxu0 %v3033
    %v3122 = vpop.f32.mrb[0].mxu0
    %v3123 = vadd.f32 %v3029, %v3122
    %v3124 = vpop.f32.mrb[0].mxu0
    %3125 = vmatprep.mubr.f32.mxu0 0.0
    %3126 = vmatmul.mubr.f32.gmra.mrb[0].mxu0 %v3036
    %v3127 = vpop.f32.mrb[0].mxu0
    %v3128 = vadd.f32 %v3029, %v3127
    %v3129 = vpop.f32.mrb[0].mxu0
    %3130 = vmatprep.mubr.f32.mxu0 0.0
    %3131 = vmatmul.mubr.f32.gmra.mrb[0].mxu0 %v3039
    %v3132 = vpop.f32.mrb[0].mxu0
    %v3133 = vadd.f32 %v3029, %v3132
    %v3134 = vpop.f32.mrb[0].mxu0
    %3135 = vmatprep.mubr.f32.mxu0 0.0
    %3136 = vmatmul.mubr.f32.gmra.mrb[0].mxu0 %v3042
    %v3137 = vpop.f32.mrb[0].mxu0
    %v3138 = vadd.f32 %v3029, %v3137
    %v3139 = vpop.f32.mrb[0].mxu0
    %3140 = vmatprep.mubr.f32.mxu0 0.0
    %3141 = vmatmul.mubr.f32.gmra.mrb[0].mxu0 %v3045
    %v3142 = vpop.f32.mrb[0].mxu0
    %v3143 = vadd.f32 %v3029, %v3142
    %v3144 = vpop.f32.mrb[0].mxu0
    %3145 = vmatprep.mubr.f32.mxu0 0.0
    %3146 = vmatmul.mubr.f32.gmra.mrb[0].mxu0 %v3048
    %v3147 = vpop.f32.mrb[0].mxu0
    %v3148 = vadd.f32 %v3029, %v3147
    %v3149 = vpop.f32.mrb[0].mxu0
    %3150 = vmatprep.mubr.f32.mxu0 0.0
    %3151 = vmatmul.mubr.f32.gmra.mrb[0].mxu0 %v3051
    %v3152 = vpop.f32.mrb[0].mxu0
    %v3153 = vadd.f32 %v3029, %v3152
    %v3154 = vpop.f32.mrb[0].mxu0
    %3155 = vmatprep.mubr.f32.mxu0 0.0
    %3156 = vmatmul.mubr.f32.gmra.mrb[0].mxu0 %v3054
    %v3157 = vpop.f32.mrb[0].mxu0
    %v3158 = vadd.f32 %v3029, %v3157
    %v3159 = vpop.f32.mrb[0].mxu0
    %3160 = vdwg.mxu0
    %vm3161 = vcmask 15360
    %3162 = vst.msk [vmem:[%s14] sm:$0xff] %vm3161, %v3123
    %3163 = vst.msk [vmem:[%s14 + $0x8] sm:$0xff] %vm3161, %v3128
    %3164 = vst.msk [vmem:[%s14 + $0x10] sm:$0xff] %vm3161, %v3133
    %3165 = vst.msk [vmem:[%s14 + $0x18] sm:$0xff] %vm3161, %v3138
    %3166 = vst.msk [vmem:[%s14 + $0x20] sm:$0xff] %vm3161, %v3143
    %3167 = vst.msk [vmem:[%s14 + $0x28] sm:$0xff] %vm3161, %v3148
    %3168 = vst.msk [vmem:[%s14 + $0x30] sm:$0xff] %vm3161, %v3153
    %3169 = vst.msk [vmem:[%s14 + $0x38] sm:$0xff] %vm3161, %v3158
    // Predicated region
    $region74: #{rnn_forward.1} parent=1 // pred_check
      _
    $region75: #{rnn_forward.1} parent=1 // pred_check_branch
      %3171 = sbr.rel (0) target = $region77
    $region76: #{rnn_forward.1} parent=1 // pred_region
      _
    $region77: #{rnn_forward.1} parent=1 // pred_fallthru
      _
    // Predicated region
    $region78: #{rnn_forward.1} parent=1 // pred_check
      _
    $region79: #{rnn_forward.1} parent=1 // pred_check_branch
      %3173 = sbr.rel (0) target = $region81
    $region80: #{rnn_forward.1} parent=1 // pred_region
      _
    $region81: #{rnn_forward.1} parent=1 // pred_fallthru
      _
    %3174 = vsyncpa [#allocation3], 1
    %3175 = vsyncpa [#allocation5], 1
    %3176 = vsyncpa [#allocation8], 1

</llo_original>
